<compile_context>
chip_gen: v7x
topology: tpu7x:2x2x1
jax: 0.10.0
libtpu: 0.0.40
codegen_flags: <defaults>
</compile_context>

<pallas_src>
import functools

import jax
import jax.numpy as jnp
from jax.experimental import pallas as pl
from jax.experimental.pallas import tpu as pltpu


# ---------------------------------------------------------------- Pallas kernel

def _resnet_block_kernel(x_ref, w_ref, o_ref, xbuf_ref, slab_ref, *, H, W, Wp, C, eps):
    """One batch sample per grid step.

    x_ref:    (1, H, W, C)        f32   unpadded NHWC input block
    w_ref:    (9*C, C)            bf16  tap-major weight matrix (row = (kh*3+kw)*C + cin)
    o_ref:    (1, H, W, C)        f32   residual output block
    xbuf_ref: (H+2, Wp, C)        f32   zero-padded frame (data at rows 1..H, cols 0..W-1)
    slab_ref: (H*Wp, 9*C)         bf16  im2col slab for the single big-K matmul
    """
    # ---- 1) build the zero-padded frame in VMEM (padding fused, no HBM pad pass).
    # Zero every step (scratch is per-core under "parallel" semantics, so no
    # first-iteration-only init); ~50 vregs of stores, negligible vs. the matmul.
    xbuf_ref[...] = jnp.zeros_like(xbuf_ref)
    xbuf_ref[1:H + 1, :W, :] = x_ref[0]

    n_flat = (H + 2) * Wp
    flat = xbuf_ref[...].reshape(n_flat, C)          # layout no-op (Wp % 8 == 0)

    # ---- 2) im2col slab: kh shift = aligned sublane-tile slice (kh*Wp is a multiple
    # of 8); kw shift = pltpu.roll on the sublane axis (XLU).  The zero columns at the
    # end of each row double as the left/right halo under the flat circular shift.
    for kw in range(3):
        shift = (1 - kw) % n_flat                    # +1, 0, n_flat-1
        shifted = flat if shift == 0 else pltpu.roll(flat, shift, axis=0)
        for kh in range(3):
            tap = kh * 3 + kw
            piece = shifted[kh * Wp:kh * Wp + H * Wp, :]          # aligned slice
            slab_ref[:, tap * C:(tap + 1) * C] = piece.astype(jnp.bfloat16)

    # ---- 3) the whole 3x3 conv as ONE matmul: (H*Wp, 9C) @ (9C, C), f32 accumulation.
    acc = jnp.dot(slab_ref[...], w_ref[...], preferred_element_type=jnp.float32)

    # ---- 4) drop the pad columns once, then InstanceNorm2d (affine=False, biased var,
    # two-pass) + ReLU + exact-f32 residual.  All epilogue math in f32.
    acc_v = acc.reshape(H, Wp, C)[:, :W, :].reshape(H * W, C)
    inv_n = 1.0 / float(H * W)
    mean = jnp.sum(acc_v, axis=0, keepdims=True) * inv_n
    cen = acc_v - mean
    var = jnp.sum(cen * cen, axis=0, keepdims=True) * inv_n
    y = jnp.maximum(cen * jax.lax.rsqrt(var + eps), 0.0)
    o_ref[0] = x_ref[0] + y.reshape(H, W, C)


# ---------------------------------------------------------------- wrapper

def resnet_block_forward(x_nchw, weight, *, eps=1e-5):
    """x_nchw: (B, C, H, W) f32, weight: (C, C, 3, 3) PyTorch OIHW -> (B, C, H, W)."""
    B, C, H, W = x_nchw.shape
    assert weight.shape == (C, C, 3, 3), weight.shape
    # Guard the silent lane-underfill perf cliff flagged in review (conv_dim < 128).
    assert C % 128 == 0, f"channel dim {C} must be a multiple of the 128-lane width"

    # Frame width rounded up so every padded row has >=1 trailing zero column and the
    # sublane dimension stays tile-aligned.
    Wp = ((W + 1 + 7) // 8) * 8

    x = jnp.transpose(x_nchw, (0, 2, 3, 1)).astype(jnp.float32)          # NHWC
    # Tap-major weight (kh*3+kw, cin) x cout; bf16 operands, f32 accumulation on MXU.
    w_mat = jnp.transpose(weight, (2, 3, 1, 0)).reshape(9 * C, C).astype(jnp.bfloat16)

    cost = pl.CostEstimate(
        flops=2 * B * (H * Wp) * (9 * C) * C,
        transcendentals=B * C,
        bytes_accessed=2 * x.size * 4 + w_mat.size * 2,
    )

    out = pl.pallas_call(
        functools.partial(_resnet_block_kernel, H=H, W=W, Wp=Wp, C=C, eps=eps),
        out_shape=jax.ShapeDtypeStruct((B, H, W, C), jnp.float32),
        grid_spec=pltpu.PrefetchScalarGridSpec(
            num_scalar_prefetch=0,
            grid=(B,),
            in_specs=[
                pl.BlockSpec((1, H, W, C), lambda b: (b, 0, 0, 0)),
                pl.BlockSpec((9 * C, C), lambda b: (0, 0)),
            ],
            out_specs=pl.BlockSpec((1, H, W, C), lambda b: (b, 0, 0, 0)),
            scratch_shapes=[
                pltpu.VMEM((H + 2, Wp, C), jnp.float32),       # padded frame
                pltpu.VMEM((H * Wp, 9 * C), jnp.bfloat16),     # im2col slab
            ],
        ),
        compiler_params=pltpu.CompilerParams(dimension_semantics=("parallel",)),
        cost_estimate=cost,
    )(x, w_mat)

    return jnp.transpose(out, (0, 3, 1, 2))                              # back to NCHW


# ---------------------------------------------------------------- reference (plain JAX)

def _reference_forward(x_nchw, weight, eps=1e-5):
    y = jax.lax.conv_general_dilated(
        x_nchw, weight, window_strides=(1, 1), padding=((1, 1), (1, 1)),
        dimension_numbers=("NCHW", "OIHW", "NCHW"))
    mean = jnp.mean(y, axis=(2, 3), keepdims=True)
    var = jnp.mean(jnp.square(y - mean), axis=(2, 3), keepdims=True)
    y = (y - mean) * jax.lax.rsqrt(var + eps)
    y = jnp.maximum(y, 0.0)
    return x_nchw + y


if __name__ == "__main__":
    key = jax.random.PRNGKey(0)
    wkey, xkey = jax.random.split(key)

    # ResnetBlock(conv_dim=128) on a small 16x16 feature map, batch=2.
    B, C, H, W = 2, 128, 16, 16
    weight = 0.05 * jax.random.normal(wkey, (C, C, 3, 3), dtype=jnp.float32)
    x = jax.random.normal(xkey, (B, C, H, W), dtype=jnp.float32)

    out = jax.block_until_ready(resnet_block_forward(x, weight))
    assert out.shape == (B, C, H, W), out.shape
    assert bool(jnp.all(jnp.isfinite(out)))

    ref = _reference_forward(x, weight)
    max_err = float(jnp.max(jnp.abs(out - ref)))
    assert max_err < 0.2, f"max abs error {max_err}"

    print("KERNEL_OK")
</pallas_src>

<mosaic_0001>
module attributes {stable_mosaic.version = 11 : i64} {
  func.func @_resnet_block_kernel(%arg0: i32, %arg1: memref<1x16x16x128xf32, #tpu.memory_space<vmem>>, %arg2: memref<1152x128xbf16, #tpu.memory_space<vmem>>, %arg3: memref<1x16x16x128xf32, #tpu.memory_space<vmem>>, %arg4: memref<18x24x128xf32, #tpu.memory_space<vmem>>, %arg5: memref<384x1152xbf16, #tpu.memory_space<vmem>>) attributes {dimension_semantics = [#tpu.dimension_semantics<parallel>], iteration_bounds = array<i64: 2>, scalar_prefetch = 0 : i64, scratch_operands = 2 : i64, tpu.core_type = #tpu.core_type<tc>, window_params = [{transform_indices = @transform_0, window_bounds = array<i64: 1, 16, 16, 128>}, {pipeline_mode = #tpu.pipeline_mode<synchronous>, transform_indices = @transform_1, window_bounds = array<i64: 1152, 128>}, {transform_indices = @transform_2, window_bounds = array<i64: 1, 16, 16, 128>}]} {
    %cst = arith.constant 0.000000e+00 : f32
    %0 = vector.broadcast %cst : f32 to vector<18x24x128xf32>
    %c0 = arith.constant 0 : index
    %c0_0 = arith.constant 0 : index
    %c0_1 = arith.constant 0 : index
    %1 = vector.load %arg4[%c0, %c0_0, %c0_1] : memref<18x24x128xf32, #tpu.memory_space<vmem>>, vector<18x24x128xf32>
    tpu.vector_store %arg4[%c0, %c0_0, %c0_1], %0 {strides = array<i32>} : memref<18x24x128xf32, #tpu.memory_space<vmem>>, vector<18x24x128xf32>,
    %c0_2 = arith.constant 0 : index
    %c0_3 = arith.constant 0 : index
    %c0_4 = arith.constant 0 : index
    %c0_5 = arith.constant 0 : index
    %2 = vector.load %arg1[%c0_2, %c0_3, %c0_4, %c0_5] : memref<1x16x16x128xf32, #tpu.memory_space<vmem>>, vector<1x16x16x128xf32>
    %3 = vector.shape_cast %2 : vector<1x16x16x128xf32> to vector<16x16x128xf32>
    %c1 = arith.constant 1 : index
    %c0_6 = arith.constant 0 : index
    %c0_7 = arith.constant 0 : index
    %4 = vector.load %arg4[%c1, %c0_6, %c0_7] : memref<18x24x128xf32, #tpu.memory_space<vmem>>, vector<16x16x128xf32>
    tpu.vector_store %arg4[%c1, %c0_6, %c0_7], %3 {strides = array<i32>} : memref<18x24x128xf32, #tpu.memory_space<vmem>>, vector<16x16x128xf32>,
    %c0_8 = arith.constant 0 : index
    %c0_9 = arith.constant 0 : index
    %c0_10 = arith.constant 0 : index
    %5 = vector.load %arg4[%c0_8, %c0_9, %c0_10] : memref<18x24x128xf32, #tpu.memory_space<vmem>>, vector<18x24x128xf32>
    %6 = vector.shape_cast %5 : vector<18x24x128xf32> to vector<432x128xf32>
    %c1_i32 = arith.constant 1 : i32
    %7 = tpu.dynamic_rotate %6 by %c1_i32 dim 0 : vector<432x128xf32>, i32 -> vector<432x128xf32>
    %8 = vector.extract_strided_slice %7 {offsets = [0, 0], sizes = [384, 128], strides = [1, 1]} : vector<432x128xf32> to vector<384x128xf32>
    %9 = arith.truncf %8 : vector<384x128xf32> to vector<384x128xbf16>
    %c0_11 = arith.constant 0 : index
    %c0_12 = arith.constant 0 : index
    %10 = vector.load %arg5[%c0_11, %c0_12] : memref<384x1152xbf16, #tpu.memory_space<vmem>>, vector<384x128xbf16>
    tpu.vector_store %arg5[%c0_11, %c0_12], %9 {strides = array<i32>} : memref<384x1152xbf16, #tpu.memory_space<vmem>>, vector<384x128xbf16>,
    %11 = vector.extract_strided_slice %7 {offsets = [24, 0], sizes = [384, 128], strides = [1, 1]} : vector<432x128xf32> to vector<384x128xf32>
    %12 = arith.truncf %11 : vector<384x128xf32> to vector<384x128xbf16>
    %c0_13 = arith.constant 0 : index
    %c384 = arith.constant 384 : index
    %13 = vector.load %arg5[%c0_13, %c384] : memref<384x1152xbf16, #tpu.memory_space<vmem>>, vector<384x128xbf16>
    tpu.vector_store %arg5[%c0_13, %c384], %12 {strides = array<i32>} : memref<384x1152xbf16, #tpu.memory_space<vmem>>, vector<384x128xbf16>,
    %14 = vector.extract_strided_slice %7 {offsets = [48, 0], sizes = [384, 128], strides = [1, 1]} : vector<432x128xf32> to vector<384x128xf32>
    %15 = arith.truncf %14 : vector<384x128xf32> to vector<384x128xbf16>
    %c0_14 = arith.constant 0 : index
    %c768 = arith.constant 768 : index
    %16 = vector.load %arg5[%c0_14, %c768] : memref<384x1152xbf16, #tpu.memory_space<vmem>>, vector<384x128xbf16>
    tpu.vector_store %arg5[%c0_14, %c768], %15 {strides = array<i32>} : memref<384x1152xbf16, #tpu.memory_space<vmem>>, vector<384x128xbf16>,
    %17 = vector.extract_strided_slice %6 {offsets = [0, 0], sizes = [384, 128], strides = [1, 1]} : vector<432x128xf32> to vector<384x128xf32>
    %18 = arith.truncf %17 : vector<384x128xf32> to vector<384x128xbf16>
    %c0_15 = arith.constant 0 : index
    %c128 = arith.constant 128 : index
    %19 = vector.load %arg5[%c0_15, %c128] : memref<384x1152xbf16, #tpu.memory_space<vmem>>, vector<384x128xbf16>
    tpu.vector_store %arg5[%c0_15, %c128], %18 {strides = array<i32>} : memref<384x1152xbf16, #tpu.memory_space<vmem>>, vector<384x128xbf16>,
    %20 = vector.extract_strided_slice %6 {offsets = [24, 0], sizes = [384, 128], strides = [1, 1]} : vector<432x128xf32> to vector<384x128xf32>
    %21 = arith.truncf %20 : vector<384x128xf32> to vector<384x128xbf16>
    %c0_16 = arith.constant 0 : index
    %c512 = arith.constant 512 : index
    %22 = vector.load %arg5[%c0_16, %c512] : memref<384x1152xbf16, #tpu.memory_space<vmem>>, vector<384x128xbf16>
    tpu.vector_store %arg5[%c0_16, %c512], %21 {strides = array<i32>} : memref<384x1152xbf16, #tpu.memory_space<vmem>>, vector<384x128xbf16>,
    %23 = vector.extract_strided_slice %6 {offsets = [48, 0], sizes = [384, 128], strides = [1, 1]} : vector<432x128xf32> to vector<384x128xf32>
    %24 = arith.truncf %23 : vector<384x128xf32> to vector<384x128xbf16>
    %c0_17 = arith.constant 0 : index
    %c896 = arith.constant 896 : index
    %25 = vector.load %arg5[%c0_17, %c896] : memref<384x1152xbf16, #tpu.memory_space<vmem>>, vector<384x128xbf16>
    tpu.vector_store %arg5[%c0_17, %c896], %24 {strides = array<i32>} : memref<384x1152xbf16, #tpu.memory_space<vmem>>, vector<384x128xbf16>,
    %c431_i32 = arith.constant 431 : i32
    %26 = tpu.dynamic_rotate %6 by %c431_i32 dim 0 : vector<432x128xf32>, i32 -> vector<432x128xf32>
    %27 = vector.extract_strided_slice %26 {offsets = [0, 0], sizes = [384, 128], strides = [1, 1]} : vector<432x128xf32> to vector<384x128xf32>
    %28 = arith.truncf %27 : vector<384x128xf32> to vector<384x128xbf16>
    %c0_18 = arith.constant 0 : index
    %c256 = arith.constant 256 : index
    %29 = vector.load %arg5[%c0_18, %c256] : memref<384x1152xbf16, #tpu.memory_space<vmem>>, vector<384x128xbf16>
    tpu.vector_store %arg5[%c0_18, %c256], %28 {strides = array<i32>} : memref<384x1152xbf16, #tpu.memory_space<vmem>>, vector<384x128xbf16>,
    %30 = vector.extract_strided_slice %26 {offsets = [24, 0], sizes = [384, 128], strides = [1, 1]} : vector<432x128xf32> to vector<384x128xf32>
    %31 = arith.truncf %30 : vector<384x128xf32> to vector<384x128xbf16>
    %c0_19 = arith.constant 0 : index
    %c640 = arith.constant 640 : index
    %32 = vector.load %arg5[%c0_19, %c640] : memref<384x1152xbf16, #tpu.memory_space<vmem>>, vector<384x128xbf16>
    tpu.vector_store %arg5[%c0_19, %c640], %31 {strides = array<i32>} : memref<384x1152xbf16, #tpu.memory_space<vmem>>, vector<384x128xbf16>,
    %33 = vector.extract_strided_slice %26 {offsets = [48, 0], sizes = [384, 128], strides = [1, 1]} : vector<432x128xf32> to vector<384x128xf32>
    %34 = arith.truncf %33 : vector<384x128xf32> to vector<384x128xbf16>
    %c0_20 = arith.constant 0 : index
    %c1024 = arith.constant 1024 : index
    %35 = vector.load %arg5[%c0_20, %c1024] : memref<384x1152xbf16, #tpu.memory_space<vmem>>, vector<384x128xbf16>
    tpu.vector_store %arg5[%c0_20, %c1024], %34 {strides = array<i32>} : memref<384x1152xbf16, #tpu.memory_space<vmem>>, vector<384x128xbf16>,
    %c0_21 = arith.constant 0 : index
    %c0_22 = arith.constant 0 : index
    %36 = vector.load %arg5[%c0_21, %c0_22] : memref<384x1152xbf16, #tpu.memory_space<vmem>>, vector<384x1152xbf16>
    %c0_23 = arith.constant 0 : index
    %c0_24 = arith.constant 0 : index
    %37 = vector.load %arg2[%c0_23, %c0_24] : memref<1152x128xbf16, #tpu.memory_space<vmem>>, vector<1152x128xbf16>
    %cst_25 = arith.constant dense<0.000000e+00> : vector<384x128xf32>
    %38 = tpu.matmul %36, %37, %cst_25 {dimension_numbers = #tpu.dot_dimension_numbers<[1], [0], [0], [1], [0, 0, 1, 1], [], []>} : vector<384x1152xbf16>, vector<1152x128xbf16>, vector<384x128xf32> -> vector<384x128xf32>
    %39 = vector.shape_cast %38 : vector<384x128xf32> to vector<16x24x128xf32>
    %40 = vector.extract_strided_slice %39 {offsets = [0, 0, 0], sizes = [16, 16, 128], strides = [1, 1, 1]} : vector<16x24x128xf32> to vector<16x16x128xf32>
    %41 = vector.shape_cast %40 : vector<16x16x128xf32> to vector<256x128xf32>
    %cst_26 = arith.constant dense<0.000000e+00> : vector<128xf32>
    %42 = vector.multi_reduction <add>, %41, %cst_26 [0] : vector<256x128xf32> to vector<128xf32>
    %43 = vector.shape_cast %42 : vector<128xf32> to vector<1x128xf32>
    %cst_27 = arith.constant 3.906250e-03 : f32
    %44 = vector.broadcast %cst_27 : f32 to vector<1x128xf32>
    %45 = arith.mulf %43, %44 : vector<1x128xf32>
    %46 = vector.broadcast %45 : vector<1x128xf32> to vector<256x128xf32>
    %47 = arith.subf %41, %46 : vector<256x128xf32>
    %48 = arith.mulf %47, %47 : vector<256x128xf32>
    %cst_28 = arith.constant dense<0.000000e+00> : vector<128xf32>
    %49 = vector.multi_reduction <add>, %48, %cst_28 [0] : vector<256x128xf32> to vector<128xf32>
    %50 = vector.shape_cast %49 : vector<128xf32> to vector<1x128xf32>
    %cst_29 = arith.constant 3.906250e-03 : f32
    %51 = vector.broadcast %cst_29 : f32 to vector<1x128xf32>
    %52 = arith.mulf %50, %51 : vector<1x128xf32>
    %cst_30 = arith.constant 9.99999974E-6 : f32
    %53 = vector.broadcast %cst_30 : f32 to vector<1x128xf32>
    %54 = arith.addf %52, %53 : vector<1x128xf32>
    %55 = math.rsqrt %54 : vector<1x128xf32>
    %56 = vector.broadcast %55 : vector<1x128xf32> to vector<256x128xf32>
    %57 = arith.mulf %47, %56 : vector<256x128xf32>
    %cst_31 = arith.constant 0.000000e+00 : f32
    %58 = vector.broadcast %cst_31 : f32 to vector<256x128xf32>
    %59 = arith.maximumf %57, %58 : vector<256x128xf32>
    %c0_32 = arith.constant 0 : index
    %c0_33 = arith.constant 0 : index
    %c0_34 = arith.constant 0 : index
    %c0_35 = arith.constant 0 : index
    %60 = vector.load %arg1[%c0_32, %c0_33, %c0_34, %c0_35] : memref<1x16x16x128xf32, #tpu.memory_space<vmem>>, vector<1x16x16x128xf32>
    %61 = vector.shape_cast %60 : vector<1x16x16x128xf32> to vector<16x16x128xf32>
    %62 = vector.shape_cast %59 : vector<256x128xf32> to vector<16x16x128xf32>
    %63 = arith.addf %61, %62 : vector<16x16x128xf32>
    %c0_36 = arith.constant 0 : index
    %c0_37 = arith.constant 0 : index
    %c0_38 = arith.constant 0 : index
    %c0_39 = arith.constant 0 : index
    %64 = vector.load %arg3[%c0_36, %c0_37, %c0_38, %c0_39] : memref<1x16x16x128xf32, #tpu.memory_space<vmem>>, vector<1x16x16x128xf32>
    %65 = vector.shape_cast %64 : vector<1x16x16x128xf32> to vector<16x16x128xf32>
    %66 = vector.shape_cast %63 : vector<16x16x128xf32> to vector<1x16x16x128xf32>
    tpu.vector_store %arg3[%c0_36, %c0_37, %c0_38, %c0_39], %66 {strides = array<i32>} : memref<1x16x16x128xf32, #tpu.memory_space<vmem>>, vector<1x16x16x128xf32>,
    return
  }
  func.func @transform_0(%arg0: i32) -> (i32, i32, i32, i32) {
    %c0_i32 = arith.constant 0 : i32
    %c0_i32_0 = arith.constant 0 : i32
    %c0_i32_1 = arith.constant 0 : i32
    %c0_i32_2 = arith.constant 0 : i32
    return %arg0, %c0_i32, %c0_i32_0, %c0_i32_1 : i32, i32, i32, i32
  }
  func.func @transform_1(%arg0: i32) -> (i32, i32) {
    %c0_i32 = arith.constant 0 : i32
    %c0_i32_0 = arith.constant 0 : i32
    %c0_i32_1 = arith.constant 0 : i32
    return %c0_i32, %c0_i32_0 : i32, i32
  }
  func.func @transform_2(%arg0: i32) -> (i32, i32, i32, i32) {
    %c0_i32 = arith.constant 0 : i32
    %c0_i32_0 = arith.constant 0 : i32
    %c0_i32_1 = arith.constant 0 : i32
    %c0_i32_2 = arith.constant 0 : i32
    return %arg0, %c0_i32, %c0_i32_0, %c0_i32_1 : i32, i32, i32, i32
  }
}

</mosaic_0001>

<llo_original>
// kernel: tpu_custom_call.1
$region0: #{tpu_custom_call.1}
  #allocation0 [shape = 'u32[]', space=smem, size = 0x4, offset = 0x4, fixed_abs, tag = 'smem constant byte address 0x4 - core index']
  #allocation1 [shape = 'u32[144,128]{1,0:T(1,128)}', space=vmem, size = 0x12000, scoped, tag = 'internal scratch']
  #allocation2 [shape = 'f32[18,24,128]{2,1,0:T(8,128)}', space=vmem, size = 0x36000, scoped, tag = 'scratch operand']
  #allocation3 [shape = 'bf16[384,1152]{1,0:T(16,128)(2,1)}', space=vmem, size = 0xd8000, scoped, tag = 'scratch operand']
  %s0 = inlined_call_operand.hbm [shape: f32[2,16,16,128], index: 0, kind: input, shape index: {}]
  %s1 = inlined_call_operand.hbm [shape: bf16[1152,128], index: 1, kind: input, shape index: {}]
  %s2 = inlined_call_operand.hbm [shape: f32[2,16,16,128], index: 2, kind: output, shape index: {}]
  %s3 = sld [smem:[#allocation0]]
  $region49: #{tpu_custom_call.1} parent=0
    _
  %s5 = ssub.s32 1, %s3
  %s6 = scalar_select 0, %s5, %s3
  $region1: #{tpu_custom_call.1} parent=0
    #allocation4 [shape = 'u8[262144]{0}', space=vmem, size = 0x40000, scoped, tag = 'input window, operand 0']
    #allocation5 [shape = 's32[2]{0}', space=sflag, size = 0x8, scoped, tag = 'scoped memory for tpu_custom_call.1']
    #allocation6 [shape = 's32[2]{0}', space=sflag, size = 0x8, scoped, tag = 'scoped memory for tpu_custom_call.1']
    #allocation7 [shape = 'u8[294912]{0}', space=vmem, size = 0x48000, scoped, tag = 'input window, operand 1, single buffered']
    #allocation8 [shape = 's32[1]{0}', space=sflag, size = 0x4, scoped, tag = 'scoped memory for tpu_custom_call.1']
    #allocation9 [shape = 'u8[262144]{0}', space=vmem, size = 0x40000, scoped, tag = 'output window, operand 0']
    %7 = vsyncpa [#allocation5], 0
    %s8 = scalar_lea.sflag [#allocation5], 1
    %9 = vsyncpa %s8, 0
    %10 = vsyncpa [#allocation8], 0
    %11 = vsyncpa [#allocation6], 0
    %s12 = scalar_lea.sflag [#allocation6], 1
    %13 = vsyncpa %s12, 0
    loop: start=0, step=1, limit=4
    $region2: #{tpu_custom_call.1} parent=1 // loop_pre_header
      _
    $region3: #{tpu_custom_call.1} parent=1 // loop_header
      %s15 = sphi 0, %s19
      %p16 = scmp.ge.s32.totalorder %s15, 4
      %s25 = sphi 0, %s27
      %s28 = sphi 0, %s25
      %s29 = sphi 0, %s28
      %s45 = sphi 0, %s29
      %s49 = sphi 0, %s49
      %s51 = sphi 0, %s49
      %s52 = sphi 0, %s51
      %s66 = sphi 0, %s52
      %s72 = sphi 0, %s74
      %s75 = sphi 0, %s72
      %s76 = sphi 0, %s75
      %s92 = sphi 0, %s76
    $region4: #{tpu_custom_call.1} parent=1 // loop_header_branch
      %18 = sbr.rel (%p16) target = $region8
    $region5: #{tpu_custom_call.1} parent=1 // loop_body
      %s20 = ssub.s32 %s15, 1
      %s21 = ssub.s32 %s15, 2
      %s22 = sadd.s32 %s15, 1
      %s23 = ssub.s32 %s15, %s22
      %p24 = scmp.eq.s32.totalorder %s23, 0
      %s26 = sadd.s32 %s25, 1
      %s27 = scalar_select %p24, %s25, %s26
      %p30 = pneg %p24
      %p31 = scmp.eq.s32.totalorder %s15, 1
      %p32 = por %p30, %p31
      %p33 = scmp.ne.s32.totalorder %s25, %s28
      %p34 = scmp.eq.s32.totalorder %s15, 0
      %p35 = por %p33, %p34
      %p36 = scmp.ne.s32.totalorder %s25, %s28
      %p37 = scmp.eq.s32.totalorder %s20, 1
      %p38 = por %p36, %p37
      %p39 = scmp.ne.s32.totalorder %s28, %s29
      %p40 = scmp.eq.s32.totalorder %s20, 0
      %p41 = por %p39, %p40
      %p42 = scmp.ne.s32.totalorder %s28, %s29
      %p43 = scmp.eq.s32.totalorder %s21, 1
      %p44 = por %p42, %p43
      %p46 = scmp.ne.s32.totalorder %s29, %s45
      %p47 = scmp.eq.s32.totalorder %s21, 0
      %p48 = por %p46, %p47
      %s50 = sadd.s32 %s49, 1
      %p53 = scmp.eq.s32.totalorder %s15, 1
      %p54 = scmp.ne.s32.totalorder %s49, %s51
      %p55 = scmp.eq.s32.totalorder %s15, 0
      %p56 = por %p54, %p55
      %p57 = scmp.ne.s32.totalorder %s49, %s51
      %p58 = scmp.eq.s32.totalorder %s20, 1
      %p59 = por %p57, %p58
      %p60 = scmp.ne.s32.totalorder %s51, %s52
      %p61 = scmp.eq.s32.totalorder %s20, 0
      %p62 = por %p60, %p61
      %p63 = scmp.ne.s32.totalorder %s51, %s52
      %p64 = scmp.eq.s32.totalorder %s21, 1
      %p65 = por %p63, %p64
      %p67 = scmp.ne.s32.totalorder %s52, %s66
      %p68 = scmp.eq.s32.totalorder %s21, 0
      %p69 = por %p67, %p68
      %s70 = ssub.s32 %s15, %s22
      %p71 = scmp.eq.s32.totalorder %s70, 0
      %s73 = sadd.s32 %s72, 1
      %s74 = scalar_select %p71, %s72, %s73
      %p77 = pneg %p71
      %p78 = scmp.eq.s32.totalorder %s15, 1
      %p79 = por %p77, %p78
      %p80 = scmp.ne.s32.totalorder %s72, %s75
      %p81 = scmp.eq.s32.totalorder %s15, 0
      %p82 = por %p80, %p81
      %p83 = scmp.ne.s32.totalorder %s72, %s75
      %p84 = scmp.eq.s32.totalorder %s20, 1
      %p85 = por %p83, %p84
      %p86 = scmp.ne.s32.totalorder %s75, %s76
      %p87 = scmp.eq.s32.totalorder %s20, 0
      %p88 = por %p86, %p87
      %p89 = scmp.ne.s32.totalorder %s75, %s76
      %p90 = scmp.eq.s32.totalorder %s21, 1
      %p91 = por %p89, %p90
      %p93 = scmp.ne.s32.totalorder %s76, %s92
      %p94 = scmp.eq.s32.totalorder %s21, 0
      %p95 = por %p93, %p94
      %p96 = scmp.le.s32.totalorder 1, %s15
      %p97 = scmp.lt.s32.totalorder %s15, 3
      %p98 = pnand %p96, %p97
      %p99 = pneg %p98
      // Predicated region
      $region9: #{tpu_custom_call.1} parent=5 // pred_check
        _
      $region10: #{tpu_custom_call.1} parent=5 // pred_check_branch
        %101 = sbr.rel (%p98) target = $region12
      $region11: #{tpu_custom_call.1} parent=5 // pred_region
        %s102 = ssub.s32 %s15, 1
        // Predicated region
        $region13: #{tpu_custom_call.1} parent=11 // pred_check
          %p103 = pneg %p62
        $region14: #{tpu_custom_call.1} parent=11 // pred_check_branch
          %105 = sbr.rel (%p103) target = $region16
        $region15: #{tpu_custom_call.1} parent=11 // pred_region
          %s107 = ssub.s32 9216, 9216
          %108 = vsyncadd [#allocation8], %s107
          %s109 = sshll.u32 [#allocation7], 4
          %s110 = int_to_ptr.vmem [resolvable:$true] %s109
          %115 = dma.hbm_to_vmem [thread:$0]  %s1, 9216, %s110, [#allocation8], 64, 64, 4
        $region16: #{tpu_custom_call.1} parent=11 // pred_fallthru
          _
      $region12: #{tpu_custom_call.1} parent=5 // pred_fallthru
        _
      %p116 = scmp.lt.s32.totalorder %s15, 2
      // Predicated region
      $region17: #{tpu_custom_call.1} parent=5 // pred_check
        %p117 = pneg %p116
      $region18: #{tpu_custom_call.1} parent=5 // pred_check_branch
        %119 = sbr.rel (%p117) target = $region20
      $region19: #{tpu_custom_call.1} parent=5 // pred_region
        // Predicated region
        $region21: #{tpu_custom_call.1} parent=19 // pred_check
          %p120 = pneg %p35
        $region22: #{tpu_custom_call.1} parent=19 // pred_check_branch
          %122 = sbr.rel (%p120) target = $region24
        $region23: #{tpu_custom_call.1} parent=19 // pred_region
          %s123 = sand.u32 %s25, 1
          %s124 = scalar_lea.sflag [#allocation5], %s123
          %s125 = sand.u32 %s25, 1
          %s126 = smul.addr %s125, 256
          %s127 = scalar_lea.vmem [#allocation4], %s126
          %s129 = ssub.s32 4096, 4096
          %130 = vsyncadd %s124, %s129
          %s131 = smul.addr %s15, 32
          %s132 = smul.addr %s131, 128
          %s133 = scalar_lea.hbm %s0, %s132
          %s134 = sshll.u32 %s127, 4
          %s135 = int_to_ptr.vmem [resolvable:$true] %s134
          %140 = dma.hbm_to_vmem [thread:$0]  %s133, 4096, %s135, %s124, 128, 128, 8
        $region24: #{tpu_custom_call.1} parent=19 // pred_fallthru
          _
      $region20: #{tpu_custom_call.1} parent=5 // pred_fallthru
        _
      %p141 = scmp.le.s32.totalorder 1, %s15
      %p142 = scmp.lt.s32.totalorder %s15, 3
      %p143 = pnand %p141, %p142
      %p144 = pneg %p143
      // Predicated region
      $region25: #{tpu_custom_call.1} parent=5 // pred_check
        _
      $region26: #{tpu_custom_call.1} parent=5 // pred_check_branch
        %146 = sbr.rel (%p143) target = $region28
      $region27: #{tpu_custom_call.1} parent=5 // pred_region
        %s147 = ssub.s32 %s15, 1
        %s148 = sand.u32 %s28, 1
        %s149 = scalar_lea.sflag [#allocation5], %s148
        %s150 = sand.u32 %s28, 1
        %s151 = smul.addr %s150, 256
        %s152 = scalar_lea.vmem [#allocation4], %s151
        // Predicated region
        $region29: #{tpu_custom_call.1} parent=27 // pred_check
          %p153 = pneg %p41
        $region30: #{tpu_custom_call.1} parent=27 // pred_check_branch
          %155 = sbr.rel (%p153) target = $region32
        $region31: #{tpu_custom_call.1} parent=27 // pred_region
          %156 = dma.done %s149, 4096
        $region32: #{tpu_custom_call.1} parent=27 // pred_fallthru
          _
        // Predicated region
        $region33: #{tpu_custom_call.1} parent=27 // pred_check
          %p157 = pneg %p62
        $region34: #{tpu_custom_call.1} parent=27 // pred_check_branch
          %159 = sbr.rel (%p157) target = $region36
        $region35: #{tpu_custom_call.1} parent=27 // pred_region
          %160 = dma.done [#allocation8], 9216
        $region36: #{tpu_custom_call.1} parent=27 // pred_fallthru
          _
        %s161 = sand.u32 %s28, 1
        %s162 = scalar_lea.sflag [#allocation5], %s161
        %s163 = sand.u32 %s28, 1
        %s164 = smul.addr %s163, 256
        %s165 = scalar_lea.vmem [#allocation4], %s164
        %p166 = pneg %p41
        %p167 = pneg %p38
        %p168 = pneg %p62
        %p169 = pneg %p59
        %p170 = pneg %p88
        %p171 = pneg %p85
        %s172 = sand.u32 %s75, 1
        %s173 = scalar_lea.sflag [#allocation6], %s172
        %s174 = sand.u32 %s75, 1
        %s175 = smul.addr %s174, 256
        %s176 = scalar_lea.vmem [#allocation9], %s175
        %178 = vst [vmem:[#allocation2] sm:$0xff] 0.0
        %179 = vst [vmem:[#allocation2 + $0x8] sm:$0xff] 0.0
        %180 = vst [vmem:[#allocation2 + $0x10] sm:$0xff] 0.0
        %181 = vst [vmem:[#allocation2 + $0x18] sm:$0xff] 0.0
        %182 = vst [vmem:[#allocation2 + $0x20] sm:$0xff] 0.0
        %183 = vst [vmem:[#allocation2 + $0x28] sm:$0xff] 0.0
        %184 = vst [vmem:[#allocation2 + $0x30] sm:$0xff] 0.0
        %185 = vst [vmem:[#allocation2 + $0x38] sm:$0xff] 0.0
        %186 = vst [vmem:[#allocation2 + $0x40] sm:$0xff] 0.0
        %187 = vst [vmem:[#allocation2 + $0x48] sm:$0xff] 0.0
        %188 = vst [vmem:[#allocation2 + $0x50] sm:$0xff] 0.0
        %189 = vst [vmem:[#allocation2 + $0x58] sm:$0xff] 0.0
        %190 = vst [vmem:[#allocation2 + $0x60] sm:$0xff] 0.0
        %191 = vst [vmem:[#allocation2 + $0x68] sm:$0xff] 0.0
        %192 = vst [vmem:[#allocation2 + $0x70] sm:$0xff] 0.0
        %193 = vst [vmem:[#allocation2 + $0x78] sm:$0xff] 0.0
        %194 = vst [vmem:[#allocation2 + $0x80] sm:$0xff] 0.0
        %195 = vst [vmem:[#allocation2 + $0x88] sm:$0xff] 0.0
        %196 = vst [vmem:[#allocation2 + $0x90] sm:$0xff] 0.0
        %197 = vst [vmem:[#allocation2 + $0x98] sm:$0xff] 0.0
        %198 = vst [vmem:[#allocation2 + $0xa0] sm:$0xff] 0.0
        %199 = vst [vmem:[#allocation2 + $0xa8] sm:$0xff] 0.0
        %200 = vst [vmem:[#allocation2 + $0xb0] sm:$0xff] 0.0
        %201 = vst [vmem:[#allocation2 + $0xb8] sm:$0xff] 0.0
        %202 = vst [vmem:[#allocation2 + $0xc0] sm:$0xff] 0.0
        %203 = vst [vmem:[#allocation2 + $0xc8] sm:$0xff] 0.0
        %204 = vst [vmem:[#allocation2 + $0xd0] sm:$0xff] 0.0
        %205 = vst [vmem:[#allocation2 + $0xd8] sm:$0xff] 0.0
        %206 = vst [vmem:[#allocation2 + $0xe0] sm:$0xff] 0.0
        %207 = vst [vmem:[#allocation2 + $0xe8] sm:$0xff] 0.0
        %208 = vst [vmem:[#allocation2 + $0xf0] sm:$0xff] 0.0
        %209 = vst [vmem:[#allocation2 + $0xf8] sm:$0xff] 0.0
        %210 = vst [vmem:[#allocation2 + $0x100] sm:$0xff] 0.0
        %211 = vst [vmem:[#allocation2 + $0x108] sm:$0xff] 0.0
        %212 = vst [vmem:[#allocation2 + $0x110] sm:$0xff] 0.0
        %213 = vst [vmem:[#allocation2 + $0x118] sm:$0xff] 0.0
        %214 = vst [vmem:[#allocation2 + $0x120] sm:$0xff] 0.0
        %215 = vst [vmem:[#allocation2 + $0x128] sm:$0xff] 0.0
        %216 = vst [vmem:[#allocation2 + $0x130] sm:$0xff] 0.0
        %217 = vst [vmem:[#allocation2 + $0x138] sm:$0xff] 0.0
        %218 = vst [vmem:[#allocation2 + $0x140] sm:$0xff] 0.0
        %219 = vst [vmem:[#allocation2 + $0x148] sm:$0xff] 0.0
        %220 = vst [vmem:[#allocation2 + $0x150] sm:$0xff] 0.0
        %221 = vst [vmem:[#allocation2 + $0x158] sm:$0xff] 0.0
        %222 = vst [vmem:[#allocation2 + $0x160] sm:$0xff] 0.0
        %223 = vst [vmem:[#allocation2 + $0x168] sm:$0xff] 0.0
        %224 = vst [vmem:[#allocation2 + $0x170] sm:$0xff] 0.0
        %225 = vst [vmem:[#allocation2 + $0x178] sm:$0xff] 0.0
        %226 = vst [vmem:[#allocation2 + $0x180] sm:$0xff] 0.0
        %227 = vst [vmem:[#allocation2 + $0x188] sm:$0xff] 0.0
        %228 = vst [vmem:[#allocation2 + $0x190] sm:$0xff] 0.0
        %229 = vst [vmem:[#allocation2 + $0x198] sm:$0xff] 0.0
        %230 = vst [vmem:[#allocation2 + $0x1a0] sm:$0xff] 0.0
        %231 = vst [vmem:[#allocation2 + $0x1a8] sm:$0xff] 0.0
        %v232 = vld [vmem:[%s152] sm:$0xff]
        %v233 = vld [vmem:[%s152 + $0x8] sm:$0xff]
        %v234 = vld [vmem:[%s152 + $0x10] sm:$0xff]
        %v235 = vld [vmem:[%s152 + $0x18] sm:$0xff]
        %v236 = vld [vmem:[%s152 + $0x20] sm:$0xff]
        %v237 = vld [vmem:[%s152 + $0x28] sm:$0xff]
        %v238 = vld [vmem:[%s152 + $0x30] sm:$0xff]
        %v239 = vld [vmem:[%s152 + $0x38] sm:$0xff]
        %v240 = vld [vmem:[%s152 + $0x40] sm:$0xff]
        %v241 = vld [vmem:[%s152 + $0x48] sm:$0xff]
        %v242 = vld [vmem:[%s152 + $0x50] sm:$0xff]
        %v243 = vld [vmem:[%s152 + $0x58] sm:$0xff]
        %v244 = vld [vmem:[%s152 + $0x60] sm:$0xff]
        %v245 = vld [vmem:[%s152 + $0x68] sm:$0xff]
        %v246 = vld [vmem:[%s152 + $0x70] sm:$0xff]
        %v247 = vld [vmem:[%s152 + $0x78] sm:$0xff]
        %v248 = vld [vmem:[%s152 + $0x80] sm:$0xff]
        %v249 = vld [vmem:[%s152 + $0x88] sm:$0xff]
        %v250 = vld [vmem:[%s152 + $0x90] sm:$0xff]
        %v251 = vld [vmem:[%s152 + $0x98] sm:$0xff]
        %v252 = vld [vmem:[%s152 + $0xa0] sm:$0xff]
        %v253 = vld [vmem:[%s152 + $0xa8] sm:$0xff]
        %v254 = vld [vmem:[%s152 + $0xb0] sm:$0xff]
        %v255 = vld [vmem:[%s152 + $0xb8] sm:$0xff]
        %v256 = vld [vmem:[%s152 + $0xc0] sm:$0xff]
        %v257 = vld [vmem:[%s152 + $0xc8] sm:$0xff]
        %v258 = vld [vmem:[%s152 + $0xd0] sm:$0xff]
        %v259 = vld [vmem:[%s152 + $0xd8] sm:$0xff]
        %v260 = vld [vmem:[%s152 + $0xe0] sm:$0xff]
        %v261 = vld [vmem:[%s152 + $0xe8] sm:$0xff]
        %v262 = vld [vmem:[%s152 + $0xf0] sm:$0xff]
        %v263 = vld [vmem:[%s152 + $0xf8] sm:$0xff]
        %s264 = scalar_lea.vmem [#allocation2], 24
        %265 = vst [vmem:[%s264] sm:$0xff] %v232
        %266 = vst [vmem:[%s264 + $0x8] sm:$0xff] %v233
        %267 = vst [vmem:[%s264 + $0x18] sm:$0xff] %v234
        %268 = vst [vmem:[%s264 + $0x20] sm:$0xff] %v235
        %269 = vst [vmem:[%s264 + $0x30] sm:$0xff] %v236
        %270 = vst [vmem:[%s264 + $0x38] sm:$0xff] %v237
        %271 = vst [vmem:[%s264 + $0x48] sm:$0xff] %v238
        %272 = vst [vmem:[%s264 + $0x50] sm:$0xff] %v239
        %273 = vst [vmem:[%s264 + $0x60] sm:$0xff] %v240
        %274 = vst [vmem:[%s264 + $0x68] sm:$0xff] %v241
        %275 = vst [vmem:[%s264 + $0x78] sm:$0xff] %v242
        %276 = vst [vmem:[%s264 + $0x80] sm:$0xff] %v243
        %277 = vst [vmem:[%s264 + $0x90] sm:$0xff] %v244
        %278 = vst [vmem:[%s264 + $0x98] sm:$0xff] %v245
        %279 = vst [vmem:[%s264 + $0xa8] sm:$0xff] %v246
        %280 = vst [vmem:[%s264 + $0xb0] sm:$0xff] %v247
        %281 = vst [vmem:[%s264 + $0xc0] sm:$0xff] %v248
        %282 = vst [vmem:[%s264 + $0xc8] sm:$0xff] %v249
        %283 = vst [vmem:[%s264 + $0xd8] sm:$0xff] %v250
        %284 = vst [vmem:[%s264 + $0xe0] sm:$0xff] %v251
        %285 = vst [vmem:[%s264 + $0xf0] sm:$0xff] %v252
        %286 = vst [vmem:[%s264 + $0xf8] sm:$0xff] %v253
        %287 = vst [vmem:[%s264 + $0x108] sm:$0xff] %v254
        %288 = vst [vmem:[%s264 + $0x110] sm:$0xff] %v255
        %289 = vst [vmem:[%s264 + $0x120] sm:$0xff] %v256
        %290 = vst [vmem:[%s264 + $0x128] sm:$0xff] %v257
        %291 = vst [vmem:[%s264 + $0x138] sm:$0xff] %v258
        %292 = vst [vmem:[%s264 + $0x140] sm:$0xff] %v259
        %293 = vst [vmem:[%s264 + $0x150] sm:$0xff] %v260
        %294 = vst [vmem:[%s264 + $0x158] sm:$0xff] %v261
        %295 = vst [vmem:[%s264 + $0x168] sm:$0xff] %v262
        %296 = vst [vmem:[%s264 + $0x170] sm:$0xff] %v263
        %v297 = vld [vmem:[#allocation2] sm:$0xff]
        %v298 = vld [vmem:[#allocation2 + $0x8] sm:$0xff]
        %v299 = vld [vmem:[#allocation2 + $0x10] sm:$0xff]
        %v300 = vld [vmem:[#allocation2 + $0x18] sm:$0xff]
        %v301 = vld [vmem:[#allocation2 + $0x20] sm:$0xff]
        %v302 = vld [vmem:[#allocation2 + $0x28] sm:$0xff]
        %v303 = vld [vmem:[#allocation2 + $0x30] sm:$0xff]
        %v304 = vld [vmem:[#allocation2 + $0x38] sm:$0xff]
        %v305 = vld [vmem:[#allocation2 + $0x40] sm:$0xff]
        %v306 = vld [vmem:[#allocation2 + $0x48] sm:$0xff]
        %v307 = vld [vmem:[#allocation2 + $0x50] sm:$0xff]
        %v308 = vld [vmem:[#allocation2 + $0x58] sm:$0xff]
        %v309 = vld [vmem:[#allocation2 + $0x60] sm:$0xff]
        %v310 = vld [vmem:[#allocation2 + $0x68] sm:$0xff]
        %v311 = vld [vmem:[#allocation2 + $0x70] sm:$0xff]
        %v312 = vld [vmem:[#allocation2 + $0x78] sm:$0xff]
        %v313 = vld [vmem:[#allocation2 + $0x80] sm:$0xff]
        %v314 = vld [vmem:[#allocation2 + $0x88] sm:$0xff]
        %v315 = vld [vmem:[#allocation2 + $0x90] sm:$0xff]
        %v316 = vld [vmem:[#allocation2 + $0x98] sm:$0xff]
        %v317 = vld [vmem:[#allocation2 + $0xa0] sm:$0xff]
        %v318 = vld [vmem:[#allocation2 + $0xa8] sm:$0xff]
        %v319 = vld [vmem:[#allocation2 + $0xb0] sm:$0xff]
        %v320 = vld [vmem:[#allocation2 + $0xb8] sm:$0xff]
        %v321 = vld [vmem:[#allocation2 + $0xc0] sm:$0xff]
        %v322 = vld [vmem:[#allocation2 + $0xc8] sm:$0xff]
        %v323 = vld [vmem:[#allocation2 + $0xd0] sm:$0xff]
        %v324 = vld [vmem:[#allocation2 + $0xd8] sm:$0xff]
        %v325 = vld [vmem:[#allocation2 + $0xe0] sm:$0xff]
        %v326 = vld [vmem:[#allocation2 + $0xe8] sm:$0xff]
        %v327 = vld [vmem:[#allocation2 + $0xf0] sm:$0xff]
        %v328 = vld [vmem:[#allocation2 + $0xf8] sm:$0xff]
        %v329 = vld [vmem:[#allocation2 + $0x100] sm:$0xff]
        %v330 = vld [vmem:[#allocation2 + $0x108] sm:$0xff]
        %v331 = vld [vmem:[#allocation2 + $0x110] sm:$0xff]
        %v332 = vld [vmem:[#allocation2 + $0x118] sm:$0xff]
        %v333 = vld [vmem:[#allocation2 + $0x120] sm:$0xff]
        %v334 = vld [vmem:[#allocation2 + $0x128] sm:$0xff]
        %v335 = vld [vmem:[#allocation2 + $0x130] sm:$0xff]
        %v336 = vld [vmem:[#allocation2 + $0x138] sm:$0xff]
        %v337 = vld [vmem:[#allocation2 + $0x140] sm:$0xff]
        %v338 = vld [vmem:[#allocation2 + $0x148] sm:$0xff]
        %v339 = vld [vmem:[#allocation2 + $0x150] sm:$0xff]
        %v340 = vld [vmem:[#allocation2 + $0x158] sm:$0xff]
        %v341 = vld [vmem:[#allocation2 + $0x160] sm:$0xff]
        %v342 = vld [vmem:[#allocation2 + $0x168] sm:$0xff]
        %v343 = vld [vmem:[#allocation2 + $0x170] sm:$0xff]
        %v344 = vld [vmem:[#allocation2 + $0x178] sm:$0xff]
        %v345 = vld [vmem:[#allocation2 + $0x180] sm:$0xff]
        %v346 = vld [vmem:[#allocation2 + $0x188] sm:$0xff]
        %v347 = vld [vmem:[#allocation2 + $0x190] sm:$0xff]
        %v348 = vld [vmem:[#allocation2 + $0x198] sm:$0xff]
        %v349 = vld [vmem:[#allocation2 + $0x1a0] sm:$0xff]
        %v350 = vld [vmem:[#allocation2 + $0x1a8] sm:$0xff]
        %v351 = vrot.slane %v297, 7
        %v352 = vrot.slane %v298, 7
        %v353 = vrot.slane %v299, 7
        %v354 = vrot.slane %v300, 7
        %v355 = vrot.slane %v301, 7
        %v356 = vrot.slane %v302, 7
        %v357 = vrot.slane %v303, 7
        %v358 = vrot.slane %v304, 7
        %v359 = vrot.slane %v305, 7
        %v360 = vrot.slane %v306, 7
        %v361 = vrot.slane %v307, 7
        %v362 = vrot.slane %v308, 7
        %v363 = vrot.slane %v309, 7
        %v364 = vrot.slane %v310, 7
        %v365 = vrot.slane %v311, 7
        %v366 = vrot.slane %v312, 7
        %v367 = vrot.slane %v313, 7
        %v368 = vrot.slane %v314, 7
        %v369 = vrot.slane %v315, 7
        %v370 = vrot.slane %v316, 7
        %v371 = vrot.slane %v317, 7
        %v372 = vrot.slane %v318, 7
        %v373 = vrot.slane %v319, 7
        %v374 = vrot.slane %v320, 7
        %v375 = vrot.slane %v321, 7
        %v376 = vrot.slane %v322, 7
        %v377 = vrot.slane %v323, 7
        %v378 = vrot.slane %v324, 7
        %v379 = vrot.slane %v325, 7
        %v380 = vrot.slane %v326, 7
        %v381 = vrot.slane %v327, 7
        %v382 = vrot.slane %v328, 7
        %v383 = vrot.slane %v329, 7
        %v384 = vrot.slane %v330, 7
        %v385 = vrot.slane %v331, 7
        %v386 = vrot.slane %v332, 7
        %v387 = vrot.slane %v333, 7
        %v388 = vrot.slane %v334, 7
        %v389 = vrot.slane %v335, 7
        %v390 = vrot.slane %v336, 7
        %v391 = vrot.slane %v337, 7
        %v392 = vrot.slane %v338, 7
        %v393 = vrot.slane %v339, 7
        %v394 = vrot.slane %v340, 7
        %v395 = vrot.slane %v341, 7
        %v396 = vrot.slane %v342, 7
        %v397 = vrot.slane %v343, 7
        %v398 = vrot.slane %v344, 7
        %v399 = vrot.slane %v345, 7
        %v400 = vrot.slane %v346, 7
        %v401 = vrot.slane %v347, 7
        %v402 = vrot.slane %v348, 7
        %v403 = vrot.slane %v349, 7
        %v404 = vrot.slane %v350, 7
        %v405 = vlaneseq
        %v406 = vshrl.u32 %v405, 7
        %vm407 = vcmp.lt.s32.totalorder %v406, 1
        %v408 = vsel %vm407, %v403, %v404
        %v409 = vsel %vm407, %v402, %v403
        %v410 = vsel %vm407, %v401, %v402
        %v411 = vsel %vm407, %v400, %v401
        %v412 = vsel %vm407, %v399, %v400
        %v413 = vsel %vm407, %v398, %v399
        %v414 = vsel %vm407, %v397, %v398
        %v415 = vsel %vm407, %v396, %v397
        %v416 = vsel %vm407, %v395, %v396
        %v417 = vsel %vm407, %v394, %v395
        %v418 = vsel %vm407, %v393, %v394
        %v419 = vsel %vm407, %v392, %v393
        %v420 = vsel %vm407, %v391, %v392
        %v421 = vsel %vm407, %v390, %v391
        %v422 = vsel %vm407, %v389, %v390
        %v423 = vsel %vm407, %v388, %v389
        %v424 = vsel %vm407, %v387, %v388
        %v425 = vsel %vm407, %v386, %v387
        %v426 = vsel %vm407, %v385, %v386
        %v427 = vsel %vm407, %v384, %v385
        %v428 = vsel %vm407, %v383, %v384
        %v429 = vsel %vm407, %v382, %v383
        %v430 = vsel %vm407, %v381, %v382
        %v431 = vsel %vm407, %v380, %v381
        %v432 = vsel %vm407, %v379, %v380
        %v433 = vsel %vm407, %v378, %v379
        %v434 = vsel %vm407, %v377, %v378
        %v435 = vsel %vm407, %v376, %v377
        %v436 = vsel %vm407, %v375, %v376
        %v437 = vsel %vm407, %v374, %v375
        %v438 = vsel %vm407, %v373, %v374
        %v439 = vsel %vm407, %v372, %v373
        %v440 = vsel %vm407, %v371, %v372
        %v441 = vsel %vm407, %v370, %v371
        %v442 = vsel %vm407, %v369, %v370
        %v443 = vsel %vm407, %v368, %v369
        %v444 = vsel %vm407, %v367, %v368
        %v445 = vsel %vm407, %v366, %v367
        %v446 = vsel %vm407, %v365, %v366
        %v447 = vsel %vm407, %v364, %v365
        %v448 = vsel %vm407, %v363, %v364
        %v449 = vsel %vm407, %v362, %v363
        %v450 = vsel %vm407, %v361, %v362
        %v451 = vsel %vm407, %v360, %v361
        %v452 = vsel %vm407, %v359, %v360
        %v453 = vsel %vm407, %v358, %v359
        %v454 = vsel %vm407, %v357, %v358
        %v455 = vsel %vm407, %v356, %v357
        %v456 = vsel %vm407, %v355, %v356
        %v457 = vsel %vm407, %v354, %v355
        %v458 = vsel %vm407, %v353, %v354
        %v459 = vsel %vm407, %v352, %v353
        %v460 = vsel %vm407, %v351, %v352
        %v461 = vsel %vm407, %v404, %v351
        %v462 = vpack.c.bf16 %v460, %v461
        %v463 = vpack.c.bf16 %v458, %v459
        %v464 = vpack.c.bf16 %v456, %v457
        %v465 = vpack.c.bf16 %v454, %v455
        %v466 = vpack.c.bf16 %v452, %v453
        %v467 = vpack.c.bf16 %v450, %v451
        %v468 = vpack.c.bf16 %v448, %v449
        %v469 = vpack.c.bf16 %v446, %v447
        %v470 = vpack.c.bf16 %v444, %v445
        %v471 = vpack.c.bf16 %v442, %v443
        %v472 = vpack.c.bf16 %v440, %v441
        %v473 = vpack.c.bf16 %v438, %v439
        %v474 = vpack.c.bf16 %v436, %v437
        %v475 = vpack.c.bf16 %v434, %v435
        %v476 = vpack.c.bf16 %v432, %v433
        %v477 = vpack.c.bf16 %v430, %v431
        %v478 = vpack.c.bf16 %v428, %v429
        %v479 = vpack.c.bf16 %v426, %v427
        %v480 = vpack.c.bf16 %v424, %v425
        %v481 = vpack.c.bf16 %v422, %v423
        %v482 = vpack.c.bf16 %v420, %v421
        %v483 = vpack.c.bf16 %v418, %v419
        %v484 = vpack.c.bf16 %v416, %v417
        %v485 = vpack.c.bf16 %v414, %v415
        %486 = vst [vmem:[#allocation3] sm:$0xff] %v462
        %487 = vst [vmem:[#allocation3 + $0x48] sm:$0xff] %v463
        %488 = vst [vmem:[#allocation3 + $0x90] sm:$0xff] %v464
        %489 = vst [vmem:[#allocation3 + $0xd8] sm:$0xff] %v465
        %490 = vst [vmem:[#allocation3 + $0x120] sm:$0xff] %v466
        %491 = vst [vmem:[#allocation3 + $0x168] sm:$0xff] %v467
        %492 = vst [vmem:[#allocation3 + $0x1b0] sm:$0xff] %v468
        %493 = vst [vmem:[#allocation3 + $0x1f8] sm:$0xff] %v469
        %494 = vst [vmem:[#allocation3 + $0x240] sm:$0xff] %v470
        %495 = vst [vmem:[#allocation3 + $0x288] sm:$0xff] %v471
        %496 = vst [vmem:[#allocation3 + $0x2d0] sm:$0xff] %v472
        %497 = vst [vmem:[#allocation3 + $0x318] sm:$0xff] %v473
        %498 = vst [vmem:[#allocation3 + $0x360] sm:$0xff] %v474
        %499 = vst [vmem:[#allocation3 + $0x3a8] sm:$0xff] %v475
        %500 = vst [vmem:[#allocation3 + $0x3f0] sm:$0xff] %v476
        %501 = vst [vmem:[#allocation3 + $0x438] sm:$0xff] %v477
        %502 = vst [vmem:[#allocation3 + $0x480] sm:$0xff] %v478
        %503 = vst [vmem:[#allocation3 + $0x4c8] sm:$0xff] %v479
        %504 = vst [vmem:[#allocation3 + $0x510] sm:$0xff] %v480
        %505 = vst [vmem:[#allocation3 + $0x558] sm:$0xff] %v481
        %506 = vst [vmem:[#allocation3 + $0x5a0] sm:$0xff] %v482
        %507 = vst [vmem:[#allocation3 + $0x5e8] sm:$0xff] %v483
        %508 = vst [vmem:[#allocation3 + $0x630] sm:$0xff] %v484
        %509 = vst [vmem:[#allocation3 + $0x678] sm:$0xff] %v485
        %v510 = vpack.c.bf16 %v457, %v458
        %v511 = vpack.c.bf16 %v455, %v456
        %v512 = vpack.c.bf16 %v453, %v454
        %v513 = vpack.c.bf16 %v451, %v452
        %v514 = vpack.c.bf16 %v449, %v450
        %v515 = vpack.c.bf16 %v447, %v448
        %v516 = vpack.c.bf16 %v445, %v446
        %v517 = vpack.c.bf16 %v443, %v444
        %v518 = vpack.c.bf16 %v441, %v442
        %v519 = vpack.c.bf16 %v439, %v440
        %v520 = vpack.c.bf16 %v437, %v438
        %v521 = vpack.c.bf16 %v435, %v436
        %v522 = vpack.c.bf16 %v433, %v434
        %v523 = vpack.c.bf16 %v431, %v432
        %v524 = vpack.c.bf16 %v429, %v430
        %v525 = vpack.c.bf16 %v427, %v428
        %v526 = vpack.c.bf16 %v425, %v426
        %v527 = vpack.c.bf16 %v423, %v424
        %v528 = vpack.c.bf16 %v421, %v422
        %v529 = vpack.c.bf16 %v419, %v420
        %v530 = vpack.c.bf16 %v417, %v418
        %v531 = vpack.c.bf16 %v415, %v416
        %v532 = vpack.c.bf16 %v413, %v414
        %v533 = vpack.c.bf16 %v411, %v412
        %534 = vst [vmem:[#allocation3 + $0x18] sm:$0xff] %v510
        %535 = vst [vmem:[#allocation3 + $0x60] sm:$0xff] %v511
        %536 = vst [vmem:[#allocation3 + $0xa8] sm:$0xff] %v512
        %537 = vst [vmem:[#allocation3 + $0xf0] sm:$0xff] %v513
        %538 = vst [vmem:[#allocation3 + $0x138] sm:$0xff] %v514
        %539 = vst [vmem:[#allocation3 + $0x180] sm:$0xff] %v515
        %540 = vst [vmem:[#allocation3 + $0x1c8] sm:$0xff] %v516
        %541 = vst [vmem:[#allocation3 + $0x210] sm:$0xff] %v517
        %542 = vst [vmem:[#allocation3 + $0x258] sm:$0xff] %v518
        %543 = vst [vmem:[#allocation3 + $0x2a0] sm:$0xff] %v519
        %544 = vst [vmem:[#allocation3 + $0x2e8] sm:$0xff] %v520
        %545 = vst [vmem:[#allocation3 + $0x330] sm:$0xff] %v521
        %546 = vst [vmem:[#allocation3 + $0x378] sm:$0xff] %v522
        %547 = vst [vmem:[#allocation3 + $0x3c0] sm:$0xff] %v523
        %548 = vst [vmem:[#allocation3 + $0x408] sm:$0xff] %v524
        %549 = vst [vmem:[#allocation3 + $0x450] sm:$0xff] %v525
        %550 = vst [vmem:[#allocation3 + $0x498] sm:$0xff] %v526
        %551 = vst [vmem:[#allocation3 + $0x4e0] sm:$0xff] %v527
        %552 = vst [vmem:[#allocation3 + $0x528] sm:$0xff] %v528
        %553 = vst [vmem:[#allocation3 + $0x570] sm:$0xff] %v529
        %554 = vst [vmem:[#allocation3 + $0x5b8] sm:$0xff] %v530
        %555 = vst [vmem:[#allocation3 + $0x600] sm:$0xff] %v531
        %556 = vst [vmem:[#allocation3 + $0x648] sm:$0xff] %v532
        %557 = vst [vmem:[#allocation3 + $0x690] sm:$0xff] %v533
        %v558 = vpack.c.bf16 %v412, %v413
        %v559 = vpack.c.bf16 %v410, %v411
        %v560 = vpack.c.bf16 %v408, %v409
        %561 = vst [vmem:[#allocation3 + $0x30] sm:$0xff] %v465
        %562 = vst [vmem:[#allocation3 + $0x78] sm:$0xff] %v466
        %563 = vst [vmem:[#allocation3 + $0xc0] sm:$0xff] %v467
        %564 = vst [vmem:[#allocation3 + $0x108] sm:$0xff] %v468
        %565 = vst [vmem:[#allocation3 + $0x150] sm:$0xff] %v469
        %566 = vst [vmem:[#allocation3 + $0x198] sm:$0xff] %v470
        %567 = vst [vmem:[#allocation3 + $0x1e0] sm:$0xff] %v471
        %568 = vst [vmem:[#allocation3 + $0x228] sm:$0xff] %v472
        %569 = vst [vmem:[#allocation3 + $0x270] sm:$0xff] %v473
        %570 = vst [vmem:[#allocation3 + $0x2b8] sm:$0xff] %v474
        %571 = vst [vmem:[#allocation3 + $0x300] sm:$0xff] %v475
        %572 = vst [vmem:[#allocation3 + $0x348] sm:$0xff] %v476
        %573 = vst [vmem:[#allocation3 + $0x390] sm:$0xff] %v477
        %574 = vst [vmem:[#allocation3 + $0x3d8] sm:$0xff] %v478
        %575 = vst [vmem:[#allocation3 + $0x420] sm:$0xff] %v479
        %576 = vst [vmem:[#allocation3 + $0x468] sm:$0xff] %v480
        %577 = vst [vmem:[#allocation3 + $0x4b0] sm:$0xff] %v481
        %578 = vst [vmem:[#allocation3 + $0x4f8] sm:$0xff] %v482
        %579 = vst [vmem:[#allocation3 + $0x540] sm:$0xff] %v483
        %580 = vst [vmem:[#allocation3 + $0x588] sm:$0xff] %v484
        %581 = vst [vmem:[#allocation3 + $0x5d0] sm:$0xff] %v485
        %582 = vst [vmem:[#allocation3 + $0x618] sm:$0xff] %v558
        %583 = vst [vmem:[#allocation3 + $0x660] sm:$0xff] %v559
        %584 = vst [vmem:[#allocation3 + $0x6a8] sm:$0xff] %v560
        %v585 = vpack.c.bf16 %v298, %v297
        %v586 = vpack.c.bf16 %v300, %v299
        %v587 = vpack.c.bf16 %v302, %v301
        %v588 = vpack.c.bf16 %v304, %v303
        %v589 = vpack.c.bf16 %v306, %v305
        %v590 = vpack.c.bf16 %v308, %v307
        %v591 = vpack.c.bf16 %v310, %v309
        %v592 = vpack.c.bf16 %v312, %v311
        %v593 = vpack.c.bf16 %v314, %v313
        %v594 = vpack.c.bf16 %v316, %v315
        %v595 = vpack.c.bf16 %v318, %v317
        %v596 = vpack.c.bf16 %v320, %v319
        %v597 = vpack.c.bf16 %v322, %v321
        %v598 = vpack.c.bf16 %v324, %v323
        %v599 = vpack.c.bf16 %v326, %v325
        %v600 = vpack.c.bf16 %v328, %v327
        %v601 = vpack.c.bf16 %v330, %v329
        %v602 = vpack.c.bf16 %v332, %v331
        %v603 = vpack.c.bf16 %v334, %v333
        %v604 = vpack.c.bf16 %v336, %v335
        %v605 = vpack.c.bf16 %v338, %v337
        %v606 = vpack.c.bf16 %v340, %v339
        %v607 = vpack.c.bf16 %v342, %v341
        %v608 = vpack.c.bf16 %v344, %v343
        %609 = vst [vmem:[#allocation3 + $0x8] sm:$0xff] %v585
        %610 = vst [vmem:[#allocation3 + $0x50] sm:$0xff] %v586
        %611 = vst [vmem:[#allocation3 + $0x98] sm:$0xff] %v587
        %612 = vst [vmem:[#allocation3 + $0xe0] sm:$0xff] %v588
        %613 = vst [vmem:[#allocation3 + $0x128] sm:$0xff] %v589
        %614 = vst [vmem:[#allocation3 + $0x170] sm:$0xff] %v590
        %615 = vst [vmem:[#allocation3 + $0x1b8] sm:$0xff] %v591
        %616 = vst [vmem:[#allocation3 + $0x200] sm:$0xff] %v592
        %617 = vst [vmem:[#allocation3 + $0x248] sm:$0xff] %v593
        %618 = vst [vmem:[#allocation3 + $0x290] sm:$0xff] %v594
        %619 = vst [vmem:[#allocation3 + $0x2d8] sm:$0xff] %v595
        %620 = vst [vmem:[#allocation3 + $0x320] sm:$0xff] %v596
        %621 = vst [vmem:[#allocation3 + $0x368] sm:$0xff] %v597
        %622 = vst [vmem:[#allocation3 + $0x3b0] sm:$0xff] %v598
        %623 = vst [vmem:[#allocation3 + $0x3f8] sm:$0xff] %v599
        %624 = vst [vmem:[#allocation3 + $0x440] sm:$0xff] %v600
        %625 = vst [vmem:[#allocation3 + $0x488] sm:$0xff] %v601
        %626 = vst [vmem:[#allocation3 + $0x4d0] sm:$0xff] %v602
        %627 = vst [vmem:[#allocation3 + $0x518] sm:$0xff] %v603
        %628 = vst [vmem:[#allocation3 + $0x560] sm:$0xff] %v604
        %629 = vst [vmem:[#allocation3 + $0x5a8] sm:$0xff] %v605
        %630 = vst [vmem:[#allocation3 + $0x5f0] sm:$0xff] %v606
        %631 = vst [vmem:[#allocation3 + $0x638] sm:$0xff] %v607
        %632 = vst [vmem:[#allocation3 + $0x680] sm:$0xff] %v608
        %v633 = vpack.c.bf16 %v301, %v300
        %v634 = vpack.c.bf16 %v303, %v302
        %v635 = vpack.c.bf16 %v305, %v304
        %v636 = vpack.c.bf16 %v307, %v306
        %v637 = vpack.c.bf16 %v309, %v308
        %v638 = vpack.c.bf16 %v311, %v310
        %v639 = vpack.c.bf16 %v313, %v312
        %v640 = vpack.c.bf16 %v315, %v314
        %v641 = vpack.c.bf16 %v317, %v316
        %v642 = vpack.c.bf16 %v319, %v318
        %v643 = vpack.c.bf16 %v321, %v320
        %v644 = vpack.c.bf16 %v323, %v322
        %v645 = vpack.c.bf16 %v325, %v324
        %v646 = vpack.c.bf16 %v327, %v326
        %v647 = vpack.c.bf16 %v329, %v328
        %v648 = vpack.c.bf16 %v331, %v330
        %v649 = vpack.c.bf16 %v333, %v332
        %v650 = vpack.c.bf16 %v335, %v334
        %v651 = vpack.c.bf16 %v337, %v336
        %v652 = vpack.c.bf16 %v339, %v338
        %v653 = vpack.c.bf16 %v341, %v340
        %v654 = vpack.c.bf16 %v343, %v342
        %v655 = vpack.c.bf16 %v345, %v344
        %v656 = vpack.c.bf16 %v347, %v346
        %657 = vst [vmem:[#allocation3 + $0x20] sm:$0xff] %v633
        %658 = vst [vmem:[#allocation3 + $0x68] sm:$0xff] %v634
        %659 = vst [vmem:[#allocation3 + $0xb0] sm:$0xff] %v635
        %660 = vst [vmem:[#allocation3 + $0xf8] sm:$0xff] %v636
        %661 = vst [vmem:[#allocation3 + $0x140] sm:$0xff] %v637
        %662 = vst [vmem:[#allocation3 + $0x188] sm:$0xff] %v638
        %663 = vst [vmem:[#allocation3 + $0x1d0] sm:$0xff] %v639
        %664 = vst [vmem:[#allocation3 + $0x218] sm:$0xff] %v640
        %665 = vst [vmem:[#allocation3 + $0x260] sm:$0xff] %v641
        %666 = vst [vmem:[#allocation3 + $0x2a8] sm:$0xff] %v642
        %667 = vst [vmem:[#allocation3 + $0x2f0] sm:$0xff] %v643
        %668 = vst [vmem:[#allocation3 + $0x338] sm:$0xff] %v644
        %669 = vst [vmem:[#allocation3 + $0x380] sm:$0xff] %v645
        %670 = vst [vmem:[#allocation3 + $0x3c8] sm:$0xff] %v646
        %671 = vst [vmem:[#allocation3 + $0x410] sm:$0xff] %v647
        %672 = vst [vmem:[#allocation3 + $0x458] sm:$0xff] %v648
        %673 = vst [vmem:[#allocation3 + $0x4a0] sm:$0xff] %v649
        %674 = vst [vmem:[#allocation3 + $0x4e8] sm:$0xff] %v650
        %675 = vst [vmem:[#allocation3 + $0x530] sm:$0xff] %v651
        %676 = vst [vmem:[#allocation3 + $0x578] sm:$0xff] %v652
        %677 = vst [vmem:[#allocation3 + $0x5c0] sm:$0xff] %v653
        %678 = vst [vmem:[#allocation3 + $0x608] sm:$0xff] %v654
        %679 = vst [vmem:[#allocation3 + $0x650] sm:$0xff] %v655
        %680 = vst [vmem:[#allocation3 + $0x698] sm:$0xff] %v656
        %v681 = vpack.c.bf16 %v346, %v345
        %v682 = vpack.c.bf16 %v348, %v347
        %v683 = vpack.c.bf16 %v350, %v349
        %684 = vst [vmem:[#allocation3 + $0x38] sm:$0xff] %v588
        %685 = vst [vmem:[#allocation3 + $0x80] sm:$0xff] %v589
        %686 = vst [vmem:[#allocation3 + $0xc8] sm:$0xff] %v590
        %687 = vst [vmem:[#allocation3 + $0x110] sm:$0xff] %v591
        %688 = vst [vmem:[#allocation3 + $0x158] sm:$0xff] %v592
        %689 = vst [vmem:[#allocation3 + $0x1a0] sm:$0xff] %v593
        %690 = vst [vmem:[#allocation3 + $0x1e8] sm:$0xff] %v594
        %691 = vst [vmem:[#allocation3 + $0x230] sm:$0xff] %v595
        %692 = vst [vmem:[#allocation3 + $0x278] sm:$0xff] %v596
        %693 = vst [vmem:[#allocation3 + $0x2c0] sm:$0xff] %v597
        %694 = vst [vmem:[#allocation3 + $0x308] sm:$0xff] %v598
        %695 = vst [vmem:[#allocation3 + $0x350] sm:$0xff] %v599
        %696 = vst [vmem:[#allocation3 + $0x398] sm:$0xff] %v600
        %697 = vst [vmem:[#allocation3 + $0x3e0] sm:$0xff] %v601
        %698 = vst [vmem:[#allocation3 + $0x428] sm:$0xff] %v602
        %699 = vst [vmem:[#allocation3 + $0x470] sm:$0xff] %v603
        %700 = vst [vmem:[#allocation3 + $0x4b8] sm:$0xff] %v604
        %701 = vst [vmem:[#allocation3 + $0x500] sm:$0xff] %v605
        %702 = vst [vmem:[#allocation3 + $0x548] sm:$0xff] %v606
        %703 = vst [vmem:[#allocation3 + $0x590] sm:$0xff] %v607
        %704 = vst [vmem:[#allocation3 + $0x5d8] sm:$0xff] %v608
        %705 = vst [vmem:[#allocation3 + $0x620] sm:$0xff] %v681
        %706 = vst [vmem:[#allocation3 + $0x668] sm:$0xff] %v682
        %707 = vst [vmem:[#allocation3 + $0x6b0] sm:$0xff] %v683
        %v708 = vrot.slane %v297, 1
        %v709 = vrot.slane %v298, 1
        %v710 = vrot.slane %v299, 1
        %v711 = vrot.slane %v300, 1
        %v712 = vrot.slane %v301, 1
        %v713 = vrot.slane %v302, 1
        %v714 = vrot.slane %v303, 1
        %v715 = vrot.slane %v304, 1
        %v716 = vrot.slane %v305, 1
        %v717 = vrot.slane %v306, 1
        %v718 = vrot.slane %v307, 1
        %v719 = vrot.slane %v308, 1
        %v720 = vrot.slane %v309, 1
        %v721 = vrot.slane %v310, 1
        %v722 = vrot.slane %v311, 1
        %v723 = vrot.slane %v312, 1
        %v724 = vrot.slane %v313, 1
        %v725 = vrot.slane %v314, 1
        %v726 = vrot.slane %v315, 1
        %v727 = vrot.slane %v316, 1
        %v728 = vrot.slane %v317, 1
        %v729 = vrot.slane %v318, 1
        %v730 = vrot.slane %v319, 1
        %v731 = vrot.slane %v320, 1
        %v732 = vrot.slane %v321, 1
        %v733 = vrot.slane %v322, 1
        %v734 = vrot.slane %v323, 1
        %v735 = vrot.slane %v324, 1
        %v736 = vrot.slane %v325, 1
        %v737 = vrot.slane %v326, 1
        %v738 = vrot.slane %v327, 1
        %v739 = vrot.slane %v328, 1
        %v740 = vrot.slane %v329, 1
        %v741 = vrot.slane %v330, 1
        %v742 = vrot.slane %v331, 1
        %v743 = vrot.slane %v332, 1
        %v744 = vrot.slane %v333, 1
        %v745 = vrot.slane %v334, 1
        %v746 = vrot.slane %v335, 1
        %v747 = vrot.slane %v336, 1
        %v748 = vrot.slane %v337, 1
        %v749 = vrot.slane %v338, 1
        %v750 = vrot.slane %v339, 1
        %v751 = vrot.slane %v340, 1
        %v752 = vrot.slane %v341, 1
        %v753 = vrot.slane %v342, 1
        %v754 = vrot.slane %v343, 1
        %v755 = vrot.slane %v344, 1
        %v756 = vrot.slane %v345, 1
        %v757 = vrot.slane %v346, 1
        %v758 = vrot.slane %v347, 1
        %v759 = vrot.slane %v348, 1
        %v760 = vrot.slane %v349, 1
        %v761 = vrot.slane %v350, 1
        %vm762 = vcmp.lt.s32.totalorder %v406, 7
        %v763 = vsel %vm762, %v760, %v761
        %v764 = vsel %vm762, %v759, %v760
        %v765 = vsel %vm762, %v758, %v759
        %v766 = vsel %vm762, %v757, %v758
        %v767 = vsel %vm762, %v756, %v757
        %v768 = vsel %vm762, %v755, %v756
        %v769 = vsel %vm762, %v754, %v755
        %v770 = vsel %vm762, %v753, %v754
        %v771 = vsel %vm762, %v752, %v753
        %v772 = vsel %vm762, %v751, %v752
        %v773 = vsel %vm762, %v750, %v751
        %v774 = vsel %vm762, %v749, %v750
        %v775 = vsel %vm762, %v748, %v749
        %v776 = vsel %vm762, %v747, %v748
        %v777 = vsel %vm762, %v746, %v747
        %v778 = vsel %vm762, %v745, %v746
        %v779 = vsel %vm762, %v744, %v745
        %v780 = vsel %vm762, %v743, %v744
        %v781 = vsel %vm762, %v742, %v743
        %v782 = vsel %vm762, %v741, %v742
        %v783 = vsel %vm762, %v740, %v741
        %v784 = vsel %vm762, %v739, %v740
        %v785 = vsel %vm762, %v738, %v739
        %v786 = vsel %vm762, %v737, %v738
        %v787 = vsel %vm762, %v736, %v737
        %v788 = vsel %vm762, %v735, %v736
        %v789 = vsel %vm762, %v734, %v735
        %v790 = vsel %vm762, %v733, %v734
        %v791 = vsel %vm762, %v732, %v733
        %v792 = vsel %vm762, %v731, %v732
        %v793 = vsel %vm762, %v730, %v731
        %v794 = vsel %vm762, %v729, %v730
        %v795 = vsel %vm762, %v728, %v729
        %v796 = vsel %vm762, %v727, %v728
        %v797 = vsel %vm762, %v726, %v727
        %v798 = vsel %vm762, %v725, %v726
        %v799 = vsel %vm762, %v724, %v725
        %v800 = vsel %vm762, %v723, %v724
        %v801 = vsel %vm762, %v722, %v723
        %v802 = vsel %vm762, %v721, %v722
        %v803 = vsel %vm762, %v720, %v721
        %v804 = vsel %vm762, %v719, %v720
        %v805 = vsel %vm762, %v718, %v719
        %v806 = vsel %vm762, %v717, %v718
        %v807 = vsel %vm762, %v716, %v717
        %v808 = vsel %vm762, %v715, %v716
        %v809 = vsel %vm762, %v714, %v715
        %v810 = vsel %vm762, %v713, %v714
        %v811 = vsel %vm762, %v712, %v713
        %v812 = vsel %vm762, %v711, %v712
        %v813 = vsel %vm762, %v710, %v711
        %v814 = vsel %vm762, %v709, %v710
        %v815 = vsel %vm762, %v708, %v709
        %v816 = vsel %vm762, %v761, %v708
        %v817 = vpack.c.bf16 %v814, %v815
        %v818 = vpack.c.bf16 %v812, %v813
        %v819 = vpack.c.bf16 %v810, %v811
        %v820 = vpack.c.bf16 %v808, %v809
        %v821 = vpack.c.bf16 %v806, %v807
        %v822 = vpack.c.bf16 %v804, %v805
        %v823 = vpack.c.bf16 %v802, %v803
        %v824 = vpack.c.bf16 %v800, %v801
        %v825 = vpack.c.bf16 %v798, %v799
        %v826 = vpack.c.bf16 %v796, %v797
        %v827 = vpack.c.bf16 %v794, %v795
        %v828 = vpack.c.bf16 %v792, %v793
        %v829 = vpack.c.bf16 %v790, %v791
        %v830 = vpack.c.bf16 %v788, %v789
        %v831 = vpack.c.bf16 %v786, %v787
        %v832 = vpack.c.bf16 %v784, %v785
        %v833 = vpack.c.bf16 %v782, %v783
        %v834 = vpack.c.bf16 %v780, %v781
        %v835 = vpack.c.bf16 %v778, %v779
        %v836 = vpack.c.bf16 %v776, %v777
        %v837 = vpack.c.bf16 %v774, %v775
        %v838 = vpack.c.bf16 %v772, %v773
        %v839 = vpack.c.bf16 %v770, %v771
        %v840 = vpack.c.bf16 %v768, %v769
        %841 = vst [vmem:[#allocation3 + $0x10] sm:$0xff] %v817
        %842 = vst [vmem:[#allocation3 + $0x58] sm:$0xff] %v818
        %843 = vst [vmem:[#allocation3 + $0xa0] sm:$0xff] %v819
        %844 = vst [vmem:[#allocation3 + $0xe8] sm:$0xff] %v820
        %845 = vst [vmem:[#allocation3 + $0x130] sm:$0xff] %v821
        %846 = vst [vmem:[#allocation3 + $0x178] sm:$0xff] %v822
        %847 = vst [vmem:[#allocation3 + $0x1c0] sm:$0xff] %v823
        %848 = vst [vmem:[#allocation3 + $0x208] sm:$0xff] %v824
        %849 = vst [vmem:[#allocation3 + $0x250] sm:$0xff] %v825
        %850 = vst [vmem:[#allocation3 + $0x298] sm:$0xff] %v826
        %851 = vst [vmem:[#allocation3 + $0x2e0] sm:$0xff] %v827
        %852 = vst [vmem:[#allocation3 + $0x328] sm:$0xff] %v828
        %853 = vst [vmem:[#allocation3 + $0x370] sm:$0xff] %v829
        %854 = vst [vmem:[#allocation3 + $0x3b8] sm:$0xff] %v830
        %855 = vst [vmem:[#allocation3 + $0x400] sm:$0xff] %v831
        %856 = vst [vmem:[#allocation3 + $0x448] sm:$0xff] %v832
        %857 = vst [vmem:[#allocation3 + $0x490] sm:$0xff] %v833
        %858 = vst [vmem:[#allocation3 + $0x4d8] sm:$0xff] %v834
        %859 = vst [vmem:[#allocation3 + $0x520] sm:$0xff] %v835
        %860 = vst [vmem:[#allocation3 + $0x568] sm:$0xff] %v836
        %861 = vst [vmem:[#allocation3 + $0x5b0] sm:$0xff] %v837
        %862 = vst [vmem:[#allocation3 + $0x5f8] sm:$0xff] %v838
        %863 = vst [vmem:[#allocation3 + $0x640] sm:$0xff] %v839
        %864 = vst [vmem:[#allocation3 + $0x688] sm:$0xff] %v840
        %v865 = vpack.c.bf16 %v811, %v812
        %v866 = vpack.c.bf16 %v809, %v810
        %v867 = vpack.c.bf16 %v807, %v808
        %v868 = vpack.c.bf16 %v805, %v806
        %v869 = vpack.c.bf16 %v803, %v804
        %v870 = vpack.c.bf16 %v801, %v802
        %v871 = vpack.c.bf16 %v799, %v800
        %v872 = vpack.c.bf16 %v797, %v798
        %v873 = vpack.c.bf16 %v795, %v796
        %v874 = vpack.c.bf16 %v793, %v794
        %v875 = vpack.c.bf16 %v791, %v792
        %v876 = vpack.c.bf16 %v789, %v790
        %v877 = vpack.c.bf16 %v787, %v788
        %v878 = vpack.c.bf16 %v785, %v786
        %v879 = vpack.c.bf16 %v783, %v784
        %v880 = vpack.c.bf16 %v781, %v782
        %v881 = vpack.c.bf16 %v779, %v780
        %v882 = vpack.c.bf16 %v777, %v778
        %v883 = vpack.c.bf16 %v775, %v776
        %v884 = vpack.c.bf16 %v773, %v774
        %v885 = vpack.c.bf16 %v771, %v772
        %v886 = vpack.c.bf16 %v769, %v770
        %v887 = vpack.c.bf16 %v767, %v768
        %v888 = vpack.c.bf16 %v765, %v766
        %889 = vst [vmem:[#allocation3 + $0x28] sm:$0xff] %v865
        %890 = vst [vmem:[#allocation3 + $0x70] sm:$0xff] %v866
        %891 = vst [vmem:[#allocation3 + $0xb8] sm:$0xff] %v867
        %892 = vst [vmem:[#allocation3 + $0x100] sm:$0xff] %v868
        %893 = vst [vmem:[#allocation3 + $0x148] sm:$0xff] %v869
        %894 = vst [vmem:[#allocation3 + $0x190] sm:$0xff] %v870
        %895 = vst [vmem:[#allocation3 + $0x1d8] sm:$0xff] %v871
        %896 = vst [vmem:[#allocation3 + $0x220] sm:$0xff] %v872
        %897 = vst [vmem:[#allocation3 + $0x268] sm:$0xff] %v873
        %898 = vst [vmem:[#allocation3 + $0x2b0] sm:$0xff] %v874
        %899 = vst [vmem:[#allocation3 + $0x2f8] sm:$0xff] %v875
        %900 = vst [vmem:[#allocation3 + $0x340] sm:$0xff] %v876
        %901 = vst [vmem:[#allocation3 + $0x388] sm:$0xff] %v877
        %902 = vst [vmem:[#allocation3 + $0x3d0] sm:$0xff] %v878
        %903 = vst [vmem:[#allocation3 + $0x418] sm:$0xff] %v879
        %904 = vst [vmem:[#allocation3 + $0x460] sm:$0xff] %v880
        %905 = vst [vmem:[#allocation3 + $0x4a8] sm:$0xff] %v881
        %906 = vst [vmem:[#allocation3 + $0x4f0] sm:$0xff] %v882
        %907 = vst [vmem:[#allocation3 + $0x538] sm:$0xff] %v883
        %908 = vst [vmem:[#allocation3 + $0x580] sm:$0xff] %v884
        %909 = vst [vmem:[#allocation3 + $0x5c8] sm:$0xff] %v885
        %910 = vst [vmem:[#allocation3 + $0x610] sm:$0xff] %v886
        %911 = vst [vmem:[#allocation3 + $0x658] sm:$0xff] %v887
        %912 = vst [vmem:[#allocation3 + $0x6a0] sm:$0xff] %v888
        %v913 = vpack.c.bf16 %v766, %v767
        %v914 = vpack.c.bf16 %v764, %v765
        %v915 = vpack.c.bf16 %v816, %v763
        %916 = vst [vmem:[#allocation3 + $0x40] sm:$0xff] %v820
        %917 = vst [vmem:[#allocation3 + $0x88] sm:$0xff] %v821
        %918 = vst [vmem:[#allocation3 + $0xd0] sm:$0xff] %v822
        %919 = vst [vmem:[#allocation3 + $0x118] sm:$0xff] %v823
        %920 = vst [vmem:[#allocation3 + $0x160] sm:$0xff] %v824
        %921 = vst [vmem:[#allocation3 + $0x1a8] sm:$0xff] %v825
        %922 = vst [vmem:[#allocation3 + $0x1f0] sm:$0xff] %v826
        %923 = vst [vmem:[#allocation3 + $0x238] sm:$0xff] %v827
        %924 = vst [vmem:[#allocation3 + $0x280] sm:$0xff] %v828
        %925 = vst [vmem:[#allocation3 + $0x2c8] sm:$0xff] %v829
        %926 = vst [vmem:[#allocation3 + $0x310] sm:$0xff] %v830
        %927 = vst [vmem:[#allocation3 + $0x358] sm:$0xff] %v831
        %928 = vst [vmem:[#allocation3 + $0x3a0] sm:$0xff] %v832
        %929 = vst [vmem:[#allocation3 + $0x3e8] sm:$0xff] %v833
        %930 = vst [vmem:[#allocation3 + $0x430] sm:$0xff] %v834
        %931 = vst [vmem:[#allocation3 + $0x478] sm:$0xff] %v835
        %932 = vst [vmem:[#allocation3 + $0x4c0] sm:$0xff] %v836
        %933 = vst [vmem:[#allocation3 + $0x508] sm:$0xff] %v837
        %934 = vst [vmem:[#allocation3 + $0x550] sm:$0xff] %v838
        %935 = vst [vmem:[#allocation3 + $0x598] sm:$0xff] %v839
        %936 = vst [vmem:[#allocation3 + $0x5e0] sm:$0xff] %v840
        %937 = vst [vmem:[#allocation3 + $0x628] sm:$0xff] %v913
        %938 = vst [vmem:[#allocation3 + $0x670] sm:$0xff] %v914
        %939 = vst [vmem:[#allocation3 + $0x6b8] sm:$0xff] %v915
        %v940 = vld [vmem:[#allocation3] sm:$0xff]
        %v941 = vld [vmem:[#allocation3 + $0x8] sm:$0xff]
        %v942 = vld [vmem:[#allocation3 + $0x10] sm:$0xff]
        %v943 = vld [vmem:[#allocation3 + $0x18] sm:$0xff]
        %v944 = vld [vmem:[#allocation3 + $0x20] sm:$0xff]
        %v945 = vld [vmem:[#allocation3 + $0x28] sm:$0xff]
        %v946 = vld [vmem:[#allocation3 + $0x30] sm:$0xff]
        %v947 = vld [vmem:[#allocation3 + $0x38] sm:$0xff]
        %v948 = vld [vmem:[#allocation3 + $0x40] sm:$0xff]
        %v949 = vld [vmem:[#allocation3 + $0x48] sm:$0xff]
        %v950 = vld [vmem:[#allocation3 + $0x50] sm:$0xff]
        %v951 = vld [vmem:[#allocation3 + $0x58] sm:$0xff]
        %v952 = vld [vmem:[#allocation3 + $0x60] sm:$0xff]
        %v953 = vld [vmem:[#allocation3 + $0x68] sm:$0xff]
        %v954 = vld [vmem:[#allocation3 + $0x70] sm:$0xff]
        %v955 = vld [vmem:[#allocation3 + $0x78] sm:$0xff]
        %v956 = vld [vmem:[#allocation3 + $0x80] sm:$0xff]
        %v957 = vld [vmem:[#allocation3 + $0x88] sm:$0xff]
        %v958 = vld [vmem:[#allocation3 + $0x90] sm:$0xff]
        %v959 = vld [vmem:[#allocation3 + $0x98] sm:$0xff]
        %v960 = vld [vmem:[#allocation3 + $0xa0] sm:$0xff]
        %v961 = vld [vmem:[#allocation3 + $0xa8] sm:$0xff]
        %v962 = vld [vmem:[#allocation3 + $0xb0] sm:$0xff]
        %v963 = vld [vmem:[#allocation3 + $0xb8] sm:$0xff]
        %v964 = vld [vmem:[#allocation3 + $0xc0] sm:$0xff]
        %v965 = vld [vmem:[#allocation3 + $0xc8] sm:$0xff]
        %v966 = vld [vmem:[#allocation3 + $0xd0] sm:$0xff]
        %v967 = vld [vmem:[#allocation3 + $0xd8] sm:$0xff]
        %v968 = vld [vmem:[#allocation3 + $0xe0] sm:$0xff]
        %v969 = vld [vmem:[#allocation3 + $0xe8] sm:$0xff]
        %v970 = vld [vmem:[#allocation3 + $0xf0] sm:$0xff]
        %v971 = vld [vmem:[#allocation3 + $0xf8] sm:$0xff]
        %v972 = vld [vmem:[#allocation3 + $0x100] sm:$0xff]
        %v973 = vld [vmem:[#allocation3 + $0x108] sm:$0xff]
        %v974 = vld [vmem:[#allocation3 + $0x110] sm:$0xff]
        %v975 = vld [vmem:[#allocation3 + $0x118] sm:$0xff]
        %v976 = vld [vmem:[#allocation3 + $0x120] sm:$0xff]
        %v977 = vld [vmem:[#allocation3 + $0x128] sm:$0xff]
        %v978 = vld [vmem:[#allocation3 + $0x130] sm:$0xff]
        %v979 = vld [vmem:[#allocation3 + $0x138] sm:$0xff]
        %v980 = vld [vmem:[#allocation3 + $0x140] sm:$0xff]
        %v981 = vld [vmem:[#allocation3 + $0x148] sm:$0xff]
        %v982 = vld [vmem:[#allocation3 + $0x150] sm:$0xff]
        %v983 = vld [vmem:[#allocation3 + $0x158] sm:$0xff]
        %v984 = vld [vmem:[#allocation3 + $0x160] sm:$0xff]
        %v985 = vld [vmem:[#allocation3 + $0x168] sm:$0xff]
        %v986 = vld [vmem:[#allocation3 + $0x170] sm:$0xff]
        %v987 = vld [vmem:[#allocation3 + $0x178] sm:$0xff]
        %v988 = vld [vmem:[#allocation3 + $0x180] sm:$0xff]
        %v989 = vld [vmem:[#allocation3 + $0x188] sm:$0xff]
        %v990 = vld [vmem:[#allocation3 + $0x190] sm:$0xff]
        %v991 = vld [vmem:[#allocation3 + $0x198] sm:$0xff]
        %v992 = vld [vmem:[#allocation3 + $0x1a0] sm:$0xff]
        %v993 = vld [vmem:[#allocation3 + $0x1a8] sm:$0xff]
        %v994 = vld [vmem:[#allocation3 + $0x1b0] sm:$0xff]
        %v995 = vld [vmem:[#allocation3 + $0x1b8] sm:$0xff]
        %v996 = vld [vmem:[#allocation3 + $0x1c0] sm:$0xff]
        %v997 = vld [vmem:[#allocation3 + $0x1c8] sm:$0xff]
        %v998 = vld [vmem:[#allocation3 + $0x1d0] sm:$0xff]
        %v999 = vld [vmem:[#allocation3 + $0x1d8] sm:$0xff]
        %v1000 = vld [vmem:[#allocation3 + $0x1e0] sm:$0xff]
        %v1001 = vld [vmem:[#allocation3 + $0x1e8] sm:$0xff]
        %v1002 = vld [vmem:[#allocation3 + $0x1f0] sm:$0xff]
        %v1003 = vld [vmem:[#allocation3 + $0x1f8] sm:$0xff]
        %v1004 = vld [vmem:[#allocation3 + $0x200] sm:$0xff]
        %v1005 = vld [vmem:[#allocation3 + $0x208] sm:$0xff]
        %v1006 = vld [vmem:[#allocation3 + $0x210] sm:$0xff]
        %v1007 = vld [vmem:[#allocation3 + $0x218] sm:$0xff]
        %v1008 = vld [vmem:[#allocation3 + $0x220] sm:$0xff]
        %v1009 = vld [vmem:[#allocation3 + $0x228] sm:$0xff]
        %v1010 = vld [vmem:[#allocation3 + $0x230] sm:$0xff]
        %v1011 = vld [vmem:[#allocation3 + $0x238] sm:$0xff]
        %v1012 = vld [vmem:[#allocation3 + $0x240] sm:$0xff]
        %v1013 = vld [vmem:[#allocation3 + $0x248] sm:$0xff]
        %v1014 = vld [vmem:[#allocation3 + $0x250] sm:$0xff]
        %v1015 = vld [vmem:[#allocation3 + $0x258] sm:$0xff]
        %v1016 = vld [vmem:[#allocation3 + $0x260] sm:$0xff]
        %v1017 = vld [vmem:[#allocation3 + $0x268] sm:$0xff]
        %v1018 = vld [vmem:[#allocation3 + $0x270] sm:$0xff]
        %v1019 = vld [vmem:[#allocation3 + $0x278] sm:$0xff]
        %v1020 = vld [vmem:[#allocation3 + $0x280] sm:$0xff]
        %v1021 = vld [vmem:[#allocation3 + $0x288] sm:$0xff]
        %v1022 = vld [vmem:[#allocation3 + $0x290] sm:$0xff]
        %v1023 = vld [vmem:[#allocation3 + $0x298] sm:$0xff]
        %v1024 = vld [vmem:[#allocation3 + $0x2a0] sm:$0xff]
        %v1025 = vld [vmem:[#allocation3 + $0x2a8] sm:$0xff]
        %v1026 = vld [vmem:[#allocation3 + $0x2b0] sm:$0xff]
        %v1027 = vld [vmem:[#allocation3 + $0x2b8] sm:$0xff]
        %v1028 = vld [vmem:[#allocation3 + $0x2c0] sm:$0xff]
        %v1029 = vld [vmem:[#allocation3 + $0x2c8] sm:$0xff]
        %v1030 = vld [vmem:[#allocation3 + $0x2d0] sm:$0xff]
        %v1031 = vld [vmem:[#allocation3 + $0x2d8] sm:$0xff]
        %v1032 = vld [vmem:[#allocation3 + $0x2e0] sm:$0xff]
        %v1033 = vld [vmem:[#allocation3 + $0x2e8] sm:$0xff]
        %v1034 = vld [vmem:[#allocation3 + $0x2f0] sm:$0xff]
        %v1035 = vld [vmem:[#allocation3 + $0x2f8] sm:$0xff]
        %v1036 = vld [vmem:[#allocation3 + $0x300] sm:$0xff]
        %v1037 = vld [vmem:[#allocation3 + $0x308] sm:$0xff]
        %v1038 = vld [vmem:[#allocation3 + $0x310] sm:$0xff]
        %v1039 = vld [vmem:[#allocation3 + $0x318] sm:$0xff]
        %v1040 = vld [vmem:[#allocation3 + $0x320] sm:$0xff]
        %v1041 = vld [vmem:[#allocation3 + $0x328] sm:$0xff]
        %v1042 = vld [vmem:[#allocation3 + $0x330] sm:$0xff]
        %v1043 = vld [vmem:[#allocation3 + $0x338] sm:$0xff]
        %v1044 = vld [vmem:[#allocation3 + $0x340] sm:$0xff]
        %v1045 = vld [vmem:[#allocation3 + $0x348] sm:$0xff]
        %v1046 = vld [vmem:[#allocation3 + $0x350] sm:$0xff]
        %v1047 = vld [vmem:[#allocation3 + $0x358] sm:$0xff]
        %v1048 = vld [vmem:[#allocation3 + $0x360] sm:$0xff]
        %v1049 = vld [vmem:[#allocation3 + $0x368] sm:$0xff]
        %v1050 = vld [vmem:[#allocation3 + $0x370] sm:$0xff]
        %v1051 = vld [vmem:[#allocation3 + $0x378] sm:$0xff]
        %v1052 = vld [vmem:[#allocation3 + $0x380] sm:$0xff]
        %v1053 = vld [vmem:[#allocation3 + $0x388] sm:$0xff]
        %v1054 = vld [vmem:[#allocation3 + $0x390] sm:$0xff]
        %v1055 = vld [vmem:[#allocation3 + $0x398] sm:$0xff]
        %v1056 = vld [vmem:[#allocation3 + $0x3a0] sm:$0xff]
        %v1057 = vld [vmem:[#allocation3 + $0x3a8] sm:$0xff]
        %v1058 = vld [vmem:[#allocation3 + $0x3b0] sm:$0xff]
        %v1059 = vld [vmem:[#allocation3 + $0x3b8] sm:$0xff]
        %v1060 = vld [vmem:[#allocation3 + $0x3c0] sm:$0xff]
        %v1061 = vld [vmem:[#allocation3 + $0x3c8] sm:$0xff]
        %v1062 = vld [vmem:[#allocation3 + $0x3d0] sm:$0xff]
        %v1063 = vld [vmem:[#allocation3 + $0x3d8] sm:$0xff]
        %v1064 = vld [vmem:[#allocation3 + $0x3e0] sm:$0xff]
        %v1065 = vld [vmem:[#allocation3 + $0x3e8] sm:$0xff]
        %v1066 = vld [vmem:[#allocation3 + $0x3f0] sm:$0xff]
        %v1067 = vld [vmem:[#allocation3 + $0x3f8] sm:$0xff]
        %v1068 = vld [vmem:[#allocation3 + $0x400] sm:$0xff]
        %v1069 = vld [vmem:[#allocation3 + $0x408] sm:$0xff]
        %v1070 = vld [vmem:[#allocation3 + $0x410] sm:$0xff]
        %v1071 = vld [vmem:[#allocation3 + $0x418] sm:$0xff]
        %v1072 = vld [vmem:[#allocation3 + $0x420] sm:$0xff]
        %v1073 = vld [vmem:[#allocation3 + $0x428] sm:$0xff]
        %v1074 = vld [vmem:[#allocation3 + $0x430] sm:$0xff]
        %v1075 = vld [vmem:[#allocation3 + $0x438] sm:$0xff]
        %v1076 = vld [vmem:[#allocation3 + $0x440] sm:$0xff]
        %v1077 = vld [vmem:[#allocation3 + $0x448] sm:$0xff]
        %v1078 = vld [vmem:[#allocation3 + $0x450] sm:$0xff]
        %v1079 = vld [vmem:[#allocation3 + $0x458] sm:$0xff]
        %v1080 = vld [vmem:[#allocation3 + $0x460] sm:$0xff]
        %v1081 = vld [vmem:[#allocation3 + $0x468] sm:$0xff]
        %v1082 = vld [vmem:[#allocation3 + $0x470] sm:$0xff]
        %v1083 = vld [vmem:[#allocation3 + $0x478] sm:$0xff]
        %v1084 = vld [vmem:[#allocation3 + $0x480] sm:$0xff]
        %v1085 = vld [vmem:[#allocation3 + $0x488] sm:$0xff]
        %v1086 = vld [vmem:[#allocation3 + $0x490] sm:$0xff]
        %v1087 = vld [vmem:[#allocation3 + $0x498] sm:$0xff]
        %v1088 = vld [vmem:[#allocation3 + $0x4a0] sm:$0xff]
        %v1089 = vld [vmem:[#allocation3 + $0x4a8] sm:$0xff]
        %v1090 = vld [vmem:[#allocation3 + $0x4b0] sm:$0xff]
        %v1091 = vld [vmem:[#allocation3 + $0x4b8] sm:$0xff]
        %v1092 = vld [vmem:[#allocation3 + $0x4c0] sm:$0xff]
        %v1093 = vld [vmem:[#allocation3 + $0x4c8] sm:$0xff]
        %v1094 = vld [vmem:[#allocation3 + $0x4d0] sm:$0xff]
        %v1095 = vld [vmem:[#allocation3 + $0x4d8] sm:$0xff]
        %v1096 = vld [vmem:[#allocation3 + $0x4e0] sm:$0xff]
        %v1097 = vld [vmem:[#allocation3 + $0x4e8] sm:$0xff]
        %v1098 = vld [vmem:[#allocation3 + $0x4f0] sm:$0xff]
        %v1099 = vld [vmem:[#allocation3 + $0x4f8] sm:$0xff]
        %v1100 = vld [vmem:[#allocation3 + $0x500] sm:$0xff]
        %v1101 = vld [vmem:[#allocation3 + $0x508] sm:$0xff]
        %v1102 = vld [vmem:[#allocation3 + $0x510] sm:$0xff]
        %v1103 = vld [vmem:[#allocation3 + $0x518] sm:$0xff]
        %v1104 = vld [vmem:[#allocation3 + $0x520] sm:$0xff]
        %v1105 = vld [vmem:[#allocation3 + $0x528] sm:$0xff]
        %v1106 = vld [vmem:[#allocation3 + $0x530] sm:$0xff]
        %v1107 = vld [vmem:[#allocation3 + $0x538] sm:$0xff]
        %v1108 = vld [vmem:[#allocation3 + $0x540] sm:$0xff]
        %v1109 = vld [vmem:[#allocation3 + $0x548] sm:$0xff]
        %v1110 = vld [vmem:[#allocation3 + $0x550] sm:$0xff]
        %v1111 = vld [vmem:[#allocation3 + $0x558] sm:$0xff]
        %v1112 = vld [vmem:[#allocation3 + $0x560] sm:$0xff]
        %v1113 = vld [vmem:[#allocation3 + $0x568] sm:$0xff]
        %v1114 = vld [vmem:[#allocation3 + $0x570] sm:$0xff]
        %v1115 = vld [vmem:[#allocation3 + $0x578] sm:$0xff]
        %v1116 = vld [vmem:[#allocation3 + $0x580] sm:$0xff]
        %v1117 = vld [vmem:[#allocation3 + $0x588] sm:$0xff]
        %v1118 = vld [vmem:[#allocation3 + $0x590] sm:$0xff]
        %v1119 = vld [vmem:[#allocation3 + $0x598] sm:$0xff]
        %v1120 = vld [vmem:[#allocation3 + $0x5a0] sm:$0xff]
        %v1121 = vld [vmem:[#allocation3 + $0x5a8] sm:$0xff]
        %v1122 = vld [vmem:[#allocation3 + $0x5b0] sm:$0xff]
        %v1123 = vld [vmem:[#allocation3 + $0x5b8] sm:$0xff]
        %v1124 = vld [vmem:[#allocation3 + $0x5c0] sm:$0xff]
        %v1125 = vld [vmem:[#allocation3 + $0x5c8] sm:$0xff]
        %v1126 = vld [vmem:[#allocation3 + $0x5d0] sm:$0xff]
        %v1127 = vld [vmem:[#allocation3 + $0x5d8] sm:$0xff]
        %v1128 = vld [vmem:[#allocation3 + $0x5e0] sm:$0xff]
        %v1129 = vld [vmem:[#allocation3 + $0x5e8] sm:$0xff]
        %v1130 = vld [vmem:[#allocation3 + $0x5f0] sm:$0xff]
        %v1131 = vld [vmem:[#allocation3 + $0x5f8] sm:$0xff]
        %v1132 = vld [vmem:[#allocation3 + $0x600] sm:$0xff]
        %v1133 = vld [vmem:[#allocation3 + $0x608] sm:$0xff]
        %v1134 = vld [vmem:[#allocation3 + $0x610] sm:$0xff]
        %v1135 = vld [vmem:[#allocation3 + $0x618] sm:$0xff]
        %v1136 = vld [vmem:[#allocation3 + $0x620] sm:$0xff]
        %v1137 = vld [vmem:[#allocation3 + $0x628] sm:$0xff]
        %v1138 = vld [vmem:[#allocation3 + $0x630] sm:$0xff]
        %v1139 = vld [vmem:[#allocation3 + $0x638] sm:$0xff]
        %v1140 = vld [vmem:[#allocation3 + $0x640] sm:$0xff]
        %v1141 = vld [vmem:[#allocation3 + $0x648] sm:$0xff]
        %v1142 = vld [vmem:[#allocation3 + $0x650] sm:$0xff]
        %v1143 = vld [vmem:[#allocation3 + $0x658] sm:$0xff]
        %v1144 = vld [vmem:[#allocation3 + $0x660] sm:$0xff]
        %v1145 = vld [vmem:[#allocation3 + $0x668] sm:$0xff]
        %v1146 = vld [vmem:[#allocation3 + $0x670] sm:$0xff]
        %v1147 = vld [vmem:[#allocation3 + $0x678] sm:$0xff]
        %v1148 = vld [vmem:[#allocation3 + $0x680] sm:$0xff]
        %v1149 = vld [vmem:[#allocation3 + $0x688] sm:$0xff]
        %v1150 = vld [vmem:[#allocation3 + $0x690] sm:$0xff]
        %v1151 = vld [vmem:[#allocation3 + $0x698] sm:$0xff]
        %v1152 = vld [vmem:[#allocation3 + $0x6a0] sm:$0xff]
        %v1153 = vld [vmem:[#allocation3 + $0x6a8] sm:$0xff]
        %v1154 = vld [vmem:[#allocation3 + $0x6b0] sm:$0xff]
        %v1155 = vld [vmem:[#allocation3 + $0x6b8] sm:$0xff]
        %v1156 = vld [vmem:[#allocation7] sm:$0xf]
        %v1157 = vld [vmem:[#allocation7 + $0x4] sm:$0xf]
        %v1158 = vld [vmem:[#allocation7 + $0x8] sm:$0xf]
        %v1159 = vld [vmem:[#allocation7 + $0xc] sm:$0xf]
        %v1160 = vld [vmem:[#allocation7 + $0x10] sm:$0xf]
        %v1161 = vld [vmem:[#allocation7 + $0x14] sm:$0xf]
        %v1162 = vld [vmem:[#allocation7 + $0x18] sm:$0xf]
        %v1163 = vld [vmem:[#allocation7 + $0x1c] sm:$0xf]
        %v1164 = vld [vmem:[#allocation7 + $0x20] sm:$0xf]
        %v1165 = vld [vmem:[#allocation7 + $0x24] sm:$0xf]
        %v1166 = vld [vmem:[#allocation7 + $0x28] sm:$0xf]
        %v1167 = vld [vmem:[#allocation7 + $0x2c] sm:$0xf]
        %v1168 = vld [vmem:[#allocation7 + $0x30] sm:$0xf]
        %v1169 = vld [vmem:[#allocation7 + $0x34] sm:$0xf]
        %v1170 = vld [vmem:[#allocation7 + $0x38] sm:$0xf]
        %v1171 = vld [vmem:[#allocation7 + $0x3c] sm:$0xf]
        %v1172 = vld [vmem:[#allocation7 + $0x40] sm:$0xf]
        %v1173 = vld [vmem:[#allocation7 + $0x44] sm:$0xf]
        %v1174 = vld [vmem:[#allocation7 + $0x48] sm:$0xf]
        %v1175 = vld [vmem:[#allocation7 + $0x4c] sm:$0xf]
        %v1176 = vld [vmem:[#allocation7 + $0x50] sm:$0xf]
        %v1177 = vld [vmem:[#allocation7 + $0x54] sm:$0xf]
        %v1178 = vld [vmem:[#allocation7 + $0x58] sm:$0xf]
        %v1179 = vld [vmem:[#allocation7 + $0x5c] sm:$0xf]
        %v1180 = vld [vmem:[#allocation7 + $0x60] sm:$0xf]
        %v1181 = vld [vmem:[#allocation7 + $0x64] sm:$0xf]
        %v1182 = vld [vmem:[#allocation7 + $0x68] sm:$0xf]
        %v1183 = vld [vmem:[#allocation7 + $0x6c] sm:$0xf]
        %v1184 = vld [vmem:[#allocation7 + $0x70] sm:$0xf]
        %v1185 = vld [vmem:[#allocation7 + $0x74] sm:$0xf]
        %v1186 = vld [vmem:[#allocation7 + $0x78] sm:$0xf]
        %v1187 = vld [vmem:[#allocation7 + $0x7c] sm:$0xf]
        %v1188 = vld [vmem:[#allocation7 + $0x80] sm:$0xf]
        %v1189 = vld [vmem:[#allocation7 + $0x84] sm:$0xf]
        %v1190 = vld [vmem:[#allocation7 + $0x88] sm:$0xf]
        %v1191 = vld [vmem:[#allocation7 + $0x8c] sm:$0xf]
        %v1192 = vld [vmem:[#allocation7 + $0x90] sm:$0xf]
        %v1193 = vld [vmem:[#allocation7 + $0x94] sm:$0xf]
        %v1194 = vld [vmem:[#allocation7 + $0x98] sm:$0xf]
        %v1195 = vld [vmem:[#allocation7 + $0x9c] sm:$0xf]
        %v1196 = vld [vmem:[#allocation7 + $0xa0] sm:$0xf]
        %v1197 = vld [vmem:[#allocation7 + $0xa4] sm:$0xf]
        %v1198 = vld [vmem:[#allocation7 + $0xa8] sm:$0xf]
        %v1199 = vld [vmem:[#allocation7 + $0xac] sm:$0xf]
        %v1200 = vld [vmem:[#allocation7 + $0xb0] sm:$0xf]
        %v1201 = vld [vmem:[#allocation7 + $0xb4] sm:$0xf]
        %v1202 = vld [vmem:[#allocation7 + $0xb8] sm:$0xf]
        %v1203 = vld [vmem:[#allocation7 + $0xbc] sm:$0xf]
        %v1204 = vld [vmem:[#allocation7 + $0xc0] sm:$0xf]
        %v1205 = vld [vmem:[#allocation7 + $0xc4] sm:$0xf]
        %v1206 = vld [vmem:[#allocation7 + $0xc8] sm:$0xf]
        %v1207 = vld [vmem:[#allocation7 + $0xcc] sm:$0xf]
        %v1208 = vld [vmem:[#allocation7 + $0xd0] sm:$0xf]
        %v1209 = vld [vmem:[#allocation7 + $0xd4] sm:$0xf]
        %v1210 = vld [vmem:[#allocation7 + $0xd8] sm:$0xf]
        %v1211 = vld [vmem:[#allocation7 + $0xdc] sm:$0xf]
        %v1212 = vld [vmem:[#allocation7 + $0xe0] sm:$0xf]
        %v1213 = vld [vmem:[#allocation7 + $0xe4] sm:$0xf]
        %v1214 = vld [vmem:[#allocation7 + $0xe8] sm:$0xf]
        %v1215 = vld [vmem:[#allocation7 + $0xec] sm:$0xf]
        %v1216 = vld [vmem:[#allocation7 + $0xf0] sm:$0xf]
        %v1217 = vld [vmem:[#allocation7 + $0xf4] sm:$0xf]
        %v1218 = vld [vmem:[#allocation7 + $0xf8] sm:$0xf]
        %v1219 = vld [vmem:[#allocation7 + $0xfc] sm:$0xf]
        %v1220 = vld [vmem:[#allocation7 + $0x100] sm:$0xf]
        %v1221 = vld [vmem:[#allocation7 + $0x104] sm:$0xf]
        %v1222 = vld [vmem:[#allocation7 + $0x108] sm:$0xf]
        %v1223 = vld [vmem:[#allocation7 + $0x10c] sm:$0xf]
        %v1224 = vld [vmem:[#allocation7 + $0x110] sm:$0xf]
        %v1225 = vld [vmem:[#allocation7 + $0x114] sm:$0xf]
        %v1226 = vld [vmem:[#allocation7 + $0x118] sm:$0xf]
        %v1227 = vld [vmem:[#allocation7 + $0x11c] sm:$0xf]
        %v1228 = vld [vmem:[#allocation7 + $0x120] sm:$0xf]
        %v1229 = vld [vmem:[#allocation7 + $0x124] sm:$0xf]
        %v1230 = vld [vmem:[#allocation7 + $0x128] sm:$0xf]
        %v1231 = vld [vmem:[#allocation7 + $0x12c] sm:$0xf]
        %v1232 = vld [vmem:[#allocation7 + $0x130] sm:$0xf]
        %v1233 = vld [vmem:[#allocation7 + $0x134] sm:$0xf]
        %v1234 = vld [vmem:[#allocation7 + $0x138] sm:$0xf]
        %v1235 = vld [vmem:[#allocation7 + $0x13c] sm:$0xf]
        %v1236 = vld [vmem:[#allocation7 + $0x140] sm:$0xf]
        %v1237 = vld [vmem:[#allocation7 + $0x144] sm:$0xf]
        %v1238 = vld [vmem:[#allocation7 + $0x148] sm:$0xf]
        %v1239 = vld [vmem:[#allocation7 + $0x14c] sm:$0xf]
        %v1240 = vld [vmem:[#allocation7 + $0x150] sm:$0xf]
        %v1241 = vld [vmem:[#allocation7 + $0x154] sm:$0xf]
        %v1242 = vld [vmem:[#allocation7 + $0x158] sm:$0xf]
        %v1243 = vld [vmem:[#allocation7 + $0x15c] sm:$0xf]
        %v1244 = vld [vmem:[#allocation7 + $0x160] sm:$0xf]
        %v1245 = vld [vmem:[#allocation7 + $0x164] sm:$0xf]
        %v1246 = vld [vmem:[#allocation7 + $0x168] sm:$0xf]
        %v1247 = vld [vmem:[#allocation7 + $0x16c] sm:$0xf]
        %v1248 = vld [vmem:[#allocation7 + $0x170] sm:$0xf]
        %v1249 = vld [vmem:[#allocation7 + $0x174] sm:$0xf]
        %v1250 = vld [vmem:[#allocation7 + $0x178] sm:$0xf]
        %v1251 = vld [vmem:[#allocation7 + $0x17c] sm:$0xf]
        %v1252 = vld [vmem:[#allocation7 + $0x180] sm:$0xf]
        %v1253 = vld [vmem:[#allocation7 + $0x184] sm:$0xf]
        %v1254 = vld [vmem:[#allocation7 + $0x188] sm:$0xf]
        %v1255 = vld [vmem:[#allocation7 + $0x18c] sm:$0xf]
        %v1256 = vld [vmem:[#allocation7 + $0x190] sm:$0xf]
        %v1257 = vld [vmem:[#allocation7 + $0x194] sm:$0xf]
        %v1258 = vld [vmem:[#allocation7 + $0x198] sm:$0xf]
        %v1259 = vld [vmem:[#allocation7 + $0x19c] sm:$0xf]
        %v1260 = vld [vmem:[#allocation7 + $0x1a0] sm:$0xf]
        %v1261 = vld [vmem:[#allocation7 + $0x1a4] sm:$0xf]
        %v1262 = vld [vmem:[#allocation7 + $0x1a8] sm:$0xf]
        %v1263 = vld [vmem:[#allocation7 + $0x1ac] sm:$0xf]
        %v1264 = vld [vmem:[#allocation7 + $0x1b0] sm:$0xf]
        %v1265 = vld [vmem:[#allocation7 + $0x1b4] sm:$0xf]
        %v1266 = vld [vmem:[#allocation7 + $0x1b8] sm:$0xf]
        %v1267 = vld [vmem:[#allocation7 + $0x1bc] sm:$0xf]
        %v1268 = vld [vmem:[#allocation7 + $0x1c0] sm:$0xf]
        %v1269 = vld [vmem:[#allocation7 + $0x1c4] sm:$0xf]
        %v1270 = vld [vmem:[#allocation7 + $0x1c8] sm:$0xf]
        %v1271 = vld [vmem:[#allocation7 + $0x1cc] sm:$0xf]
        %v1272 = vld [vmem:[#allocation7 + $0x1d0] sm:$0xf]
        %v1273 = vld [vmem:[#allocation7 + $0x1d4] sm:$0xf]
        %v1274 = vld [vmem:[#allocation7 + $0x1d8] sm:$0xf]
        %v1275 = vld [vmem:[#allocation7 + $0x1dc] sm:$0xf]
        %v1276 = vld [vmem:[#allocation7 + $0x1e0] sm:$0xf]
        %v1277 = vld [vmem:[#allocation7 + $0x1e4] sm:$0xf]
        %v1278 = vld [vmem:[#allocation7 + $0x1e8] sm:$0xf]
        %v1279 = vld [vmem:[#allocation7 + $0x1ec] sm:$0xf]
        %v1280 = vld [vmem:[#allocation7 + $0x1f0] sm:$0xf]
        %v1281 = vld [vmem:[#allocation7 + $0x1f4] sm:$0xf]
        %v1282 = vld [vmem:[#allocation7 + $0x1f8] sm:$0xf]
        %v1283 = vld [vmem:[#allocation7 + $0x1fc] sm:$0xf]
        %v1284 = vld [vmem:[#allocation7 + $0x200] sm:$0xf]
        %v1285 = vld [vmem:[#allocation7 + $0x204] sm:$0xf]
        %v1286 = vld [vmem:[#allocation7 + $0x208] sm:$0xf]
        %v1287 = vld [vmem:[#allocation7 + $0x20c] sm:$0xf]
        %v1288 = vld [vmem:[#allocation7 + $0x210] sm:$0xf]
        %v1289 = vld [vmem:[#allocation7 + $0x214] sm:$0xf]
        %v1290 = vld [vmem:[#allocation7 + $0x218] sm:$0xf]
        %v1291 = vld [vmem:[#allocation7 + $0x21c] sm:$0xf]
        %v1292 = vld [vmem:[#allocation7 + $0x220] sm:$0xf]
        %v1293 = vld [vmem:[#allocation7 + $0x224] sm:$0xf]
        %v1294 = vld [vmem:[#allocation7 + $0x228] sm:$0xf]
        %v1295 = vld [vmem:[#allocation7 + $0x22c] sm:$0xf]
        %v1296 = vld [vmem:[#allocation7 + $0x230] sm:$0xf]
        %v1297 = vld [vmem:[#allocation7 + $0x234] sm:$0xf]
        %v1298 = vld [vmem:[#allocation7 + $0x238] sm:$0xf]
        %v1299 = vld [vmem:[#allocation7 + $0x23c] sm:$0xf]
        %v1444 = vunpack.c.l.b16 %v1156
        %v1445 = vunpack.c.l.b16 %v1157
        %v1446 = vunpack.c.l.b16 %v1158
        %v1447 = vunpack.c.l.b16 %v1159
        %v1448 = vunpack.c.l.b16 %v1160
        %v1449 = vunpack.c.l.b16 %v1161
        %v1450 = vunpack.c.l.b16 %v1162
        %v1451 = vunpack.c.l.b16 %v1163
        %v1452 = vunpack.c.l.b16 %v1164
        %v1453 = vunpack.c.l.b16 %v1165
        %v1454 = vunpack.c.l.b16 %v1166
        %v1455 = vunpack.c.l.b16 %v1167
        %v1456 = vunpack.c.l.b16 %v1168
        %v1457 = vunpack.c.l.b16 %v1169
        %v1458 = vunpack.c.l.b16 %v1170
        %v1459 = vunpack.c.l.b16 %v1171
        %v1460 = vunpack.c.l.b16 %v1172
        %v1461 = vunpack.c.l.b16 %v1173
        %v1462 = vunpack.c.l.b16 %v1174
        %v1463 = vunpack.c.l.b16 %v1175
        %v1464 = vunpack.c.l.b16 %v1176
        %v1465 = vunpack.c.l.b16 %v1177
        %v1466 = vunpack.c.l.b16 %v1178
        %v1467 = vunpack.c.l.b16 %v1179
        %v1468 = vunpack.c.l.b16 %v1180
        %v1469 = vunpack.c.l.b16 %v1181
        %v1470 = vunpack.c.l.b16 %v1182
        %v1471 = vunpack.c.l.b16 %v1183
        %v1472 = vunpack.c.l.b16 %v1184
        %v1473 = vunpack.c.l.b16 %v1185
        %v1474 = vunpack.c.l.b16 %v1186
        %v1475 = vunpack.c.l.b16 %v1187
        %v1476 = vunpack.c.l.b16 %v1188
        %v1477 = vunpack.c.l.b16 %v1189
        %v1478 = vunpack.c.l.b16 %v1190
        %v1479 = vunpack.c.l.b16 %v1191
        %v1480 = vunpack.c.l.b16 %v1192
        %v1481 = vunpack.c.l.b16 %v1193
        %v1482 = vunpack.c.l.b16 %v1194
        %v1483 = vunpack.c.l.b16 %v1195
        %v1484 = vunpack.c.l.b16 %v1196
        %v1485 = vunpack.c.l.b16 %v1197
        %v1486 = vunpack.c.l.b16 %v1198
        %v1487 = vunpack.c.l.b16 %v1199
        %v1488 = vunpack.c.l.b16 %v1200
        %v1489 = vunpack.c.l.b16 %v1201
        %v1490 = vunpack.c.l.b16 %v1202
        %v1491 = vunpack.c.l.b16 %v1203
        %v1492 = vunpack.c.l.b16 %v1204
        %v1493 = vunpack.c.l.b16 %v1205
        %v1494 = vunpack.c.l.b16 %v1206
        %v1495 = vunpack.c.l.b16 %v1207
        %v1496 = vunpack.c.l.b16 %v1208
        %v1497 = vunpack.c.l.b16 %v1209
        %v1498 = vunpack.c.l.b16 %v1210
        %v1499 = vunpack.c.l.b16 %v1211
        %v1500 = vunpack.c.l.b16 %v1212
        %v1501 = vunpack.c.l.b16 %v1213
        %v1502 = vunpack.c.l.b16 %v1214
        %v1503 = vunpack.c.l.b16 %v1215
        %v1504 = vunpack.c.l.b16 %v1216
        %v1505 = vunpack.c.l.b16 %v1217
        %v1506 = vunpack.c.l.b16 %v1218
        %v1507 = vunpack.c.l.b16 %v1219
        %v1508 = vunpack.c.l.b16 %v1220
        %v1509 = vunpack.c.l.b16 %v1221
        %v1510 = vunpack.c.l.b16 %v1222
        %v1511 = vunpack.c.l.b16 %v1223
        %v1512 = vunpack.c.l.b16 %v1224
        %v1513 = vunpack.c.l.b16 %v1225
        %v1514 = vunpack.c.l.b16 %v1226
        %v1515 = vunpack.c.l.b16 %v1227
        %v1516 = vunpack.c.l.b16 %v1228
        %v1517 = vunpack.c.l.b16 %v1229
        %v1518 = vunpack.c.l.b16 %v1230
        %v1519 = vunpack.c.l.b16 %v1231
        %v1520 = vunpack.c.l.b16 %v1232
        %v1521 = vunpack.c.l.b16 %v1233
        %v1522 = vunpack.c.l.b16 %v1234
        %v1523 = vunpack.c.l.b16 %v1235
        %v1524 = vunpack.c.l.b16 %v1236
        %v1525 = vunpack.c.l.b16 %v1237
        %v1526 = vunpack.c.l.b16 %v1238
        %v1527 = vunpack.c.l.b16 %v1239
        %v1528 = vunpack.c.l.b16 %v1240
        %v1529 = vunpack.c.l.b16 %v1241
        %v1530 = vunpack.c.l.b16 %v1242
        %v1531 = vunpack.c.l.b16 %v1243
        %v1532 = vunpack.c.l.b16 %v1244
        %v1533 = vunpack.c.l.b16 %v1245
        %v1534 = vunpack.c.l.b16 %v1246
        %v1535 = vunpack.c.l.b16 %v1247
        %v1536 = vunpack.c.l.b16 %v1248
        %v1537 = vunpack.c.l.b16 %v1249
        %v1538 = vunpack.c.l.b16 %v1250
        %v1539 = vunpack.c.l.b16 %v1251
        %v1540 = vunpack.c.l.b16 %v1252
        %v1541 = vunpack.c.l.b16 %v1253
        %v1542 = vunpack.c.l.b16 %v1254
        %v1543 = vunpack.c.l.b16 %v1255
        %v1544 = vunpack.c.l.b16 %v1256
        %v1545 = vunpack.c.l.b16 %v1257
        %v1546 = vunpack.c.l.b16 %v1258
        %v1547 = vunpack.c.l.b16 %v1259
        %v1548 = vunpack.c.l.b16 %v1260
        %v1549 = vunpack.c.l.b16 %v1261
        %v1550 = vunpack.c.l.b16 %v1262
        %v1551 = vunpack.c.l.b16 %v1263
        %v1552 = vunpack.c.l.b16 %v1264
        %v1553 = vunpack.c.l.b16 %v1265
        %v1554 = vunpack.c.l.b16 %v1266
        %v1555 = vunpack.c.l.b16 %v1267
        %v1556 = vunpack.c.l.b16 %v1268
        %v1557 = vunpack.c.l.b16 %v1269
        %v1558 = vunpack.c.l.b16 %v1270
        %v1559 = vunpack.c.l.b16 %v1271
        %v1560 = vunpack.c.l.b16 %v1272
        %v1561 = vunpack.c.l.b16 %v1273
        %v1562 = vunpack.c.l.b16 %v1274
        %v1563 = vunpack.c.l.b16 %v1275
        %v1564 = vunpack.c.l.b16 %v1276
        %v1565 = vunpack.c.l.b16 %v1277
        %v1566 = vunpack.c.l.b16 %v1278
        %v1567 = vunpack.c.l.b16 %v1279
        %v1568 = vunpack.c.l.b16 %v1280
        %v1569 = vunpack.c.l.b16 %v1281
        %v1570 = vunpack.c.l.b16 %v1282
        %v1571 = vunpack.c.l.b16 %v1283
        %v1572 = vunpack.c.l.b16 %v1284
        %v1573 = vunpack.c.l.b16 %v1285
        %v1574 = vunpack.c.l.b16 %v1286
        %v1575 = vunpack.c.l.b16 %v1287
        %v1576 = vunpack.c.l.b16 %v1288
        %v1577 = vunpack.c.l.b16 %v1289
        %v1578 = vunpack.c.l.b16 %v1290
        %v1579 = vunpack.c.l.b16 %v1291
        %v1580 = vunpack.c.l.b16 %v1292
        %v1581 = vunpack.c.l.b16 %v1293
        %v1582 = vunpack.c.l.b16 %v1294
        %v1583 = vunpack.c.l.b16 %v1295
        %v1584 = vunpack.c.l.b16 %v1296
        %v1585 = vunpack.c.l.b16 %v1297
        %v1586 = vunpack.c.l.b16 %v1298
        %v1587 = vunpack.c.l.b16 %v1299
        %v1588 = vpack.c.b16 %v1445, %v1444
        %v1589 = vpack.c.b16 %v1447, %v1446
        %v1590 = vpack.c.b16 %v1449, %v1448
        %v1591 = vpack.c.b16 %v1451, %v1450
        %v1592 = vpack.c.b16 %v1453, %v1452
        %v1593 = vpack.c.b16 %v1455, %v1454
        %v1594 = vpack.c.b16 %v1457, %v1456
        %v1595 = vpack.c.b16 %v1459, %v1458
        %v1596 = vpack.c.b16 %v1461, %v1460
        %v1597 = vpack.c.b16 %v1463, %v1462
        %v1598 = vpack.c.b16 %v1465, %v1464
        %v1599 = vpack.c.b16 %v1467, %v1466
        %v1600 = vpack.c.b16 %v1469, %v1468
        %v1601 = vpack.c.b16 %v1471, %v1470
        %v1602 = vpack.c.b16 %v1473, %v1472
        %v1603 = vpack.c.b16 %v1475, %v1474
        %v1604 = vpack.c.b16 %v1477, %v1476
        %v1605 = vpack.c.b16 %v1479, %v1478
        %v1606 = vpack.c.b16 %v1481, %v1480
        %v1607 = vpack.c.b16 %v1483, %v1482
        %v1608 = vpack.c.b16 %v1485, %v1484
        %v1609 = vpack.c.b16 %v1487, %v1486
        %v1610 = vpack.c.b16 %v1489, %v1488
        %v1611 = vpack.c.b16 %v1491, %v1490
        %v1612 = vpack.c.b16 %v1493, %v1492
        %v1613 = vpack.c.b16 %v1495, %v1494
        %v1614 = vpack.c.b16 %v1497, %v1496
        %v1615 = vpack.c.b16 %v1499, %v1498
        %v1616 = vpack.c.b16 %v1501, %v1500
        %v1617 = vpack.c.b16 %v1503, %v1502
        %v1618 = vpack.c.b16 %v1505, %v1504
        %v1619 = vpack.c.b16 %v1507, %v1506
        %v1620 = vpack.c.b16 %v1509, %v1508
        %v1621 = vpack.c.b16 %v1511, %v1510
        %v1622 = vpack.c.b16 %v1513, %v1512
        %v1623 = vpack.c.b16 %v1515, %v1514
        %v1624 = vpack.c.b16 %v1517, %v1516
        %v1625 = vpack.c.b16 %v1519, %v1518
        %v1626 = vpack.c.b16 %v1521, %v1520
        %v1627 = vpack.c.b16 %v1523, %v1522
        %v1628 = vpack.c.b16 %v1525, %v1524
        %v1629 = vpack.c.b16 %v1527, %v1526
        %v1630 = vpack.c.b16 %v1529, %v1528
        %v1631 = vpack.c.b16 %v1531, %v1530
        %v1632 = vpack.c.b16 %v1533, %v1532
        %v1633 = vpack.c.b16 %v1535, %v1534
        %v1634 = vpack.c.b16 %v1537, %v1536
        %v1635 = vpack.c.b16 %v1539, %v1538
        %v1636 = vpack.c.b16 %v1541, %v1540
        %v1637 = vpack.c.b16 %v1543, %v1542
        %v1638 = vpack.c.b16 %v1545, %v1544
        %v1639 = vpack.c.b16 %v1547, %v1546
        %v1640 = vpack.c.b16 %v1549, %v1548
        %v1641 = vpack.c.b16 %v1551, %v1550
        %v1642 = vpack.c.b16 %v1553, %v1552
        %v1643 = vpack.c.b16 %v1555, %v1554
        %v1644 = vpack.c.b16 %v1557, %v1556
        %v1645 = vpack.c.b16 %v1559, %v1558
        %v1646 = vpack.c.b16 %v1561, %v1560
        %v1647 = vpack.c.b16 %v1563, %v1562
        %v1648 = vpack.c.b16 %v1565, %v1564
        %v1649 = vpack.c.b16 %v1567, %v1566
        %v1650 = vpack.c.b16 %v1569, %v1568
        %v1651 = vpack.c.b16 %v1571, %v1570
        %v1652 = vpack.c.b16 %v1573, %v1572
        %v1653 = vpack.c.b16 %v1575, %v1574
        %v1654 = vpack.c.b16 %v1577, %v1576
        %v1655 = vpack.c.b16 %v1579, %v1578
        %v1656 = vpack.c.b16 %v1581, %v1580
        %v1657 = vpack.c.b16 %v1583, %v1582
        %v1658 = vpack.c.b16 %v1585, %v1584
        %v1659 = vpack.c.b16 %v1587, %v1586
        %1732 = vmatprep.subr.bf16.mxu0 0
        %1733 = vmatpush1.bf16.msra.mxu0 %v1588
        %1734 = vmatprep.subr.bf16.mxu0 0
        %1735 = vmatpush1.bf16.msra.mxu0 %v1589
        %1736 = vmatprep.subr.bf16.mxu0 0
        %1737 = vmatpush1.bf16.msra.mxu0 %v1590
        %1738 = vmatprep.subr.bf16.mxu0 0
        %1739 = vmatpush1.bf16.msra.mxu0 %v1591
        %1740 = vmatprep.subr.bf16.mxu0 0
        %1741 = vmatpush1.bf16.msra.mxu0 %v1592
        %1742 = vmatprep.subr.bf16.mxu0 0
        %1743 = vmatpush1.bf16.msra.mxu0 %v1593
        %1744 = vmatprep.subr.bf16.mxu0 0
        %1745 = vmatpush1.bf16.msra.mxu0 %v1594
        %1746 = vmatprep.subr.bf16.mxu0 0
        %1747 = vmatpush1.bf16.msra.mxu0 %v1595
        %1748 = vmatprep.subr.bf16.mxu0 0
        %1749 = vmatpush1.bf16.msra.mxu0 %v1596
        %1750 = vmatprep.subr.bf16.mxu0 0
        %1751 = vmatpush1.bf16.msra.mxu0 %v1597
        %1752 = vmatprep.subr.bf16.mxu0 0
        %1753 = vmatpush1.bf16.msra.mxu0 %v1598
        %1754 = vmatprep.subr.bf16.mxu0 0
        %1755 = vmatpush1.bf16.msra.mxu0 %v1599
        %1756 = vmatprep.subr.bf16.mxu0 0
        %1757 = vmatpush1.bf16.msra.mxu0 %v1600
        %1758 = vmatprep.subr.bf16.mxu0 0
        %1759 = vmatpush1.bf16.msra.mxu0 %v1601
        %1760 = vmatprep.subr.bf16.mxu0 0
        %1761 = vmatpush1.bf16.msra.mxu0 %v1602
        %1762 = vmatprep.subr.bf16.mxu0 0
        %1763 = vmatpush1.bf16.msra.mxu0 %v1603
        %1764 = vmatprep.mubr.bf16.mxu0 %v941
        %1765 = vmatmul.mubr.bf16.gmra.mrb[0].mxu0 %v940
        %v1766 = vpop.f32.mrb[0].mxu0
        %v1767 = vadd.f32 0.0, %v1766
        %v1768 = vpop.f32.mrb[0].mxu0
        %v1769 = vpop.f32.mrb[0].mxu0
        %v1770 = vadd.f32 0.0, %v1769
        %v1771 = vpop.f32.mrb[0].mxu0
        %1772 = vmatprep.mubr.bf16.mxu0 %v950
        %1773 = vmatmul.mubr.bf16.gmra.mrb[0].mxu0 %v949
        %v1774 = vpop.f32.mrb[0].mxu0
        %v1775 = vpop.f32.mrb[0].mxu0
        %v1776 = vpop.f32.mrb[0].mxu0
        %v1777 = vadd.f32 0.0, %v1776
        %v1778 = vpop.f32.mrb[0].mxu0
        %1779 = vmatprep.mubr.bf16.mxu0 %v959
        %1780 = vmatmul.mubr.bf16.gmra.mrb[0].mxu0 %v958
        %v1781 = vpop.f32.mrb[0].mxu0
        %v1782 = vadd.f32 0.0, %v1781
        %v1783 = vpop.f32.mrb[0].mxu0
        %v1784 = vpop.f32.mrb[0].mxu0
        %v1785 = vpop.f32.mrb[0].mxu0
        %1786 = vmatprep.mubr.bf16.mxu0 %v968
        %1787 = vmatmul.mubr.bf16.gmra.mrb[0].mxu0 %v967
        %v1788 = vpop.f32.mrb[0].mxu0
        %v1789 = vadd.f32 0.0, %v1788
        %v1790 = vpop.f32.mrb[0].mxu0
        %v1791 = vpop.f32.mrb[0].mxu0
        %v1792 = vadd.f32 0.0, %v1791
        %v1793 = vpop.f32.mrb[0].mxu0
        %1794 = vmatprep.mubr.bf16.mxu0 %v977
        %1795 = vmatmul.mubr.bf16.gmra.mrb[0].mxu0 %v976
        %v1796 = vpop.f32.mrb[0].mxu0
        %v1797 = vpop.f32.mrb[0].mxu0
        %v1798 = vpop.f32.mrb[0].mxu0
        %v1799 = vadd.f32 0.0, %v1798
        %v1800 = vpop.f32.mrb[0].mxu0
        %1801 = vmatprep.mubr.bf16.mxu0 %v986
        %1802 = vmatmul.mubr.bf16.gmra.mrb[0].mxu0 %v985
        %v1803 = vpop.f32.mrb[0].mxu0
        %v1804 = vadd.f32 0.0, %v1803
        %v1805 = vpop.f32.mrb[0].mxu0
        %v1806 = vpop.f32.mrb[0].mxu0
        %v1807 = vpop.f32.mrb[0].mxu0
        %1808 = vmatprep.mubr.bf16.mxu0 %v995
        %1809 = vmatmul.mubr.bf16.gmra.mrb[0].mxu0 %v994
        %v1810 = vpop.f32.mrb[0].mxu0
        %v1811 = vadd.f32 0.0, %v1810
        %v1812 = vpop.f32.mrb[0].mxu0
        %v1813 = vpop.f32.mrb[0].mxu0
        %v1814 = vadd.f32 0.0, %v1813
        %v1815 = vpop.f32.mrb[0].mxu0
        %1816 = vmatprep.mubr.bf16.mxu0 %v1004
        %1817 = vmatmul.mubr.bf16.gmra.mrb[0].mxu0 %v1003
        %v1818 = vpop.f32.mrb[0].mxu0
        %v1819 = vpop.f32.mrb[0].mxu0
        %v1820 = vpop.f32.mrb[0].mxu0
        %v1821 = vadd.f32 0.0, %v1820
        %v1822 = vpop.f32.mrb[0].mxu0
        %1823 = vmatprep.mubr.bf16.mxu0 %v1013
        %1824 = vmatmul.mubr.bf16.gmra.mrb[0].mxu0 %v1012
        %v1825 = vpop.f32.mrb[0].mxu0
        %v1826 = vadd.f32 0.0, %v1825
        %v1827 = vpop.f32.mrb[0].mxu0
        %v1828 = vpop.f32.mrb[0].mxu0
        %v1829 = vpop.f32.mrb[0].mxu0
        %1830 = vmatprep.mubr.bf16.mxu0 %v1022
        %1831 = vmatmul.mubr.bf16.gmra.mrb[0].mxu0 %v1021
        %v1832 = vpop.f32.mrb[0].mxu0
        %v1833 = vadd.f32 0.0, %v1832
        %v1834 = vpop.f32.mrb[0].mxu0
        %v1835 = vpop.f32.mrb[0].mxu0
        %v1836 = vadd.f32 0.0, %v1835
        %v1837 = vpop.f32.mrb[0].mxu0
        %1838 = vmatprep.mubr.bf16.mxu0 %v1031
        %1839 = vmatmul.mubr.bf16.gmra.mrb[0].mxu0 %v1030
        %v1840 = vpop.f32.mrb[0].mxu0
        %v1841 = vpop.f32.mrb[0].mxu0
        %v1842 = vpop.f32.mrb[0].mxu0
        %v1843 = vadd.f32 0.0, %v1842
        %v1844 = vpop.f32.mrb[0].mxu0
        %1845 = vmatprep.mubr.bf16.mxu0 %v1040
        %1846 = vmatmul.mubr.bf16.gmra.mrb[0].mxu0 %v1039
        %v1847 = vpop.f32.mrb[0].mxu0
        %v1848 = vadd.f32 0.0, %v1847
        %v1849 = vpop.f32.mrb[0].mxu0
        %v1850 = vpop.f32.mrb[0].mxu0
        %v1851 = vpop.f32.mrb[0].mxu0
        %1852 = vmatprep.mubr.bf16.mxu0 %v1049
        %1853 = vmatmul.mubr.bf16.gmra.mrb[0].mxu0 %v1048
        %v1854 = vpop.f32.mrb[0].mxu0
        %v1855 = vadd.f32 0.0, %v1854
        %v1856 = vpop.f32.mrb[0].mxu0
        %v1857 = vpop.f32.mrb[0].mxu0
        %v1858 = vadd.f32 0.0, %v1857
        %v1859 = vpop.f32.mrb[0].mxu0
        %1860 = vmatprep.mubr.bf16.mxu0 %v1058
        %1861 = vmatmul.mubr.bf16.gmra.mrb[0].mxu0 %v1057
        %v1862 = vpop.f32.mrb[0].mxu0
        %v1863 = vpop.f32.mrb[0].mxu0
        %v1864 = vpop.f32.mrb[0].mxu0
        %v1865 = vadd.f32 0.0, %v1864
        %v1866 = vpop.f32.mrb[0].mxu0
        %1867 = vmatprep.mubr.bf16.mxu0 %v1067
        %1868 = vmatmul.mubr.bf16.gmra.mrb[0].mxu0 %v1066
        %v1869 = vpop.f32.mrb[0].mxu0
        %v1870 = vadd.f32 0.0, %v1869
        %v1871 = vpop.f32.mrb[0].mxu0
        %v1872 = vpop.f32.mrb[0].mxu0
        %v1873 = vpop.f32.mrb[0].mxu0
        %1874 = vmatprep.mubr.bf16.mxu0 %v1076
        %1875 = vmatmul.mubr.bf16.gmra.mrb[0].mxu0 %v1075
        %v1876 = vpop.f32.mrb[0].mxu0
        %v1877 = vadd.f32 0.0, %v1876
        %v1878 = vpop.f32.mrb[0].mxu0
        %v1879 = vpop.f32.mrb[0].mxu0
        %v1880 = vadd.f32 0.0, %v1879
        %v1881 = vpop.f32.mrb[0].mxu0
        %1882 = vmatprep.mubr.bf16.mxu0 %v1085
        %1883 = vmatmul.mubr.bf16.gmra.mrb[0].mxu0 %v1084
        %v1884 = vpop.f32.mrb[0].mxu0
        %v1885 = vpop.f32.mrb[0].mxu0
        %v1886 = vpop.f32.mrb[0].mxu0
        %v1887 = vadd.f32 0.0, %v1886
        %v1888 = vpop.f32.mrb[0].mxu0
        %1889 = vmatprep.mubr.bf16.mxu0 %v1094
        %1890 = vmatmul.mubr.bf16.gmra.mrb[0].mxu0 %v1093
        %v1891 = vpop.f32.mrb[0].mxu0
        %v1892 = vadd.f32 0.0, %v1891
        %v1893 = vpop.f32.mrb[0].mxu0
        %v1894 = vpop.f32.mrb[0].mxu0
        %v1895 = vpop.f32.mrb[0].mxu0
        %1896 = vmatprep.mubr.bf16.mxu0 %v1103
        %1897 = vmatmul.mubr.bf16.gmra.mrb[0].mxu0 %v1102
        %v1898 = vpop.f32.mrb[0].mxu0
        %v1899 = vadd.f32 0.0, %v1898
        %v1900 = vpop.f32.mrb[0].mxu0
        %v1901 = vpop.f32.mrb[0].mxu0
        %v1902 = vadd.f32 0.0, %v1901
        %v1903 = vpop.f32.mrb[0].mxu0
        %1904 = vmatprep.mubr.bf16.mxu0 %v1112
        %1905 = vmatmul.mubr.bf16.gmra.mrb[0].mxu0 %v1111
        %v1906 = vpop.f32.mrb[0].mxu0
        %v1907 = vpop.f32.mrb[0].mxu0
        %v1908 = vpop.f32.mrb[0].mxu0
        %v1909 = vadd.f32 0.0, %v1908
        %v1910 = vpop.f32.mrb[0].mxu0
        %1911 = vmatprep.mubr.bf16.mxu0 %v1121
        %1912 = vmatmul.mubr.bf16.gmra.mrb[0].mxu0 %v1120
        %v1913 = vpop.f32.mrb[0].mxu0
        %v1914 = vadd.f32 0.0, %v1913
        %v1915 = vpop.f32.mrb[0].mxu0
        %v1916 = vpop.f32.mrb[0].mxu0
        %v1917 = vpop.f32.mrb[0].mxu0
        %1918 = vmatprep.mubr.bf16.mxu0 %v1130
        %1919 = vmatmul.mubr.bf16.gmra.mrb[0].mxu0 %v1129
        %v1920 = vpop.f32.mrb[0].mxu0
        %v1921 = vadd.f32 0.0, %v1920
        %v1922 = vpop.f32.mrb[0].mxu0
        %v1923 = vpop.f32.mrb[0].mxu0
        %v1924 = vadd.f32 0.0, %v1923
        %v1925 = vpop.f32.mrb[0].mxu0
        %1926 = vmatprep.mubr.bf16.mxu0 %v1139
        %1927 = vmatmul.mubr.bf16.gmra.mrb[0].mxu0 %v1138
        %v1928 = vpop.f32.mrb[0].mxu0
        %v1929 = vpop.f32.mrb[0].mxu0
        %v1930 = vpop.f32.mrb[0].mxu0
        %v1931 = vadd.f32 0.0, %v1930
        %v1932 = vpop.f32.mrb[0].mxu0
        %1933 = vmatprep.mubr.bf16.mxu0 %v1148
        %1934 = vmatmul.mubr.bf16.gmra.mrb[0].mxu0 %v1147
        %v1935 = vpop.f32.mrb[0].mxu0
        %v1936 = vadd.f32 0.0, %v1935
        %v1937 = vpop.f32.mrb[0].mxu0
        %v1938 = vpop.f32.mrb[0].mxu0
        %v1939 = vpop.f32.mrb[0].mxu0
        %1940 = vdwg.mxu0
        %1941 = vmatprep.subr.bf16.mxu0 0
        %1942 = vmatpush1.bf16.msra.mxu0 %v1604
        %1943 = vmatprep.subr.bf16.mxu0 0
        %1944 = vmatpush1.bf16.msra.mxu0 %v1605
        %1945 = vmatprep.subr.bf16.mxu0 0
        %1946 = vmatpush1.bf16.msra.mxu0 %v1606
        %1947 = vmatprep.subr.bf16.mxu0 0
        %1948 = vmatpush1.bf16.msra.mxu0 %v1607
        %1949 = vmatprep.subr.bf16.mxu0 0
        %1950 = vmatpush1.bf16.msra.mxu0 %v1608
        %1951 = vmatprep.subr.bf16.mxu0 0
        %1952 = vmatpush1.bf16.msra.mxu0 %v1609
        %1953 = vmatprep.subr.bf16.mxu0 0
        %1954 = vmatpush1.bf16.msra.mxu0 %v1610
        %1955 = vmatprep.subr.bf16.mxu0 0
        %1956 = vmatpush1.bf16.msra.mxu0 %v1611
        %1957 = vmatprep.subr.bf16.mxu0 0
        %1958 = vmatpush1.bf16.msra.mxu0 %v1612
        %1959 = vmatprep.subr.bf16.mxu0 0
        %1960 = vmatpush1.bf16.msra.mxu0 %v1613
        %1961 = vmatprep.subr.bf16.mxu0 0
        %1962 = vmatpush1.bf16.msra.mxu0 %v1614
        %1963 = vmatprep.subr.bf16.mxu0 0
        %1964 = vmatpush1.bf16.msra.mxu0 %v1615
        %1965 = vmatprep.subr.bf16.mxu0 0
        %1966 = vmatpush1.bf16.msra.mxu0 %v1616
        %1967 = vmatprep.subr.bf16.mxu0 0
        %1968 = vmatpush1.bf16.msra.mxu0 %v1617
        %1969 = vmatprep.subr.bf16.mxu0 0
        %1970 = vmatpush1.bf16.msra.mxu0 %v1618
        %1971 = vmatprep.subr.bf16.mxu0 0
        %1972 = vmatpush1.bf16.msra.mxu0 %v1619
        %1973 = vmatprep.mubr.bf16.mxu0 %v943
        %1974 = vmatmul.mubr.bf16.gmra.mrb[0].mxu0 %v942
        %v1975 = vpop.f32.mrb[0].mxu0
        %v1976 = vadd.f32 %v1767, %v1975
        %v1977 = vpop.f32.mrb[0].mxu0
        %v1978 = vpop.f32.mrb[0].mxu0
        %v1979 = vadd.f32 %v1770, %v1978
        %v1980 = vpop.f32.mrb[0].mxu0
        %1981 = vmatprep.mubr.bf16.mxu0 %v952
        %1982 = vmatmul.mubr.bf16.gmra.mrb[0].mxu0 %v951
        %v1983 = vpop.f32.mrb[0].mxu0
        %v1984 = vpop.f32.mrb[0].mxu0
        %v1985 = vpop.f32.mrb[0].mxu0
        %v1986 = vadd.f32 %v1777, %v1985
        %v1987 = vpop.f32.mrb[0].mxu0
        %1988 = vmatprep.mubr.bf16.mxu0 %v961
        %1989 = vmatmul.mubr.bf16.gmra.mrb[0].mxu0 %v960
        %v1990 = vpop.f32.mrb[0].mxu0
        %v1991 = vadd.f32 %v1782, %v1990
        %v1992 = vpop.f32.mrb[0].mxu0
        %v1993 = vpop.f32.mrb[0].mxu0
        %v1994 = vpop.f32.mrb[0].mxu0
        %1995 = vmatprep.mubr.bf16.mxu0 %v970
        %1996 = vmatmul.mubr.bf16.gmra.mrb[0].mxu0 %v969
        %v1997 = vpop.f32.mrb[0].mxu0
        %v1998 = vadd.f32 %v1789, %v1997
        %v1999 = vpop.f32.mrb[0].mxu0
        %v2000 = vpop.f32.mrb[0].mxu0
        %v2001 = vadd.f32 %v1792, %v2000
        %v2002 = vpop.f32.mrb[0].mxu0
        %2003 = vmatprep.mubr.bf16.mxu0 %v979
        %2004 = vmatmul.mubr.bf16.gmra.mrb[0].mxu0 %v978
        %v2005 = vpop.f32.mrb[0].mxu0
        %v2006 = vpop.f32.mrb[0].mxu0
        %v2007 = vpop.f32.mrb[0].mxu0
        %v2008 = vadd.f32 %v1799, %v2007
        %v2009 = vpop.f32.mrb[0].mxu0
        %2010 = vmatprep.mubr.bf16.mxu0 %v988
        %2011 = vmatmul.mubr.bf16.gmra.mrb[0].mxu0 %v987
        %v2012 = vpop.f32.mrb[0].mxu0
        %v2013 = vadd.f32 %v1804, %v2012
        %v2014 = vpop.f32.mrb[0].mxu0
        %v2015 = vpop.f32.mrb[0].mxu0
        %v2016 = vpop.f32.mrb[0].mxu0
        %2017 = vmatprep.mubr.bf16.mxu0 %v997
        %2018 = vmatmul.mubr.bf16.gmra.mrb[0].mxu0 %v996
        %v2019 = vpop.f32.mrb[0].mxu0
        %v2020 = vadd.f32 %v1811, %v2019
        %v2021 = vpop.f32.mrb[0].mxu0
        %v2022 = vpop.f32.mrb[0].mxu0
        %v2023 = vadd.f32 %v1814, %v2022
        %v2024 = vpop.f32.mrb[0].mxu0
        %2025 = vmatprep.mubr.bf16.mxu0 %v1006
        %2026 = vmatmul.mubr.bf16.gmra.mrb[0].mxu0 %v1005
        %v2027 = vpop.f32.mrb[0].mxu0
        %v2028 = vpop.f32.mrb[0].mxu0
        %v2029 = vpop.f32.mrb[0].mxu0
        %v2030 = vadd.f32 %v1821, %v2029
        %v2031 = vpop.f32.mrb[0].mxu0
        %2032 = vmatprep.mubr.bf16.mxu0 %v1015
        %2033 = vmatmul.mubr.bf16.gmra.mrb[0].mxu0 %v1014
        %v2034 = vpop.f32.mrb[0].mxu0
        %v2035 = vadd.f32 %v1826, %v2034
        %v2036 = vpop.f32.mrb[0].mxu0
        %v2037 = vpop.f32.mrb[0].mxu0
        %v2038 = vpop.f32.mrb[0].mxu0
        %2039 = vmatprep.mubr.bf16.mxu0 %v1024
        %2040 = vmatmul.mubr.bf16.gmra.mrb[0].mxu0 %v1023
        %v2041 = vpop.f32.mrb[0].mxu0
        %v2042 = vadd.f32 %v1833, %v2041
        %v2043 = vpop.f32.mrb[0].mxu0
        %v2044 = vpop.f32.mrb[0].mxu0
        %v2045 = vadd.f32 %v1836, %v2044
        %v2046 = vpop.f32.mrb[0].mxu0
        %2047 = vmatprep.mubr.bf16.mxu0 %v1033
        %2048 = vmatmul.mubr.bf16.gmra.mrb[0].mxu0 %v1032
        %v2049 = vpop.f32.mrb[0].mxu0
        %v2050 = vpop.f32.mrb[0].mxu0
        %v2051 = vpop.f32.mrb[0].mxu0
        %v2052 = vadd.f32 %v1843, %v2051
        %v2053 = vpop.f32.mrb[0].mxu0
        %2054 = vmatprep.mubr.bf16.mxu0 %v1042
        %2055 = vmatmul.mubr.bf16.gmra.mrb[0].mxu0 %v1041
        %v2056 = vpop.f32.mrb[0].mxu0
        %v2057 = vadd.f32 %v1848, %v2056
        %v2058 = vpop.f32.mrb[0].mxu0
        %v2059 = vpop.f32.mrb[0].mxu0
        %v2060 = vpop.f32.mrb[0].mxu0
        %2061 = vmatprep.mubr.bf16.mxu0 %v1051
        %2062 = vmatmul.mubr.bf16.gmra.mrb[0].mxu0 %v1050
        %v2063 = vpop.f32.mrb[0].mxu0
        %v2064 = vadd.f32 %v1855, %v2063
        %v2065 = vpop.f32.mrb[0].mxu0
        %v2066 = vpop.f32.mrb[0].mxu0
        %v2067 = vadd.f32 %v1858, %v2066
        %v2068 = vpop.f32.mrb[0].mxu0
        %2069 = vmatprep.mubr.bf16.mxu0 %v1060
        %2070 = vmatmul.mubr.bf16.gmra.mrb[0].mxu0 %v1059
        %v2071 = vpop.f32.mrb[0].mxu0
        %v2072 = vpop.f32.mrb[0].mxu0
        %v2073 = vpop.f32.mrb[0].mxu0
        %v2074 = vadd.f32 %v1865, %v2073
        %v2075 = vpop.f32.mrb[0].mxu0
        %2076 = vmatprep.mubr.bf16.mxu0 %v1069
        %2077 = vmatmul.mubr.bf16.gmra.mrb[0].mxu0 %v1068
        %v2078 = vpop.f32.mrb[0].mxu0
        %v2079 = vadd.f32 %v1870, %v2078
        %v2080 = vpop.f32.mrb[0].mxu0
        %v2081 = vpop.f32.mrb[0].mxu0
        %v2082 = vpop.f32.mrb[0].mxu0
        %2083 = vmatprep.mubr.bf16.mxu0 %v1078
        %2084 = vmatmul.mubr.bf16.gmra.mrb[0].mxu0 %v1077
        %v2085 = vpop.f32.mrb[0].mxu0
        %v2086 = vadd.f32 %v1877, %v2085
        %v2087 = vpop.f32.mrb[0].mxu0
        %v2088 = vpop.f32.mrb[0].mxu0
        %v2089 = vadd.f32 %v1880, %v2088
        %v2090 = vpop.f32.mrb[0].mxu0
        %2091 = vmatprep.mubr.bf16.mxu0 %v1087
        %2092 = vmatmul.mubr.bf16.gmra.mrb[0].mxu0 %v1086
        %v2093 = vpop.f32.mrb[0].mxu0
        %v2094 = vpop.f32.mrb[0].mxu0
        %v2095 = vpop.f32.mrb[0].mxu0
        %v2096 = vadd.f32 %v1887, %v2095
        %v2097 = vpop.f32.mrb[0].mxu0
        %2098 = vmatprep.mubr.bf16.mxu0 %v1096
        %2099 = vmatmul.mubr.bf16.gmra.mrb[0].mxu0 %v1095
        %v2100 = vpop.f32.mrb[0].mxu0
        %v2101 = vadd.f32 %v1892, %v2100
        %v2102 = vpop.f32.mrb[0].mxu0
        %v2103 = vpop.f32.mrb[0].mxu0
        %v2104 = vpop.f32.mrb[0].mxu0
        %2105 = vmatprep.mubr.bf16.mxu0 %v1105
        %2106 = vmatmul.mubr.bf16.gmra.mrb[0].mxu0 %v1104
        %v2107 = vpop.f32.mrb[0].mxu0
        %v2108 = vadd.f32 %v1899, %v2107
        %v2109 = vpop.f32.mrb[0].mxu0
        %v2110 = vpop.f32.mrb[0].mxu0
        %v2111 = vadd.f32 %v1902, %v2110
        %v2112 = vpop.f32.mrb[0].mxu0
        %2113 = vmatprep.mubr.bf16.mxu0 %v1114
        %2114 = vmatmul.mubr.bf16.gmra.mrb[0].mxu0 %v1113
        %v2115 = vpop.f32.mrb[0].mxu0
        %v2116 = vpop.f32.mrb[0].mxu0
        %v2117 = vpop.f32.mrb[0].mxu0
        %v2118 = vadd.f32 %v1909, %v2117
        %v2119 = vpop.f32.mrb[0].mxu0
        %2120 = vmatprep.mubr.bf16.mxu0 %v1123
        %2121 = vmatmul.mubr.bf16.gmra.mrb[0].mxu0 %v1122
        %v2122 = vpop.f32.mrb[0].mxu0
        %v2123 = vadd.f32 %v1914, %v2122
        %v2124 = vpop.f32.mrb[0].mxu0
        %v2125 = vpop.f32.mrb[0].mxu0
        %v2126 = vpop.f32.mrb[0].mxu0
        %2127 = vmatprep.mubr.bf16.mxu0 %v1132
        %2128 = vmatmul.mubr.bf16.gmra.mrb[0].mxu0 %v1131
        %v2129 = vpop.f32.mrb[0].mxu0
        %v2130 = vadd.f32 %v1921, %v2129
        %v2131 = vpop.f32.mrb[0].mxu0
        %v2132 = vpop.f32.mrb[0].mxu0
        %v2133 = vadd.f32 %v1924, %v2132
        %v2134 = vpop.f32.mrb[0].mxu0
        %2135 = vmatprep.mubr.bf16.mxu0 %v1141
        %2136 = vmatmul.mubr.bf16.gmra.mrb[0].mxu0 %v1140
        %v2137 = vpop.f32.mrb[0].mxu0
        %v2138 = vpop.f32.mrb[0].mxu0
        %v2139 = vpop.f32.mrb[0].mxu0
        %v2140 = vadd.f32 %v1931, %v2139
        %v2141 = vpop.f32.mrb[0].mxu0
        %2142 = vmatprep.mubr.bf16.mxu0 %v1150
        %2143 = vmatmul.mubr.bf16.gmra.mrb[0].mxu0 %v1149
        %v2144 = vpop.f32.mrb[0].mxu0
        %v2145 = vadd.f32 %v1936, %v2144
        %v2146 = vpop.f32.mrb[0].mxu0
        %v2147 = vpop.f32.mrb[0].mxu0
        %v2148 = vpop.f32.mrb[0].mxu0
        %2149 = vdwg.mxu0
        %2150 = vmatprep.subr.bf16.mxu0 0
        %2151 = vmatpush1.bf16.msra.mxu0 %v1620
        %2152 = vmatprep.subr.bf16.mxu0 0
        %2153 = vmatpush1.bf16.msra.mxu0 %v1621
        %2154 = vmatprep.subr.bf16.mxu0 0
        %2155 = vmatpush1.bf16.msra.mxu0 %v1622
        %2156 = vmatprep.subr.bf16.mxu0 0
        %2157 = vmatpush1.bf16.msra.mxu0 %v1623
        %2158 = vmatprep.subr.bf16.mxu0 0
        %2159 = vmatpush1.bf16.msra.mxu0 %v1624
        %2160 = vmatprep.subr.bf16.mxu0 0
        %2161 = vmatpush1.bf16.msra.mxu0 %v1625
        %2162 = vmatprep.subr.bf16.mxu0 0
        %2163 = vmatpush1.bf16.msra.mxu0 %v1626
        %2164 = vmatprep.subr.bf16.mxu0 0
        %2165 = vmatpush1.bf16.msra.mxu0 %v1627
        %2166 = vmatprep.subr.bf16.mxu0 0
        %2167 = vmatpush1.bf16.msra.mxu0 %v1628
        %2168 = vmatprep.subr.bf16.mxu0 0
        %2169 = vmatpush1.bf16.msra.mxu0 %v1629
        %2170 = vmatprep.subr.bf16.mxu0 0
        %2171 = vmatpush1.bf16.msra.mxu0 %v1630
        %2172 = vmatprep.subr.bf16.mxu0 0
        %2173 = vmatpush1.bf16.msra.mxu0 %v1631
        %2174 = vmatprep.subr.bf16.mxu0 0
        %2175 = vmatpush1.bf16.msra.mxu0 %v1632
        %2176 = vmatprep.subr.bf16.mxu0 0
        %2177 = vmatpush1.bf16.msra.mxu0 %v1633
        %2178 = vmatprep.subr.bf16.mxu0 0
        %2179 = vmatpush1.bf16.msra.mxu0 %v1634
        %2180 = vmatprep.subr.bf16.mxu0 0
        %2181 = vmatpush1.bf16.msra.mxu0 %v1635
        %2182 = vmatprep.mubr.bf16.mxu0 %v945
        %2183 = vmatmul.mubr.bf16.gmra.mrb[0].mxu0 %v944
        %v2184 = vpop.f32.mrb[0].mxu0
        %v2185 = vadd.f32 %v1976, %v2184
        %v2186 = vpop.f32.mrb[0].mxu0
        %v2187 = vpop.f32.mrb[0].mxu0
        %v2188 = vadd.f32 %v1979, %v2187
        %v2189 = vpop.f32.mrb[0].mxu0
        %2190 = vmatprep.mubr.bf16.mxu0 %v954
        %2191 = vmatmul.mubr.bf16.gmra.mrb[0].mxu0 %v953
        %v2192 = vpop.f32.mrb[0].mxu0
        %v2193 = vpop.f32.mrb[0].mxu0
        %v2194 = vpop.f32.mrb[0].mxu0
        %v2195 = vadd.f32 %v1986, %v2194
        %v2196 = vpop.f32.mrb[0].mxu0
        %2197 = vmatprep.mubr.bf16.mxu0 %v963
        %2198 = vmatmul.mubr.bf16.gmra.mrb[0].mxu0 %v962
        %v2199 = vpop.f32.mrb[0].mxu0
        %v2200 = vadd.f32 %v1991, %v2199
        %v2201 = vpop.f32.mrb[0].mxu0
        %v2202 = vpop.f32.mrb[0].mxu0
        %v2203 = vpop.f32.mrb[0].mxu0
        %2204 = vmatprep.mubr.bf16.mxu0 %v972
        %2205 = vmatmul.mubr.bf16.gmra.mrb[0].mxu0 %v971
        %v2206 = vpop.f32.mrb[0].mxu0
        %v2207 = vadd.f32 %v1998, %v2206
        %v2208 = vpop.f32.mrb[0].mxu0
        %v2209 = vpop.f32.mrb[0].mxu0
        %v2210 = vadd.f32 %v2001, %v2209
        %v2211 = vpop.f32.mrb[0].mxu0
        %2212 = vmatprep.mubr.bf16.mxu0 %v981
        %2213 = vmatmul.mubr.bf16.gmra.mrb[0].mxu0 %v980
        %v2214 = vpop.f32.mrb[0].mxu0
        %v2215 = vpop.f32.mrb[0].mxu0
        %v2216 = vpop.f32.mrb[0].mxu0
        %v2217 = vadd.f32 %v2008, %v2216
        %v2218 = vpop.f32.mrb[0].mxu0
        %2219 = vmatprep.mubr.bf16.mxu0 %v990
        %2220 = vmatmul.mubr.bf16.gmra.mrb[0].mxu0 %v989
        %v2221 = vpop.f32.mrb[0].mxu0
        %v2222 = vadd.f32 %v2013, %v2221
        %v2223 = vpop.f32.mrb[0].mxu0
        %v2224 = vpop.f32.mrb[0].mxu0
        %v2225 = vpop.f32.mrb[0].mxu0
        %2226 = vmatprep.mubr.bf16.mxu0 %v999
        %2227 = vmatmul.mubr.bf16.gmra.mrb[0].mxu0 %v998
        %v2228 = vpop.f32.mrb[0].mxu0
        %v2229 = vadd.f32 %v2020, %v2228
        %v2230 = vpop.f32.mrb[0].mxu0
        %v2231 = vpop.f32.mrb[0].mxu0
        %v2232 = vadd.f32 %v2023, %v2231
        %v2233 = vpop.f32.mrb[0].mxu0
        %2234 = vmatprep.mubr.bf16.mxu0 %v1008
        %2235 = vmatmul.mubr.bf16.gmra.mrb[0].mxu0 %v1007
        %v2236 = vpop.f32.mrb[0].mxu0
        %v2237 = vpop.f32.mrb[0].mxu0
        %v2238 = vpop.f32.mrb[0].mxu0
        %v2239 = vadd.f32 %v2030, %v2238
        %v2240 = vpop.f32.mrb[0].mxu0
        %2241 = vmatprep.mubr.bf16.mxu0 %v1017
        %2242 = vmatmul.mubr.bf16.gmra.mrb[0].mxu0 %v1016
        %v2243 = vpop.f32.mrb[0].mxu0
        %v2244 = vadd.f32 %v2035, %v2243
        %v2245 = vpop.f32.mrb[0].mxu0
        %v2246 = vpop.f32.mrb[0].mxu0
        %v2247 = vpop.f32.mrb[0].mxu0
        %2248 = vmatprep.mubr.bf16.mxu0 %v1026
        %2249 = vmatmul.mubr.bf16.gmra.mrb[0].mxu0 %v1025
        %v2250 = vpop.f32.mrb[0].mxu0
        %v2251 = vadd.f32 %v2042, %v2250
        %v2252 = vpop.f32.mrb[0].mxu0
        %v2253 = vpop.f32.mrb[0].mxu0
        %v2254 = vadd.f32 %v2045, %v2253
        %v2255 = vpop.f32.mrb[0].mxu0
        %2256 = vmatprep.mubr.bf16.mxu0 %v1035
        %2257 = vmatmul.mubr.bf16.gmra.mrb[0].mxu0 %v1034
        %v2258 = vpop.f32.mrb[0].mxu0
        %v2259 = vpop.f32.mrb[0].mxu0
        %v2260 = vpop.f32.mrb[0].mxu0
        %v2261 = vadd.f32 %v2052, %v2260
        %v2262 = vpop.f32.mrb[0].mxu0
        %2263 = vmatprep.mubr.bf16.mxu0 %v1044
        %2264 = vmatmul.mubr.bf16.gmra.mrb[0].mxu0 %v1043
        %v2265 = vpop.f32.mrb[0].mxu0
        %v2266 = vadd.f32 %v2057, %v2265
        %v2267 = vpop.f32.mrb[0].mxu0
        %v2268 = vpop.f32.mrb[0].mxu0
        %v2269 = vpop.f32.mrb[0].mxu0
        %2270 = vmatprep.mubr.bf16.mxu0 %v1053
        %2271 = vmatmul.mubr.bf16.gmra.mrb[0].mxu0 %v1052
        %v2272 = vpop.f32.mrb[0].mxu0
        %v2273 = vadd.f32 %v2064, %v2272
        %v2274 = vpop.f32.mrb[0].mxu0
        %v2275 = vpop.f32.mrb[0].mxu0
        %v2276 = vadd.f32 %v2067, %v2275
        %v2277 = vpop.f32.mrb[0].mxu0
        %2278 = vmatprep.mubr.bf16.mxu0 %v1062
        %2279 = vmatmul.mubr.bf16.gmra.mrb[0].mxu0 %v1061
        %v2280 = vpop.f32.mrb[0].mxu0
        %v2281 = vpop.f32.mrb[0].mxu0
        %v2282 = vpop.f32.mrb[0].mxu0
        %v2283 = vadd.f32 %v2074, %v2282
        %v2284 = vpop.f32.mrb[0].mxu0
        %2285 = vmatprep.mubr.bf16.mxu0 %v1071
        %2286 = vmatmul.mubr.bf16.gmra.mrb[0].mxu0 %v1070
        %v2287 = vpop.f32.mrb[0].mxu0
        %v2288 = vadd.f32 %v2079, %v2287
        %v2289 = vpop.f32.mrb[0].mxu0
        %v2290 = vpop.f32.mrb[0].mxu0
        %v2291 = vpop.f32.mrb[0].mxu0
        %2292 = vmatprep.mubr.bf16.mxu0 %v1080
        %2293 = vmatmul.mubr.bf16.gmra.mrb[0].mxu0 %v1079
        %v2294 = vpop.f32.mrb[0].mxu0
        %v2295 = vadd.f32 %v2086, %v2294
        %v2296 = vpop.f32.mrb[0].mxu0
        %v2297 = vpop.f32.mrb[0].mxu0
        %v2298 = vadd.f32 %v2089, %v2297
        %v2299 = vpop.f32.mrb[0].mxu0
        %2300 = vmatprep.mubr.bf16.mxu0 %v1089
        %2301 = vmatmul.mubr.bf16.gmra.mrb[0].mxu0 %v1088
        %v2302 = vpop.f32.mrb[0].mxu0
        %v2303 = vpop.f32.mrb[0].mxu0
        %v2304 = vpop.f32.mrb[0].mxu0
        %v2305 = vadd.f32 %v2096, %v2304
        %v2306 = vpop.f32.mrb[0].mxu0
        %2307 = vmatprep.mubr.bf16.mxu0 %v1098
        %2308 = vmatmul.mubr.bf16.gmra.mrb[0].mxu0 %v1097
        %v2309 = vpop.f32.mrb[0].mxu0
        %v2310 = vadd.f32 %v2101, %v2309
        %v2311 = vpop.f32.mrb[0].mxu0
        %v2312 = vpop.f32.mrb[0].mxu0
        %v2313 = vpop.f32.mrb[0].mxu0
        %2314 = vmatprep.mubr.bf16.mxu0 %v1107
        %2315 = vmatmul.mubr.bf16.gmra.mrb[0].mxu0 %v1106
        %v2316 = vpop.f32.mrb[0].mxu0
        %v2317 = vadd.f32 %v2108, %v2316
        %v2318 = vpop.f32.mrb[0].mxu0
        %v2319 = vpop.f32.mrb[0].mxu0
        %v2320 = vadd.f32 %v2111, %v2319
        %v2321 = vpop.f32.mrb[0].mxu0
        %2322 = vmatprep.mubr.bf16.mxu0 %v1116
        %2323 = vmatmul.mubr.bf16.gmra.mrb[0].mxu0 %v1115
        %v2324 = vpop.f32.mrb[0].mxu0
        %v2325 = vpop.f32.mrb[0].mxu0
        %v2326 = vpop.f32.mrb[0].mxu0
        %v2327 = vadd.f32 %v2118, %v2326
        %v2328 = vpop.f32.mrb[0].mxu0
        %2329 = vmatprep.mubr.bf16.mxu0 %v1125
        %2330 = vmatmul.mubr.bf16.gmra.mrb[0].mxu0 %v1124
        %v2331 = vpop.f32.mrb[0].mxu0
        %v2332 = vadd.f32 %v2123, %v2331
        %v2333 = vpop.f32.mrb[0].mxu0
        %v2334 = vpop.f32.mrb[0].mxu0
        %v2335 = vpop.f32.mrb[0].mxu0
        %2336 = vmatprep.mubr.bf16.mxu0 %v1134
        %2337 = vmatmul.mubr.bf16.gmra.mrb[0].mxu0 %v1133
        %v2338 = vpop.f32.mrb[0].mxu0
        %v2339 = vadd.f32 %v2130, %v2338
        %v2340 = vpop.f32.mrb[0].mxu0
        %v2341 = vpop.f32.mrb[0].mxu0
        %v2342 = vadd.f32 %v2133, %v2341
        %v2343 = vpop.f32.mrb[0].mxu0
        %2344 = vmatprep.mubr.bf16.mxu0 %v1143
        %2345 = vmatmul.mubr.bf16.gmra.mrb[0].mxu0 %v1142
        %v2346 = vpop.f32.mrb[0].mxu0
        %v2347 = vpop.f32.mrb[0].mxu0
        %v2348 = vpop.f32.mrb[0].mxu0
        %v2349 = vadd.f32 %v2140, %v2348
        %v2350 = vpop.f32.mrb[0].mxu0
        %2351 = vmatprep.mubr.bf16.mxu0 %v1152
        %2352 = vmatmul.mubr.bf16.gmra.mrb[0].mxu0 %v1151
        %v2353 = vpop.f32.mrb[0].mxu0
        %v2354 = vadd.f32 %v2145, %v2353
        %v2355 = vpop.f32.mrb[0].mxu0
        %v2356 = vpop.f32.mrb[0].mxu0
        %v2357 = vpop.f32.mrb[0].mxu0
        %2358 = vdwg.mxu0
        %2359 = vmatprep.subr.bf16.mxu0 0
        %2360 = vmatpush1.bf16.msra.mxu0 %v1636
        %2361 = vmatprep.subr.bf16.mxu0 0
        %2362 = vmatpush1.bf16.msra.mxu0 %v1637
        %2363 = vmatprep.subr.bf16.mxu0 0
        %2364 = vmatpush1.bf16.msra.mxu0 %v1638
        %2365 = vmatprep.subr.bf16.mxu0 0
        %2366 = vmatpush1.bf16.msra.mxu0 %v1639
        %2367 = vmatprep.subr.bf16.mxu0 0
        %2368 = vmatpush1.bf16.msra.mxu0 %v1640
        %2369 = vmatprep.subr.bf16.mxu0 0
        %2370 = vmatpush1.bf16.msra.mxu0 %v1641
        %2371 = vmatprep.subr.bf16.mxu0 0
        %2372 = vmatpush1.bf16.msra.mxu0 %v1642
        %2373 = vmatprep.subr.bf16.mxu0 0
        %2374 = vmatpush1.bf16.msra.mxu0 %v1643
        %2375 = vmatprep.subr.bf16.mxu0 0
        %2376 = vmatpush1.bf16.msra.mxu0 %v1644
        %2377 = vmatprep.subr.bf16.mxu0 0
        %2378 = vmatpush1.bf16.msra.mxu0 %v1645
        %2379 = vmatprep.subr.bf16.mxu0 0
        %2380 = vmatpush1.bf16.msra.mxu0 %v1646
        %2381 = vmatprep.subr.bf16.mxu0 0
        %2382 = vmatpush1.bf16.msra.mxu0 %v1647
        %2383 = vmatprep.subr.bf16.mxu0 0
        %2384 = vmatpush1.bf16.msra.mxu0 %v1648
        %2385 = vmatprep.subr.bf16.mxu0 0
        %2386 = vmatpush1.bf16.msra.mxu0 %v1649
        %2387 = vmatprep.subr.bf16.mxu0 0
        %2388 = vmatpush1.bf16.msra.mxu0 %v1650
        %2389 = vmatprep.subr.bf16.mxu0 0
        %2390 = vmatpush1.bf16.msra.mxu0 %v1651
        %2391 = vmatprep.mubr.bf16.mxu0 %v947
        %2392 = vmatmul.mubr.bf16.gmra.mrb[0].mxu0 %v946
        %v2393 = vpop.f32.mrb[0].mxu0
        %v2394 = vadd.f32 %v2185, %v2393
        %v2395 = vpop.f32.mrb[0].mxu0
        %v2396 = vpop.f32.mrb[0].mxu0
        %v2397 = vadd.f32 %v2188, %v2396
        %v2398 = vpop.f32.mrb[0].mxu0
        %2399 = vmatprep.mubr.bf16.mxu0 %v956
        %2400 = vmatmul.mubr.bf16.gmra.mrb[0].mxu0 %v955
        %v2401 = vpop.f32.mrb[0].mxu0
        %v2402 = vpop.f32.mrb[0].mxu0
        %v2403 = vpop.f32.mrb[0].mxu0
        %v2404 = vadd.f32 %v2195, %v2403
        %v2405 = vpop.f32.mrb[0].mxu0
        %2406 = vmatprep.mubr.bf16.mxu0 %v965
        %2407 = vmatmul.mubr.bf16.gmra.mrb[0].mxu0 %v964
        %v2408 = vpop.f32.mrb[0].mxu0
        %v2409 = vadd.f32 %v2200, %v2408
        %v2410 = vpop.f32.mrb[0].mxu0
        %v2411 = vpop.f32.mrb[0].mxu0
        %v2412 = vpop.f32.mrb[0].mxu0
        %2413 = vmatprep.mubr.bf16.mxu0 %v974
        %2414 = vmatmul.mubr.bf16.gmra.mrb[0].mxu0 %v973
        %v2415 = vpop.f32.mrb[0].mxu0
        %v2416 = vadd.f32 %v2207, %v2415
        %v2417 = vpop.f32.mrb[0].mxu0
        %v2418 = vpop.f32.mrb[0].mxu0
        %v2419 = vadd.f32 %v2210, %v2418
        %v2420 = vpop.f32.mrb[0].mxu0
        %2421 = vmatprep.mubr.bf16.mxu0 %v983
        %2422 = vmatmul.mubr.bf16.gmra.mrb[0].mxu0 %v982
        %v2423 = vpop.f32.mrb[0].mxu0
        %v2424 = vpop.f32.mrb[0].mxu0
        %v2425 = vpop.f32.mrb[0].mxu0
        %v2426 = vadd.f32 %v2217, %v2425
        %v2427 = vpop.f32.mrb[0].mxu0
        %2428 = vmatprep.mubr.bf16.mxu0 %v992
        %2429 = vmatmul.mubr.bf16.gmra.mrb[0].mxu0 %v991
        %v2430 = vpop.f32.mrb[0].mxu0
        %v2431 = vadd.f32 %v2222, %v2430
        %v2432 = vpop.f32.mrb[0].mxu0
        %v2433 = vpop.f32.mrb[0].mxu0
        %v2434 = vpop.f32.mrb[0].mxu0
        %2435 = vmatprep.mubr.bf16.mxu0 %v1001
        %2436 = vmatmul.mubr.bf16.gmra.mrb[0].mxu0 %v1000
        %v2437 = vpop.f32.mrb[0].mxu0
        %v2438 = vadd.f32 %v2229, %v2437
        %v2439 = vpop.f32.mrb[0].mxu0
        %v2440 = vpop.f32.mrb[0].mxu0
        %v2441 = vadd.f32 %v2232, %v2440
        %v2442 = vpop.f32.mrb[0].mxu0
        %2443 = vmatprep.mubr.bf16.mxu0 %v1010
        %2444 = vmatmul.mubr.bf16.gmra.mrb[0].mxu0 %v1009
        %v2445 = vpop.f32.mrb[0].mxu0
        %v2446 = vpop.f32.mrb[0].mxu0
        %v2447 = vpop.f32.mrb[0].mxu0
        %v2448 = vadd.f32 %v2239, %v2447
        %v2449 = vpop.f32.mrb[0].mxu0
        %2450 = vmatprep.mubr.bf16.mxu0 %v1019
        %2451 = vmatmul.mubr.bf16.gmra.mrb[0].mxu0 %v1018
        %v2452 = vpop.f32.mrb[0].mxu0
        %v2453 = vadd.f32 %v2244, %v2452
        %v2454 = vpop.f32.mrb[0].mxu0
        %v2455 = vpop.f32.mrb[0].mxu0
        %v2456 = vpop.f32.mrb[0].mxu0
        %2457 = vmatprep.mubr.bf16.mxu0 %v1028
        %2458 = vmatmul.mubr.bf16.gmra.mrb[0].mxu0 %v1027
        %v2459 = vpop.f32.mrb[0].mxu0
        %v2460 = vadd.f32 %v2251, %v2459
        %v2461 = vpop.f32.mrb[0].mxu0
        %v2462 = vpop.f32.mrb[0].mxu0
        %v2463 = vadd.f32 %v2254, %v2462
        %v2464 = vpop.f32.mrb[0].mxu0
        %2465 = vmatprep.mubr.bf16.mxu0 %v1037
        %2466 = vmatmul.mubr.bf16.gmra.mrb[0].mxu0 %v1036
        %v2467 = vpop.f32.mrb[0].mxu0
        %v2468 = vpop.f32.mrb[0].mxu0
        %v2469 = vpop.f32.mrb[0].mxu0
        %v2470 = vadd.f32 %v2261, %v2469
        %v2471 = vpop.f32.mrb[0].mxu0
        %2472 = vmatprep.mubr.bf16.mxu0 %v1046
        %2473 = vmatmul.mubr.bf16.gmra.mrb[0].mxu0 %v1045
        %v2474 = vpop.f32.mrb[0].mxu0
        %v2475 = vadd.f32 %v2266, %v2474
        %v2476 = vpop.f32.mrb[0].mxu0
        %v2477 = vpop.f32.mrb[0].mxu0
        %v2478 = vpop.f32.mrb[0].mxu0
        %2479 = vmatprep.mubr.bf16.mxu0 %v1055
        %2480 = vmatmul.mubr.bf16.gmra.mrb[0].mxu0 %v1054
        %v2481 = vpop.f32.mrb[0].mxu0
        %v2482 = vadd.f32 %v2273, %v2481
        %v2483 = vpop.f32.mrb[0].mxu0
        %v2484 = vpop.f32.mrb[0].mxu0
        %v2485 = vadd.f32 %v2276, %v2484
        %v2486 = vpop.f32.mrb[0].mxu0
        %2487 = vmatprep.mubr.bf16.mxu0 %v1064
        %2488 = vmatmul.mubr.bf16.gmra.mrb[0].mxu0 %v1063
        %v2489 = vpop.f32.mrb[0].mxu0
        %v2490 = vpop.f32.mrb[0].mxu0
        %v2491 = vpop.f32.mrb[0].mxu0
        %v2492 = vadd.f32 %v2283, %v2491
        %v2493 = vpop.f32.mrb[0].mxu0
        %2494 = vmatprep.mubr.bf16.mxu0 %v1073
        %2495 = vmatmul.mubr.bf16.gmra.mrb[0].mxu0 %v1072
        %v2496 = vpop.f32.mrb[0].mxu0
        %v2497 = vadd.f32 %v2288, %v2496
        %v2498 = vpop.f32.mrb[0].mxu0
        %v2499 = vpop.f32.mrb[0].mxu0
        %v2500 = vpop.f32.mrb[0].mxu0
        %2501 = vmatprep.mubr.bf16.mxu0 %v1082
        %2502 = vmatmul.mubr.bf16.gmra.mrb[0].mxu0 %v1081
        %v2503 = vpop.f32.mrb[0].mxu0
        %v2504 = vadd.f32 %v2295, %v2503
        %v2505 = vpop.f32.mrb[0].mxu0
        %v2506 = vpop.f32.mrb[0].mxu0
        %v2507 = vadd.f32 %v2298, %v2506
        %v2508 = vpop.f32.mrb[0].mxu0
        %2509 = vmatprep.mubr.bf16.mxu0 %v1091
        %2510 = vmatmul.mubr.bf16.gmra.mrb[0].mxu0 %v1090
        %v2511 = vpop.f32.mrb[0].mxu0
        %v2512 = vpop.f32.mrb[0].mxu0
        %v2513 = vpop.f32.mrb[0].mxu0
        %v2514 = vadd.f32 %v2305, %v2513
        %v2515 = vpop.f32.mrb[0].mxu0
        %2516 = vmatprep.mubr.bf16.mxu0 %v1100
        %2517 = vmatmul.mubr.bf16.gmra.mrb[0].mxu0 %v1099
        %v2518 = vpop.f32.mrb[0].mxu0
        %v2519 = vadd.f32 %v2310, %v2518
        %v2520 = vpop.f32.mrb[0].mxu0
        %v2521 = vpop.f32.mrb[0].mxu0
        %v2522 = vpop.f32.mrb[0].mxu0
        %2523 = vmatprep.mubr.bf16.mxu0 %v1109
        %2524 = vmatmul.mubr.bf16.gmra.mrb[0].mxu0 %v1108
        %v2525 = vpop.f32.mrb[0].mxu0
        %v2526 = vadd.f32 %v2317, %v2525
        %v2527 = vpop.f32.mrb[0].mxu0
        %v2528 = vpop.f32.mrb[0].mxu0
        %v2529 = vadd.f32 %v2320, %v2528
        %v2530 = vpop.f32.mrb[0].mxu0
        %2531 = vmatprep.mubr.bf16.mxu0 %v1118
        %2532 = vmatmul.mubr.bf16.gmra.mrb[0].mxu0 %v1117
        %v2533 = vpop.f32.mrb[0].mxu0
        %v2534 = vpop.f32.mrb[0].mxu0
        %v2535 = vpop.f32.mrb[0].mxu0
        %v2536 = vadd.f32 %v2327, %v2535
        %v2537 = vpop.f32.mrb[0].mxu0
        %2538 = vmatprep.mubr.bf16.mxu0 %v1127
        %2539 = vmatmul.mubr.bf16.gmra.mrb[0].mxu0 %v1126
        %v2540 = vpop.f32.mrb[0].mxu0
        %v2541 = vadd.f32 %v2332, %v2540
        %v2542 = vpop.f32.mrb[0].mxu0
        %v2543 = vpop.f32.mrb[0].mxu0
        %v2544 = vpop.f32.mrb[0].mxu0
        %2545 = vmatprep.mubr.bf16.mxu0 %v1136
        %2546 = vmatmul.mubr.bf16.gmra.mrb[0].mxu0 %v1135
        %v2547 = vpop.f32.mrb[0].mxu0
        %v2548 = vadd.f32 %v2339, %v2547
        %v2549 = vpop.f32.mrb[0].mxu0
        %v2550 = vpop.f32.mrb[0].mxu0
        %v2551 = vadd.f32 %v2342, %v2550
        %v2552 = vpop.f32.mrb[0].mxu0
        %2553 = vmatprep.mubr.bf16.mxu0 %v1145
        %2554 = vmatmul.mubr.bf16.gmra.mrb[0].mxu0 %v1144
        %v2555 = vpop.f32.mrb[0].mxu0
        %v2556 = vpop.f32.mrb[0].mxu0
        %v2557 = vpop.f32.mrb[0].mxu0
        %v2558 = vadd.f32 %v2349, %v2557
        %v2559 = vpop.f32.mrb[0].mxu0
        %2560 = vmatprep.mubr.bf16.mxu0 %v1154
        %2561 = vmatmul.mubr.bf16.gmra.mrb[0].mxu0 %v1153
        %v2562 = vpop.f32.mrb[0].mxu0
        %v2563 = vadd.f32 %v2354, %v2562
        %v2564 = vpop.f32.mrb[0].mxu0
        %v2565 = vpop.f32.mrb[0].mxu0
        %v2566 = vpop.f32.mrb[0].mxu0
        %2567 = vdwg.mxu0
        %2568 = vmatprep.subr.bf16.mxu0 0
        %2569 = vmatpush1.bf16.msra.mxu0 %v1652
        %2570 = vmatprep.subr.bf16.mxu0 0
        %2571 = vmatpush1.bf16.msra.mxu0 %v1653
        %2572 = vmatprep.subr.bf16.mxu0 0
        %2573 = vmatpush1.bf16.msra.mxu0 %v1654
        %2574 = vmatprep.subr.bf16.mxu0 0
        %2575 = vmatpush1.bf16.msra.mxu0 %v1655
        %2576 = vmatprep.subr.bf16.mxu0 0
        %2577 = vmatpush1.bf16.msra.mxu0 %v1656
        %2578 = vmatprep.subr.bf16.mxu0 0
        %2579 = vmatpush1.bf16.msra.mxu0 %v1657
        %2580 = vmatprep.subr.bf16.mxu0 0
        %2581 = vmatpush1.bf16.msra.mxu0 %v1658
        %2582 = vmatprep.subr.bf16.mxu0 0
        %2583 = vmatpush1.bf16.msra.mxu0 %v1659
        %2584 = vmatprep.subr.bf16.mxu0 0
        %2585 = vmatpush1.bf16.msra.mxu0 0
        %2586 = vmatprep.subr.bf16.mxu0 0
        %2587 = vmatpush1.bf16.msra.mxu0 0
        %2588 = vmatprep.subr.bf16.mxu0 0
        %2589 = vmatpush1.bf16.msra.mxu0 0
        %2590 = vmatprep.subr.bf16.mxu0 0
        %2591 = vmatpush1.bf16.msra.mxu0 0
        %2592 = vmatprep.subr.bf16.mxu0 0
        %2593 = vmatpush1.bf16.msra.mxu0 0
        %2594 = vmatprep.subr.bf16.mxu0 0
        %2595 = vmatpush1.bf16.msra.mxu0 0
        %2596 = vmatprep.subr.bf16.mxu0 0
        %2597 = vmatpush1.bf16.msra.mxu0 0
        %2598 = vmatprep.subr.bf16.mxu0 0
        %2599 = vmatpush1.bf16.msra.mxu0 0
        %2600 = vmatprep.mubr.bf16.mxu0 0
        %2601 = vmatmul.mubr.bf16.gmra.mrb[0].mxu0 %v948
        %v2602 = vpop.f32.mrb[0].mxu0
        %v2603 = vadd.f32 %v2394, %v2602
        %v2604 = vpop.f32.mrb[0].mxu0
        %v2605 = vpop.f32.mrb[0].mxu0
        %v2606 = vadd.f32 %v2397, %v2605
        %v2607 = vpop.f32.mrb[0].mxu0
        %2608 = vmatprep.mubr.bf16.mxu0 0
        %2609 = vmatmul.mubr.bf16.gmra.mrb[0].mxu0 %v957
        %v2610 = vpop.f32.mrb[0].mxu0
        %v2611 = vpop.f32.mrb[0].mxu0
        %v2612 = vpop.f32.mrb[0].mxu0
        %v2613 = vadd.f32 %v2404, %v2612
        %v2614 = vpop.f32.mrb[0].mxu0
        %2615 = vmatprep.mubr.bf16.mxu0 0
        %2616 = vmatmul.mubr.bf16.gmra.mrb[0].mxu0 %v966
        %v2617 = vpop.f32.mrb[0].mxu0
        %v2618 = vadd.f32 %v2409, %v2617
        %v2619 = vpop.f32.mrb[0].mxu0
        %v2620 = vpop.f32.mrb[0].mxu0
        %v2621 = vpop.f32.mrb[0].mxu0
        %2622 = vmatprep.mubr.bf16.mxu0 0
        %2623 = vmatmul.mubr.bf16.gmra.mrb[0].mxu0 %v975
        %v2624 = vpop.f32.mrb[0].mxu0
        %v2625 = vadd.f32 %v2416, %v2624
        %v2626 = vpop.f32.mrb[0].mxu0
        %v2627 = vpop.f32.mrb[0].mxu0
        %v2628 = vadd.f32 %v2419, %v2627
        %v2629 = vpop.f32.mrb[0].mxu0
        %2630 = vmatprep.mubr.bf16.mxu0 0
        %2631 = vmatmul.mubr.bf16.gmra.mrb[0].mxu0 %v984
        %v2632 = vpop.f32.mrb[0].mxu0
        %v2633 = vpop.f32.mrb[0].mxu0
        %v2634 = vpop.f32.mrb[0].mxu0
        %v2635 = vadd.f32 %v2426, %v2634
        %v2636 = vpop.f32.mrb[0].mxu0
        %2637 = vmatprep.mubr.bf16.mxu0 0
        %2638 = vmatmul.mubr.bf16.gmra.mrb[0].mxu0 %v993
        %v2639 = vpop.f32.mrb[0].mxu0
        %v2640 = vadd.f32 %v2431, %v2639
        %v2641 = vpop.f32.mrb[0].mxu0
        %v2642 = vpop.f32.mrb[0].mxu0
        %v2643 = vpop.f32.mrb[0].mxu0
        %2644 = vmatprep.mubr.bf16.mxu0 0
        %2645 = vmatmul.mubr.bf16.gmra.mrb[0].mxu0 %v1002
        %v2646 = vpop.f32.mrb[0].mxu0
        %v2647 = vadd.f32 %v2438, %v2646
        %v2648 = vpop.f32.mrb[0].mxu0
        %v2649 = vpop.f32.mrb[0].mxu0
        %v2650 = vadd.f32 %v2441, %v2649
        %v2651 = vpop.f32.mrb[0].mxu0
        %2652 = vmatprep.mubr.bf16.mxu0 0
        %2653 = vmatmul.mubr.bf16.gmra.mrb[0].mxu0 %v1011
        %v2654 = vpop.f32.mrb[0].mxu0
        %v2655 = vpop.f32.mrb[0].mxu0
        %v2656 = vpop.f32.mrb[0].mxu0
        %v2657 = vadd.f32 %v2448, %v2656
        %v2658 = vpop.f32.mrb[0].mxu0
        %2659 = vmatprep.mubr.bf16.mxu0 0
        %2660 = vmatmul.mubr.bf16.gmra.mrb[0].mxu0 %v1020
        %v2661 = vpop.f32.mrb[0].mxu0
        %v2662 = vadd.f32 %v2453, %v2661
        %v2663 = vpop.f32.mrb[0].mxu0
        %v2664 = vpop.f32.mrb[0].mxu0
        %v2665 = vpop.f32.mrb[0].mxu0
        %2666 = vmatprep.mubr.bf16.mxu0 0
        %2667 = vmatmul.mubr.bf16.gmra.mrb[0].mxu0 %v1029
        %v2668 = vpop.f32.mrb[0].mxu0
        %v2669 = vadd.f32 %v2460, %v2668
        %v2670 = vpop.f32.mrb[0].mxu0
        %v2671 = vpop.f32.mrb[0].mxu0
        %v2672 = vadd.f32 %v2463, %v2671
        %v2673 = vpop.f32.mrb[0].mxu0
        %2674 = vmatprep.mubr.bf16.mxu0 0
        %2675 = vmatmul.mubr.bf16.gmra.mrb[0].mxu0 %v1038
        %v2676 = vpop.f32.mrb[0].mxu0
        %v2677 = vpop.f32.mrb[0].mxu0
        %v2678 = vpop.f32.mrb[0].mxu0
        %v2679 = vadd.f32 %v2470, %v2678
        %v2680 = vpop.f32.mrb[0].mxu0
        %2681 = vmatprep.mubr.bf16.mxu0 0
        %2682 = vmatmul.mubr.bf16.gmra.mrb[0].mxu0 %v1047
        %v2683 = vpop.f32.mrb[0].mxu0
        %v2684 = vadd.f32 %v2475, %v2683
        %v2685 = vpop.f32.mrb[0].mxu0
        %v2686 = vpop.f32.mrb[0].mxu0
        %v2687 = vpop.f32.mrb[0].mxu0
        %2688 = vmatprep.mubr.bf16.mxu0 0
        %2689 = vmatmul.mubr.bf16.gmra.mrb[0].mxu0 %v1056
        %v2690 = vpop.f32.mrb[0].mxu0
        %v2691 = vadd.f32 %v2482, %v2690
        %v2692 = vpop.f32.mrb[0].mxu0
        %v2693 = vpop.f32.mrb[0].mxu0
        %v2694 = vadd.f32 %v2485, %v2693
        %v2695 = vpop.f32.mrb[0].mxu0
        %2696 = vmatprep.mubr.bf16.mxu0 0
        %2697 = vmatmul.mubr.bf16.gmra.mrb[0].mxu0 %v1065
        %v2698 = vpop.f32.mrb[0].mxu0
        %v2699 = vpop.f32.mrb[0].mxu0
        %v2700 = vpop.f32.mrb[0].mxu0
        %v2701 = vadd.f32 %v2492, %v2700
        %v2702 = vpop.f32.mrb[0].mxu0
        %2703 = vmatprep.mubr.bf16.mxu0 0
        %2704 = vmatmul.mubr.bf16.gmra.mrb[0].mxu0 %v1074
        %v2705 = vpop.f32.mrb[0].mxu0
        %v2706 = vadd.f32 %v2497, %v2705
        %v2707 = vpop.f32.mrb[0].mxu0
        %v2708 = vpop.f32.mrb[0].mxu0
        %v2709 = vpop.f32.mrb[0].mxu0
        %2710 = vmatprep.mubr.bf16.mxu0 0
        %2711 = vmatmul.mubr.bf16.gmra.mrb[0].mxu0 %v1083
        %v2712 = vpop.f32.mrb[0].mxu0
        %v2713 = vadd.f32 %v2504, %v2712
        %v2714 = vpop.f32.mrb[0].mxu0
        %v2715 = vpop.f32.mrb[0].mxu0
        %v2716 = vadd.f32 %v2507, %v2715
        %v2717 = vpop.f32.mrb[0].mxu0
        %2718 = vmatprep.mubr.bf16.mxu0 0
        %2719 = vmatmul.mubr.bf16.gmra.mrb[0].mxu0 %v1092
        %v2720 = vpop.f32.mrb[0].mxu0
        %v2721 = vpop.f32.mrb[0].mxu0
        %v2722 = vpop.f32.mrb[0].mxu0
        %v2723 = vadd.f32 %v2514, %v2722
        %v2724 = vpop.f32.mrb[0].mxu0
        %2725 = vmatprep.mubr.bf16.mxu0 0
        %2726 = vmatmul.mubr.bf16.gmra.mrb[0].mxu0 %v1101
        %v2727 = vpop.f32.mrb[0].mxu0
        %v2728 = vadd.f32 %v2519, %v2727
        %v2729 = vpop.f32.mrb[0].mxu0
        %v2730 = vpop.f32.mrb[0].mxu0
        %v2731 = vpop.f32.mrb[0].mxu0
        %2732 = vmatprep.mubr.bf16.mxu0 0
        %2733 = vmatmul.mubr.bf16.gmra.mrb[0].mxu0 %v1110
        %v2734 = vpop.f32.mrb[0].mxu0
        %v2735 = vadd.f32 %v2526, %v2734
        %v2736 = vpop.f32.mrb[0].mxu0
        %v2737 = vpop.f32.mrb[0].mxu0
        %v2738 = vadd.f32 %v2529, %v2737
        %v2739 = vpop.f32.mrb[0].mxu0
        %2740 = vmatprep.mubr.bf16.mxu0 0
        %2741 = vmatmul.mubr.bf16.gmra.mrb[0].mxu0 %v1119
        %v2742 = vpop.f32.mrb[0].mxu0
        %v2743 = vpop.f32.mrb[0].mxu0
        %v2744 = vpop.f32.mrb[0].mxu0
        %v2745 = vadd.f32 %v2536, %v2744
        %v2746 = vpop.f32.mrb[0].mxu0
        %2747 = vmatprep.mubr.bf16.mxu0 0
        %2748 = vmatmul.mubr.bf16.gmra.mrb[0].mxu0 %v1128
        %v2749 = vpop.f32.mrb[0].mxu0
        %v2750 = vadd.f32 %v2541, %v2749
        %v2751 = vpop.f32.mrb[0].mxu0
        %v2752 = vpop.f32.mrb[0].mxu0
        %v2753 = vpop.f32.mrb[0].mxu0
        %2754 = vmatprep.mubr.bf16.mxu0 0
        %2755 = vmatmul.mubr.bf16.gmra.mrb[0].mxu0 %v1137
        %v2756 = vpop.f32.mrb[0].mxu0
        %v2757 = vadd.f32 %v2548, %v2756
        %v2758 = vpop.f32.mrb[0].mxu0
        %v2759 = vpop.f32.mrb[0].mxu0
        %v2760 = vadd.f32 %v2551, %v2759
        %v2761 = vpop.f32.mrb[0].mxu0
        %2762 = vmatprep.mubr.bf16.mxu0 0
        %2763 = vmatmul.mubr.bf16.gmra.mrb[0].mxu0 %v1146
        %v2764 = vpop.f32.mrb[0].mxu0
        %v2765 = vpop.f32.mrb[0].mxu0
        %v2766 = vpop.f32.mrb[0].mxu0
        %v2767 = vadd.f32 %v2558, %v2766
        %v2768 = vpop.f32.mrb[0].mxu0
        %2769 = vmatprep.mubr.bf16.mxu0 0
        %2770 = vmatmul.mubr.bf16.gmra.mrb[0].mxu0 %v1155
        %v2771 = vpop.f32.mrb[0].mxu0
        %v2772 = vadd.f32 %v2563, %v2771
        %v2773 = vpop.f32.mrb[0].mxu0
        %v2774 = vpop.f32.mrb[0].mxu0
        %v2775 = vpop.f32.mrb[0].mxu0
        %2776 = vdwg.mxu0
        %v2777 = vadd.f32 %v2603, %v2606
        %v2778 = vadd.f32 %v2777, %v2613
        %v2779 = vadd.f32 %v2778, %v2618
        %v2780 = vadd.f32 %v2779, %v2625
        %v2781 = vadd.f32 %v2780, %v2628
        %v2782 = vadd.f32 %v2781, %v2635
        %v2783 = vadd.f32 %v2782, %v2640
        %v2784 = vadd.f32 %v2783, %v2647
        %v2785 = vadd.f32 %v2784, %v2650
        %v2786 = vadd.f32 %v2785, %v2657
        %v2787 = vadd.f32 %v2786, %v2662
        %v2788 = vadd.f32 %v2787, %v2669
        %v2789 = vadd.f32 %v2788, %v2672
        %v2790 = vadd.f32 %v2789, %v2679
        %v2791 = vadd.f32 %v2790, %v2684
        %v2792 = vadd.f32 %v2791, %v2691
        %v2793 = vadd.f32 %v2792, %v2694
        %v2794 = vadd.f32 %v2793, %v2701
        %v2795 = vadd.f32 %v2794, %v2706
        %v2796 = vadd.f32 %v2795, %v2713
        %v2797 = vadd.f32 %v2796, %v2716
        %v2798 = vadd.f32 %v2797, %v2723
        %v2799 = vadd.f32 %v2798, %v2728
        %v2800 = vadd.f32 %v2799, %v2735
        %v2801 = vadd.f32 %v2800, %v2738
        %v2802 = vadd.f32 %v2801, %v2745
        %v2803 = vadd.f32 %v2802, %v2750
        %v2804 = vadd.f32 %v2803, %v2757
        %v2805 = vadd.f32 %v2804, %v2760
        %v2806 = vadd.f32 %v2805, %v2767
        %v2807 = vadd.f32 %v2806, %v2772
        %v2808 = vrot.slane %v2807, 4
        %v2809 = vadd.f32 %v2807, %v2808
        %v2810 = vrot.slane %v2809, 2
        %v2811 = vadd.f32 %v2809, %v2810
        %v2812 = vrot.slane %v2811, 1
        %v2813 = vadd.f32 %v2811, %v2812
        %v2814 = vmul.f32 %v2813, 0.00390625
        %v2815 = vsub.f32 %v2603, %v2814
        %v2816 = vsub.f32 %v2606, %v2814
        %v2817 = vsub.f32 %v2613, %v2814
        %v2818 = vsub.f32 %v2618, %v2814
        %v2819 = vsub.f32 %v2625, %v2814
        %v2820 = vsub.f32 %v2628, %v2814
        %v2821 = vsub.f32 %v2635, %v2814
        %v2822 = vsub.f32 %v2640, %v2814
        %v2823 = vsub.f32 %v2647, %v2814
        %v2824 = vsub.f32 %v2650, %v2814
        %v2825 = vsub.f32 %v2657, %v2814
        %v2826 = vsub.f32 %v2662, %v2814
        %v2827 = vsub.f32 %v2669, %v2814
        %v2828 = vsub.f32 %v2672, %v2814
        %v2829 = vsub.f32 %v2679, %v2814
        %v2830 = vsub.f32 %v2684, %v2814
        %v2831 = vsub.f32 %v2691, %v2814
        %v2832 = vsub.f32 %v2694, %v2814
        %v2833 = vsub.f32 %v2701, %v2814
        %v2834 = vsub.f32 %v2706, %v2814
        %v2835 = vsub.f32 %v2713, %v2814
        %v2836 = vsub.f32 %v2716, %v2814
        %v2837 = vsub.f32 %v2723, %v2814
        %v2838 = vsub.f32 %v2728, %v2814
        %v2839 = vsub.f32 %v2735, %v2814
        %v2840 = vsub.f32 %v2738, %v2814
        %v2841 = vsub.f32 %v2745, %v2814
        %v2842 = vsub.f32 %v2750, %v2814
        %v2843 = vsub.f32 %v2757, %v2814
        %v2844 = vsub.f32 %v2760, %v2814
        %v2845 = vsub.f32 %v2767, %v2814
        %v2846 = vsub.f32 %v2772, %v2814
        %v2847 = vmul.f32 %v2815, %v2815
        %v2848 = vmul.f32 %v2816, %v2816
        %v2849 = vmul.f32 %v2817, %v2817
        %v2850 = vmul.f32 %v2818, %v2818
        %v2851 = vmul.f32 %v2819, %v2819
        %v2852 = vmul.f32 %v2820, %v2820
        %v2853 = vmul.f32 %v2821, %v2821
        %v2854 = vmul.f32 %v2822, %v2822
        %v2855 = vmul.f32 %v2823, %v2823
        %v2856 = vmul.f32 %v2824, %v2824
        %v2857 = vmul.f32 %v2825, %v2825
        %v2858 = vmul.f32 %v2826, %v2826
        %v2859 = vmul.f32 %v2827, %v2827
        %v2860 = vmul.f32 %v2828, %v2828
        %v2861 = vmul.f32 %v2829, %v2829
        %v2862 = vmul.f32 %v2830, %v2830
        %v2863 = vmul.f32 %v2831, %v2831
        %v2864 = vmul.f32 %v2832, %v2832
        %v2865 = vmul.f32 %v2833, %v2833
        %v2866 = vmul.f32 %v2834, %v2834
        %v2867 = vmul.f32 %v2835, %v2835
        %v2868 = vmul.f32 %v2836, %v2836
        %v2869 = vmul.f32 %v2837, %v2837
        %v2870 = vmul.f32 %v2838, %v2838
        %v2871 = vmul.f32 %v2839, %v2839
        %v2872 = vmul.f32 %v2840, %v2840
        %v2873 = vmul.f32 %v2841, %v2841
        %v2874 = vmul.f32 %v2842, %v2842
        %v2875 = vmul.f32 %v2843, %v2843
        %v2876 = vmul.f32 %v2844, %v2844
        %v2877 = vmul.f32 %v2845, %v2845
        %v2878 = vmul.f32 %v2846, %v2846
        %v2879 = vadd.f32 %v2847, %v2848
        %v2880 = vadd.f32 %v2879, %v2849
        %v2881 = vadd.f32 %v2880, %v2850
        %v2882 = vadd.f32 %v2881, %v2851
        %v2883 = vadd.f32 %v2882, %v2852
        %v2884 = vadd.f32 %v2883, %v2853
        %v2885 = vadd.f32 %v2884, %v2854
        %v2886 = vadd.f32 %v2885, %v2855
        %v2887 = vadd.f32 %v2886, %v2856
        %v2888 = vadd.f32 %v2887, %v2857
        %v2889 = vadd.f32 %v2888, %v2858
        %v2890 = vadd.f32 %v2889, %v2859
        %v2891 = vadd.f32 %v2890, %v2860
        %v2892 = vadd.f32 %v2891, %v2861
        %v2893 = vadd.f32 %v2892, %v2862
        %v2894 = vadd.f32 %v2893, %v2863
        %v2895 = vadd.f32 %v2894, %v2864
        %v2896 = vadd.f32 %v2895, %v2865
        %v2897 = vadd.f32 %v2896, %v2866
        %v2898 = vadd.f32 %v2897, %v2867
        %v2899 = vadd.f32 %v2898, %v2868
        %v2900 = vadd.f32 %v2899, %v2869
        %v2901 = vadd.f32 %v2900, %v2870
        %v2902 = vadd.f32 %v2901, %v2871
        %v2903 = vadd.f32 %v2902, %v2872
        %v2904 = vadd.f32 %v2903, %v2873
        %v2905 = vadd.f32 %v2904, %v2874
        %v2906 = vadd.f32 %v2905, %v2875
        %v2907 = vadd.f32 %v2906, %v2876
        %v2908 = vadd.f32 %v2907, %v2877
        %v2909 = vadd.f32 %v2908, %v2878
        %v2910 = vrot.slane %v2909, 4
        %v2911 = vadd.f32 %v2909, %v2910
        %v2912 = vrot.slane %v2911, 2
        %v2913 = vadd.f32 %v2911, %v2912
        %v2914 = vrot.slane %v2913, 1
        %v2915 = vadd.f32 %v2913, %v2914
        %v2916 = vmul.f32 %v2915, 0.00390625
        %v2917 = vadd.f32 %v2916, 1e-05
        %v2918 = vrsqrt.pop %v2917
        %v2919 = vmul.f32 %v2815, %v2918
        %v2920 = vmul.f32 %v2816, %v2918
        %v2921 = vmul.f32 %v2817, %v2918
        %v2922 = vmul.f32 %v2818, %v2918
        %v2923 = vmul.f32 %v2819, %v2918
        %v2924 = vmul.f32 %v2820, %v2918
        %v2925 = vmul.f32 %v2821, %v2918
        %v2926 = vmul.f32 %v2822, %v2918
        %v2927 = vmul.f32 %v2823, %v2918
        %v2928 = vmul.f32 %v2824, %v2918
        %v2929 = vmul.f32 %v2825, %v2918
        %v2930 = vmul.f32 %v2826, %v2918
        %v2931 = vmul.f32 %v2827, %v2918
        %v2932 = vmul.f32 %v2828, %v2918
        %v2933 = vmul.f32 %v2829, %v2918
        %v2934 = vmul.f32 %v2830, %v2918
        %v2935 = vmul.f32 %v2831, %v2918
        %v2936 = vmul.f32 %v2832, %v2918
        %v2937 = vmul.f32 %v2833, %v2918
        %v2938 = vmul.f32 %v2834, %v2918
        %v2939 = vmul.f32 %v2835, %v2918
        %v2940 = vmul.f32 %v2836, %v2918
        %v2941 = vmul.f32 %v2837, %v2918
        %v2942 = vmul.f32 %v2838, %v2918
        %v2943 = vmul.f32 %v2839, %v2918
        %v2944 = vmul.f32 %v2840, %v2918
        %v2945 = vmul.f32 %v2841, %v2918
        %v2946 = vmul.f32 %v2842, %v2918
        %v2947 = vmul.f32 %v2843, %v2918
        %v2948 = vmul.f32 %v2844, %v2918
        %v2949 = vmul.f32 %v2845, %v2918
        %v2950 = vmul.f32 %v2846, %v2918
        %v2951 = vmax.f32 %v2919, 0.0
        %v2952 = vmax.f32 %v2920, 0.0
        %v2953 = vmax.f32 %v2921, 0.0
        %v2954 = vmax.f32 %v2922, 0.0
        %v2955 = vmax.f32 %v2923, 0.0
        %v2956 = vmax.f32 %v2924, 0.0
        %v2957 = vmax.f32 %v2925, 0.0
        %v2958 = vmax.f32 %v2926, 0.0
        %v2959 = vmax.f32 %v2927, 0.0
        %v2960 = vmax.f32 %v2928, 0.0
        %v2961 = vmax.f32 %v2929, 0.0
        %v2962 = vmax.f32 %v2930, 0.0
        %v2963 = vmax.f32 %v2931, 0.0
        %v2964 = vmax.f32 %v2932, 0.0
        %v2965 = vmax.f32 %v2933, 0.0
        %v2966 = vmax.f32 %v2934, 0.0
        %v2967 = vmax.f32 %v2935, 0.0
        %v2968 = vmax.f32 %v2936, 0.0
        %v2969 = vmax.f32 %v2937, 0.0
        %v2970 = vmax.f32 %v2938, 0.0
        %v2971 = vmax.f32 %v2939, 0.0
        %v2972 = vmax.f32 %v2940, 0.0
        %v2973 = vmax.f32 %v2941, 0.0
        %v2974 = vmax.f32 %v2942, 0.0
        %v2975 = vmax.f32 %v2943, 0.0
        %v2976 = vmax.f32 %v2944, 0.0
        %v2977 = vmax.f32 %v2945, 0.0
        %v2978 = vmax.f32 %v2946, 0.0
        %v2979 = vmax.f32 %v2947, 0.0
        %v2980 = vmax.f32 %v2948, 0.0
        %v2981 = vmax.f32 %v2949, 0.0
        %v2982 = vmax.f32 %v2950, 0.0
        %v2983 = vld [vmem:[%s152] sm:$0xff]
        %v2984 = vld [vmem:[%s152 + $0x8] sm:$0xff]
        %v2985 = vld [vmem:[%s152 + $0x10] sm:$0xff]
        %v2986 = vld [vmem:[%s152 + $0x18] sm:$0xff]
        %v2987 = vld [vmem:[%s152 + $0x20] sm:$0xff]
        %v2988 = vld [vmem:[%s152 + $0x28] sm:$0xff]
        %v2989 = vld [vmem:[%s152 + $0x30] sm:$0xff]
        %v2990 = vld [vmem:[%s152 + $0x38] sm:$0xff]
        %v2991 = vld [vmem:[%s152 + $0x40] sm:$0xff]
        %v2992 = vld [vmem:[%s152 + $0x48] sm:$0xff]
        %v2993 = vld [vmem:[%s152 + $0x50] sm:$0xff]
        %v2994 = vld [vmem:[%s152 + $0x58] sm:$0xff]
        %v2995 = vld [vmem:[%s152 + $0x60] sm:$0xff]
        %v2996 = vld [vmem:[%s152 + $0x68] sm:$0xff]
        %v2997 = vld [vmem:[%s152 + $0x70] sm:$0xff]
        %v2998 = vld [vmem:[%s152 + $0x78] sm:$0xff]
        %v2999 = vld [vmem:[%s152 + $0x80] sm:$0xff]
        %v3000 = vld [vmem:[%s152 + $0x88] sm:$0xff]
        %v3001 = vld [vmem:[%s152 + $0x90] sm:$0xff]
        %v3002 = vld [vmem:[%s152 + $0x98] sm:$0xff]
        %v3003 = vld [vmem:[%s152 + $0xa0] sm:$0xff]
        %v3004 = vld [vmem:[%s152 + $0xa8] sm:$0xff]
        %v3005 = vld [vmem:[%s152 + $0xb0] sm:$0xff]
        %v3006 = vld [vmem:[%s152 + $0xb8] sm:$0xff]
        %v3007 = vld [vmem:[%s152 + $0xc0] sm:$0xff]
        %v3008 = vld [vmem:[%s152 + $0xc8] sm:$0xff]
        %v3009 = vld [vmem:[%s152 + $0xd0] sm:$0xff]
        %v3010 = vld [vmem:[%s152 + $0xd8] sm:$0xff]
        %v3011 = vld [vmem:[%s152 + $0xe0] sm:$0xff]
        %v3012 = vld [vmem:[%s152 + $0xe8] sm:$0xff]
        %v3013 = vld [vmem:[%s152 + $0xf0] sm:$0xff]
        %v3014 = vld [vmem:[%s152 + $0xf8] sm:$0xff]
        %v3015 = vadd.f32 %v2983, %v2951
        %v3016 = vadd.f32 %v2984, %v2952
        %v3017 = vadd.f32 %v2985, %v2953
        %v3018 = vadd.f32 %v2986, %v2954
        %v3019 = vadd.f32 %v2987, %v2955
        %v3020 = vadd.f32 %v2988, %v2956
        %v3021 = vadd.f32 %v2989, %v2957
        %v3022 = vadd.f32 %v2990, %v2958
        %v3023 = vadd.f32 %v2991, %v2959
        %v3024 = vadd.f32 %v2992, %v2960
        %v3025 = vadd.f32 %v2993, %v2961
        %v3026 = vadd.f32 %v2994, %v2962
        %v3027 = vadd.f32 %v2995, %v2963
        %v3028 = vadd.f32 %v2996, %v2964
        %v3029 = vadd.f32 %v2997, %v2965
        %v3030 = vadd.f32 %v2998, %v2966
        %v3031 = vadd.f32 %v2999, %v2967
        %v3032 = vadd.f32 %v3000, %v2968
        %v3033 = vadd.f32 %v3001, %v2969
        %v3034 = vadd.f32 %v3002, %v2970
        %v3035 = vadd.f32 %v3003, %v2971
        %v3036 = vadd.f32 %v3004, %v2972
        %v3037 = vadd.f32 %v3005, %v2973
        %v3038 = vadd.f32 %v3006, %v2974
        %v3039 = vadd.f32 %v3007, %v2975
        %v3040 = vadd.f32 %v3008, %v2976
        %v3041 = vadd.f32 %v3009, %v2977
        %v3042 = vadd.f32 %v3010, %v2978
        %v3043 = vadd.f32 %v3011, %v2979
        %v3044 = vadd.f32 %v3012, %v2980
        %v3045 = vadd.f32 %v3013, %v2981
        %v3046 = vadd.f32 %v3014, %v2982
        %3047 = vst [vmem:[%s176] sm:$0xff] %v3015
        %3048 = vst [vmem:[%s176 + $0x8] sm:$0xff] %v3016
        %3049 = vst [vmem:[%s176 + $0x10] sm:$0xff] %v3017
        %3050 = vst [vmem:[%s176 + $0x18] sm:$0xff] %v3018
        %3051 = vst [vmem:[%s176 + $0x20] sm:$0xff] %v3019
        %3052 = vst [vmem:[%s176 + $0x28] sm:$0xff] %v3020
        %3053 = vst [vmem:[%s176 + $0x30] sm:$0xff] %v3021
        %3054 = vst [vmem:[%s176 + $0x38] sm:$0xff] %v3022
        %3055 = vst [vmem:[%s176 + $0x40] sm:$0xff] %v3023
        %3056 = vst [vmem:[%s176 + $0x48] sm:$0xff] %v3024
        %3057 = vst [vmem:[%s176 + $0x50] sm:$0xff] %v3025
        %3058 = vst [vmem:[%s176 + $0x58] sm:$0xff] %v3026
        %3059 = vst [vmem:[%s176 + $0x60] sm:$0xff] %v3027
        %3060 = vst [vmem:[%s176 + $0x68] sm:$0xff] %v3028
        %3061 = vst [vmem:[%s176 + $0x70] sm:$0xff] %v3029
        %3062 = vst [vmem:[%s176 + $0x78] sm:$0xff] %v3030
        %3063 = vst [vmem:[%s176 + $0x80] sm:$0xff] %v3031
        %3064 = vst [vmem:[%s176 + $0x88] sm:$0xff] %v3032
        %3065 = vst [vmem:[%s176 + $0x90] sm:$0xff] %v3033
        %3066 = vst [vmem:[%s176 + $0x98] sm:$0xff] %v3034
        %3067 = vst [vmem:[%s176 + $0xa0] sm:$0xff] %v3035
        %3068 = vst [vmem:[%s176 + $0xa8] sm:$0xff] %v3036
        %3069 = vst [vmem:[%s176 + $0xb0] sm:$0xff] %v3037
        %3070 = vst [vmem:[%s176 + $0xb8] sm:$0xff] %v3038
        %3071 = vst [vmem:[%s176 + $0xc0] sm:$0xff] %v3039
        %3072 = vst [vmem:[%s176 + $0xc8] sm:$0xff] %v3040
        %3073 = vst [vmem:[%s176 + $0xd0] sm:$0xff] %v3041
        %3074 = vst [vmem:[%s176 + $0xd8] sm:$0xff] %v3042
        %3075 = vst [vmem:[%s176 + $0xe0] sm:$0xff] %v3043
        %3076 = vst [vmem:[%s176 + $0xe8] sm:$0xff] %v3044
        %3077 = vst [vmem:[%s176 + $0xf0] sm:$0xff] %v3045
        %3078 = vst [vmem:[%s176 + $0xf8] sm:$0xff] %v3046
        %s3079 = sand.u32 %s75, 1
        %s3080 = scalar_lea.sflag [#allocation6], %s3079
        %s3081 = sand.u32 %s75, 1
        %s3082 = smul.addr %s3081, 256
        %s3083 = scalar_lea.vmem [#allocation9], %s3082
        // Predicated region
        $region37: #{tpu_custom_call.1} parent=27 // pred_check
          %p3084 = pneg %p85
        $region38: #{tpu_custom_call.1} parent=27 // pred_check_branch
          %3086 = sbr.rel (%p3084) target = $region40
        $region39: #{tpu_custom_call.1} parent=27 // pred_region
          %s3088 = ssub.s32 4096, 4096
          %3089 = vsyncadd %s3080, %s3088
          %s3090 = smul.addr %s20, 32
          %s3091 = smul.addr %s3090, 128
          %s3092 = scalar_lea.hbm %s2, %s3091
          %s3093 = sshll.u32 %s3083, 4
          %s3094 = int_to_ptr.vmem [resolvable:$true] %s3093
          %3099 = dma.vmem_to_hbm [thread:$0]  %s3094, 4096, %s3092, %s3080, 128, 128, 8
        $region40: #{tpu_custom_call.1} parent=27 // pred_fallthru
          _
      $region28: #{tpu_custom_call.1} parent=5 // pred_fallthru
        _
      %p3100 = scmp.le.s32.totalorder 2, %s15
      // Predicated region
      $region41: #{tpu_custom_call.1} parent=5 // pred_check
        %p3101 = pneg %p3100
      $region42: #{tpu_custom_call.1} parent=5 // pred_check_branch
        %3103 = sbr.rel (%p3101) target = $region44
      $region43: #{tpu_custom_call.1} parent=5 // pred_region
        %s3104 = ssub.s32 %s15, 2
        // Predicated region
        $region45: #{tpu_custom_call.1} parent=43 // pred_check
          %p3105 = pneg %p91
        $region46: #{tpu_custom_call.1} parent=43 // pred_check_branch
          %3107 = sbr.rel (%p3105) target = $region48
        $region47: #{tpu_custom_call.1} parent=43 // pred_region
          %s3108 = sand.u32 %s76, 1
          %s3109 = scalar_lea.sflag [#allocation6], %s3108
          %s3110 = sand.u32 %s76, 1
          %s3111 = smul.addr %s3110, 256
          %s3112 = scalar_lea.vmem [#allocation9], %s3111
          %3113 = dma.done %s3109, 4096
        $region48: #{tpu_custom_call.1} parent=43 // pred_fallthru
          _
      $region44: #{tpu_custom_call.1} parent=5 // pred_fallthru
        _
    $region6: #{tpu_custom_call.1} parent=1 // loop_footer
      %s19 = sadd.s32 1, %s15
    $region7: #{tpu_custom_call.1} parent=1 // loop_footer_branch
      %14 = sbr.rel target = $region3
    $region8: #{tpu_custom_call.1} parent=1 // loop_exit
      _
    %3114 = vsyncpa [#allocation5], 1
    %s3115 = scalar_lea.sflag [#allocation5], 1
    %3116 = vsyncpa %s3115, 1
    %3117 = vsyncpa [#allocation8], 1
    %3118 = vsyncpa [#allocation6], 1
    %s3119 = scalar_lea.sflag [#allocation6], 1
    %3120 = vsyncpa %s3119, 1

</llo_original>
